<compile_context>
chip_gen: v5e
topology: v5e:2x2
jax: 0.10.0
libtpu: 0.0.40
codegen_flags: <defaults>
</compile_context>

<pallas_src>
import jax
import jax.numpy as jnp
from jax.experimental import pallas as pl
from jax.experimental.pallas import tpu as pltpu


_NMASK = 4          # RandomSmoothLabelMap(Fixed(4), shape=8)
_NBG = 16           # RandomSmoothLabelMap(16, shape=8)


# ----------------------------------------------------------------------------
# Fused synthesis kernel
# ----------------------------------------------------------------------------
def _synth_kernel(x_ref, n8_ref, n5_ref, gn_ref,
                  a8_ref, b8_ref, a5_ref, b5_ref, a1_ref, b1_ref,
                  p_ref, bias_ref,
                  gam_ref, muid_ref, sgid_ref, muz_ref, sgz_ref,
                  img_ref, msk_ref):
    H, W = x_ref.shape
    f32 = jnp.float32
    bf16 = jnp.bfloat16

    # ---- one wide A-side matmul for all 20 shape-8 fields -------------------
    # A8:(H,H) bf16  @  n8:(H, 20*W) bf16  ->  (H, 20*W) f32 (accumulated f32)
    an8 = jnp.dot(a8_ref[...], n8_ref[...],
                  preferred_element_type=f32).astype(bf16)
    b8 = b8_ref[...]

    def field8(f):
        # per-field B-side matmul; B8 stays resident as the stationary weight.
        return jnp.dot(an8[:, f * W:(f + 1) * W], b8,
                       preferred_element_type=f32)

    # ---- RandomSmoothLabelMap(Fixed(4), shape=8): foreground mask -----------
    # argmax(fields) > 0  <=>  max(f1, f2, f3) > f0
    f0 = field8(0)
    fmax = field8(1)
    fmax = jnp.maximum(fmax, field8(2))
    fmax = jnp.maximum(fmax, field8(3))
    m = fmax > f0

    x = x_ref[...]
    xm = jnp.where(m, x, 0.0)
    pf = (xm > 0.0).astype(f32)
    msk_ref[...] = pf            # store mask early; frees x/m/fmax planes

    # TODO(synk): erodespline / shallow / erode_label / balls morphological
    # label transforms have no clean Pallas equivalent; identity used here.

    # ---- fwhm-5 GMM noise fields (vessel + background), batched -------------
    an5 = jnp.dot(a5_ref[...], n5_ref[...],
                  preferred_element_type=f32).astype(bf16)
    b5 = b5_ref[...]
    nv = jnp.dot(an5[:, :W], b5, preferred_element_type=f32)
    nz = jnp.dot(an5[:, W:], b5, preferred_element_type=f32)

    # ---- vessel GMM: scalar-select mu/sigma per vessel id, apply once -------
    mu_sel = jnp.zeros((H, W), f32)
    sg_sel = jnp.zeros((H, W), f32)
    for k in range(1, muid_ref.shape[0]):
        hit = xm == float(k)
        mu_sel = jnp.where(hit, muid_ref[k], mu_sel)
        sg_sel = jnp.where(hit, sgid_ref[k], sg_sel)
    yv = mu_sel + sg_sel * nv    # zero outside vessels (mu_sel = sg_sel = 0)

    # ---- background: 16-class smooth label map + GMM, argmax fused ----------
    bestz = field8(_NMASK)
    muz_sel = jnp.full((H, W), muz_ref[0], f32)
    sgz_sel = jnp.full((H, W), sgz_ref[0], f32)
    for c in range(1, muz_ref.shape[0]):
        f = field8(_NMASK + c)
        hit = f > bestz
        muz_sel = jnp.where(hit, muz_ref[c], muz_sel)
        sgz_sel = jnp.where(hit, sgz_ref[c], sgz_sel)
        bestz = jnp.maximum(bestz, f)
    zv = muz_sel + sgz_sel * nz

    y = yv + (1.0 - pf) * zv

    # ---- gamma transform (normalize -> pow -> denormalize) ------------------
    mn = jnp.min(y)
    mx = jnp.max(y)
    scale = mx - mn + 1e-8
    yn = (y - mn) * (1.0 / scale)          # scalar reciprocal, plane multiply
    g = gam_ref[0]
    yn = jnp.exp(g * jnp.log(jnp.maximum(yn, 1e-8)))
    y = yn * scale + mn

    # ---- RandomSmoothTransform(fwhm=1) --------------------------------------
    # TODO(synk): original applies this with probability 0.5; applied always.
    yb = jnp.dot(y.astype(bf16), b1_ref[...], preferred_element_type=f32)
    y = jnp.dot(a1_ref[...], yb.astype(bf16), preferred_element_type=f32)

    # ---- slicewise multiplicative bias * gamma noise -------------------------
    # TODO(synk): Gamma(50)/50 noise approximated by 1 + N(0,1)/sqrt(50);
    #             chi-noise branch of the original `|` choice is not taken.
    y = y * bias_ref[...] * gn_ref[...]

    # ---- low-res along last axis (block average via y @ P) -------------------
    y = jnp.dot(y.astype(bf16), p_ref[...], preferred_element_type=f32)

    # ---- rescale --------------------------------------------------------------
    # TODO(synk): QuantileTransform (0.01/0.99 quantiles) approximated by min/max.
    mn = jnp.min(y)
    mx = jnp.max(y)
    img_ref[...] = (y - mn) * (1.0 / (mx - mn + 1e-8))


def _synth_call(x, n8, n5, gn, A8, B8, A5, B5, A1, B1, P, bias,
                gam, mu_id, sg_id, muz, sgz):
    H, W = x.shape

    def full_spec(*shape):
        nd = len(shape)
        return pl.BlockSpec(shape, lambda i, nd=nd: (0,) * nd)

    smem = pl.BlockSpec(memory_space=pltpu.MemorySpace.SMEM)

    nf8 = n8.shape[1] // W
    nf5 = n5.shape[1] // W

    return pl.pallas_call(
        _synth_kernel,
        out_shape=(jax.ShapeDtypeStruct((H, W), jnp.float32),
                   jax.ShapeDtypeStruct((H, W), jnp.float32)),
        grid=(1,),
        in_specs=[full_spec(H, W),                 # x
                  full_spec(H, nf8 * W),           # stacked shape-8 white noise
                  full_spec(H, nf5 * W),           # stacked fwhm-5 white noise
                  full_spec(H, W),                 # gamma-noise plane
                  full_spec(H, H), full_spec(W, W),  # A8, B8
                  full_spec(H, H), full_spec(W, W),  # A5, B5
                  full_spec(H, H), full_spec(W, W),  # A1, B1
                  full_spec(W, W),                 # low-res averaging P
                  full_spec(1, W),                 # slicewise bias row
                  smem, smem, smem, smem, smem],   # gam, mu_id, sg_id, muz, sgz
        out_specs=(full_spec(H, W), full_spec(H, W)),
    )(x, n8, n5, gn, A8, B8, A5, B5, A1, B1, P, bias,
      gam, mu_id, sg_id, muz, sgz)


# ----------------------------------------------------------------------------
# Parameter setup (all device-side, static shapes, fully jittable)
# ----------------------------------------------------------------------------
def _gaussian_toeplitz(n, fwhm):
    sigma = max(float(fwhm), 1e-3) / 2.3548
    idx = jnp.arange(n, dtype=jnp.float32)
    d = idx[:, None] - idx[None, :]
    g = jnp.exp(-0.5 * (d / sigma) ** 2)
    return (g / jnp.sum(g, axis=1, keepdims=True)).astype(jnp.float32)


def synth_vessel_photo_image(label, key, *, nv_max=8):
    """label: (1, H, W) int32 vessel-id volume -> (image, fg_mask), each (1, H, W) f32."""
    _, H, W = label.shape
    ks = jax.random.split(key, 12)

    # RandomFlipTransform: deterministic flip along the last axis
    # TODO(synk): original flips a random subset of axes.
    x = jnp.flip(label[0].astype(jnp.float32), axis=-1)

    # separable Gaussian blur operators (bf16 -> native MXU path)
    A8 = _gaussian_toeplitz(H, H / 8).astype(jnp.bfloat16)   # "shape=8" fields
    B8 = _gaussian_toeplitz(W, W / 8).astype(jnp.bfloat16)
    A5 = _gaussian_toeplitz(H, 5.0).astype(jnp.bfloat16)     # GMM fwhm=5
    B5 = _gaussian_toeplitz(W, 5.0).astype(jnp.bfloat16)
    A1 = _gaussian_toeplitz(H, 1.0).astype(jnp.bfloat16)     # smooth fwhm=1
    B1 = _gaussian_toeplitz(W, 1.0).astype(jnp.bfloat16)

    # white-noise fields, stacked along the lane axis so the kernel can do one
    # wide A-side matmul and reuse the B-side operator as stationary weights.
    nf8 = _NMASK + _NBG
    n8 = jax.random.normal(ks[0], (H, nf8 * W), jnp.float32).astype(jnp.bfloat16)
    n5 = jax.random.normal(ks[1], (H, 2 * W), jnp.float32).astype(jnp.bfloat16)
    gn = 1.0 + 0.14142136 * jax.random.normal(ks[2], (H, W), jnp.float32)

    # vessel-id -> group-id LUT, built with traced ops (no host syncs, no
    # data-dependent shapes -> no per-input recompilation).
    # TODO(synk): vessel count fixed to the static nv_max rather than the
    # data-dependent number of unique ids present after the morph transforms.
    max_groups = 5
    nb_groups = jax.random.randint(ks[3], (), 1, max_groups + 1)
    perm = jax.random.permutation(ks[4], nv_max)
    nb_per_group = (nv_max + nb_groups - 1) // nb_groups
    groups = jnp.arange(nv_max, dtype=jnp.int32) // nb_per_group + 1
    lut = jnp.zeros((nv_max + 1,), jnp.int32).at[perm + 1].set(groups)

    muv = jnp.concatenate([jnp.zeros((1,), jnp.float32),
                           jax.random.uniform(ks[5], (max_groups,), jnp.float32)])
    sgv = jnp.concatenate([jnp.zeros((1,), jnp.float32),
                           jax.random.uniform(ks[6], (max_groups,), jnp.float32,
                                              0.01, 0.2)])
    mu_id = muv[lut]                     # per-vessel-id GMM mean   (nv_max+1,)
    sg_id = sgv[lut]                     # per-vessel-id GMM sigma  (nv_max+1,)

    muz = jax.random.uniform(ks[7], (_NBG,), jnp.float32)
    sgz = jax.random.uniform(ks[8], (_NBG,), jnp.float32, 0.01, 0.2)

    gam = jax.random.uniform(ks[9], (1,), jnp.float32, 0.0, 5.0)

    # thick: slicewise bias + low-res along last axis
    r = 8  # TODO(synk): resolution ~ Uniform(8, 12); fixed at 8 (static shape)
    bias_low = jax.random.uniform(ks[10], (W // r,), jnp.float32, 0.7, 1.3)
    bias = jnp.repeat(bias_low, r)[None, :]
    blocks = jnp.arange(W) // r
    P = ((blocks[:, None] == blocks[None, :]).astype(jnp.float32) / r
         ).astype(jnp.bfloat16)

    img, msk = _synth_call(x, n8, n5, gn, A8, B8, A5, B5, A1, B1, P, bias,
                           gam, mu_id, sg_id, muz, sgz)
    return img[None], msk[None]


if __name__ == "__main__":
    H, W = 64, 128
    NV = 8
    key = jax.random.PRNGKey(0)
    klabel, krun = jax.random.split(key)
    label = jax.random.randint(klabel, (1, H, W), 0, NV + 1, dtype=jnp.int32)

    fn = jax.jit(synth_vessel_photo_image)
    img, p = fn(label, krun)
    jax.block_until_ready((img, p))

    assert img.shape == (1, H, W) and p.shape == (1, H, W)
    assert bool(jnp.all(jnp.isfinite(img)))
    print("KERNEL_OK")
</pallas_src>

<mosaic_0001>
module attributes {stable_mosaic.version = 11 : i64} {
  func.func @_synth_kernel(%arg0: i32, %arg1: memref<64x128xf32, #tpu.memory_space<vmem>>, %arg2: memref<64x2560xbf16, #tpu.memory_space<vmem>>, %arg3: memref<64x256xbf16, #tpu.memory_space<vmem>>, %arg4: memref<64x128xf32, #tpu.memory_space<vmem>>, %arg5: memref<64x64xbf16, #tpu.memory_space<vmem>>, %arg6: memref<128x128xbf16, #tpu.memory_space<vmem>>, %arg7: memref<64x64xbf16, #tpu.memory_space<vmem>>, %arg8: memref<128x128xbf16, #tpu.memory_space<vmem>>, %arg9: memref<64x64xbf16, #tpu.memory_space<vmem>>, %arg10: memref<128x128xbf16, #tpu.memory_space<vmem>>, %arg11: memref<128x128xbf16, #tpu.memory_space<vmem>>, %arg12: memref<1x128xf32, #tpu.memory_space<vmem>>, %arg13: memref<1xf32, #tpu.memory_space<smem>>, %arg14: memref<9xf32, #tpu.memory_space<smem>>, %arg15: memref<9xf32, #tpu.memory_space<smem>>, %arg16: memref<16xf32, #tpu.memory_space<smem>>, %arg17: memref<16xf32, #tpu.memory_space<smem>>, %arg18: memref<64x128xf32, #tpu.memory_space<vmem>>, %arg19: memref<64x128xf32, #tpu.memory_space<vmem>>) attributes {dimension_semantics = [#tpu.dimension_semantics<arbitrary>], iteration_bounds = array<i64: 1>, scalar_prefetch = 0 : i64, scratch_operands = 0 : i64, tpu.core_type = #tpu.core_type<tc>, window_params = [{pipeline_mode = #tpu.pipeline_mode<synchronous>, transform_indices = @transform_0, window_bounds = array<i64: 64, 128>}, {pipeline_mode = #tpu.pipeline_mode<synchronous>, transform_indices = @transform_1, window_bounds = array<i64: 64, 2560>}, {pipeline_mode = #tpu.pipeline_mode<synchronous>, transform_indices = @transform_2, window_bounds = array<i64: 64, 256>}, {pipeline_mode = #tpu.pipeline_mode<synchronous>, transform_indices = @transform_3, window_bounds = array<i64: 64, 128>}, {pipeline_mode = #tpu.pipeline_mode<synchronous>, transform_indices = @transform_4, window_bounds = array<i64: 64, 64>}, {pipeline_mode = #tpu.pipeline_mode<synchronous>, transform_indices = @transform_5, window_bounds = array<i64: 128, 128>}, {pipeline_mode = #tpu.pipeline_mode<synchronous>, transform_indices = @transform_6, window_bounds = array<i64: 64, 64>}, {pipeline_mode = #tpu.pipeline_mode<synchronous>, transform_indices = @transform_7, window_bounds = array<i64: 128, 128>}, {pipeline_mode = #tpu.pipeline_mode<synchronous>, transform_indices = @transform_8, window_bounds = array<i64: 64, 64>}, {pipeline_mode = #tpu.pipeline_mode<synchronous>, transform_indices = @transform_9, window_bounds = array<i64: 128, 128>}, {pipeline_mode = #tpu.pipeline_mode<synchronous>, transform_indices = @transform_10, window_bounds = array<i64: 128, 128>}, {pipeline_mode = #tpu.pipeline_mode<synchronous>, transform_indices = @transform_11, window_bounds = array<i64: 1, 128>}, {transform_indices = @transform_12, window_bounds = array<i64: 1>}, {transform_indices = @transform_13, window_bounds = array<i64: 9>}, {transform_indices = @transform_14, window_bounds = array<i64: 9>}, {transform_indices = @transform_15, window_bounds = array<i64: 16>}, {transform_indices = @transform_16, window_bounds = array<i64: 16>}, {pipeline_mode = #tpu.pipeline_mode<synchronous>, transform_indices = @transform_17, window_bounds = array<i64: 64, 128>}, {pipeline_mode = #tpu.pipeline_mode<synchronous>, transform_indices = @transform_18, window_bounds = array<i64: 64, 128>}]} {
    %c0 = arith.constant 0 : index
    %c0_0 = arith.constant 0 : index
    %0 = vector.load %arg5[%c0, %c0_0] : memref<64x64xbf16, #tpu.memory_space<vmem>>, vector<64x64xbf16>
    %c0_1 = arith.constant 0 : index
    %c0_2 = arith.constant 0 : index
    %1 = vector.load %arg2[%c0_1, %c0_2] : memref<64x2560xbf16, #tpu.memory_space<vmem>>, vector<64x2560xbf16>
    %cst = arith.constant dense<0.000000e+00> : vector<64x2560xf32>
    %2 = tpu.matmul %0, %1, %cst {dimension_numbers = #tpu.dot_dimension_numbers<[1], [0], [0], [1], [0, 0, 1, 1], [], []>} : vector<64x64xbf16>, vector<64x2560xbf16>, vector<64x2560xf32> -> vector<64x2560xf32>
    %3 = arith.truncf %2 : vector<64x2560xf32> to vector<64x2560xbf16>
    %c0_3 = arith.constant 0 : index
    %c0_4 = arith.constant 0 : index
    %4 = vector.load %arg6[%c0_3, %c0_4] : memref<128x128xbf16, #tpu.memory_space<vmem>>, vector<128x128xbf16>
    %5 = vector.extract_strided_slice %3 {offsets = [0, 0], sizes = [64, 128], strides = [1, 1]} : vector<64x2560xbf16> to vector<64x128xbf16>
    %cst_5 = arith.constant dense<0.000000e+00> : vector<64x128xf32>
    %6 = tpu.matmul %5, %4, %cst_5 {dimension_numbers = #tpu.dot_dimension_numbers<[1], [0], [0], [1], [0, 0, 1, 1], [], []>} : vector<64x128xbf16>, vector<128x128xbf16>, vector<64x128xf32> -> vector<64x128xf32>
    %7 = vector.extract_strided_slice %3 {offsets = [0, 128], sizes = [64, 128], strides = [1, 1]} : vector<64x2560xbf16> to vector<64x128xbf16>
    %cst_6 = arith.constant dense<0.000000e+00> : vector<64x128xf32>
    %8 = tpu.matmul %7, %4, %cst_6 {dimension_numbers = #tpu.dot_dimension_numbers<[1], [0], [0], [1], [0, 0, 1, 1], [], []>} : vector<64x128xbf16>, vector<128x128xbf16>, vector<64x128xf32> -> vector<64x128xf32>
    %9 = vector.extract_strided_slice %3 {offsets = [0, 256], sizes = [64, 128], strides = [1, 1]} : vector<64x2560xbf16> to vector<64x128xbf16>
    %cst_7 = arith.constant dense<0.000000e+00> : vector<64x128xf32>
    %10 = tpu.matmul %9, %4, %cst_7 {dimension_numbers = #tpu.dot_dimension_numbers<[1], [0], [0], [1], [0, 0, 1, 1], [], []>} : vector<64x128xbf16>, vector<128x128xbf16>, vector<64x128xf32> -> vector<64x128xf32>
    %11 = arith.maximumf %8, %10 : vector<64x128xf32>
    %12 = vector.extract_strided_slice %3 {offsets = [0, 384], sizes = [64, 128], strides = [1, 1]} : vector<64x2560xbf16> to vector<64x128xbf16>
    %cst_8 = arith.constant dense<0.000000e+00> : vector<64x128xf32>
    %13 = tpu.matmul %12, %4, %cst_8 {dimension_numbers = #tpu.dot_dimension_numbers<[1], [0], [0], [1], [0, 0, 1, 1], [], []>} : vector<64x128xbf16>, vector<128x128xbf16>, vector<64x128xf32> -> vector<64x128xf32>
    %14 = arith.maximumf %11, %13 : vector<64x128xf32>
    %15 = arith.cmpf ogt, %14, %6 : vector<64x128xf32>
    %c0_9 = arith.constant 0 : index
    %c0_10 = arith.constant 0 : index
    %16 = vector.load %arg1[%c0_9, %c0_10] : memref<64x128xf32, #tpu.memory_space<vmem>>, vector<64x128xf32>
    %cst_11 = arith.constant 0.000000e+00 : f32
    %17 = vector.broadcast %cst_11 : f32 to vector<64x128xf32>
    %18 = arith.select %15, %16, %17 : vector<64x128xi1>, vector<64x128xf32>
    %cst_12 = arith.constant 0.000000e+00 : f32
    %19 = vector.broadcast %cst_12 : f32 to vector<64x128xf32>
    %20 = arith.cmpf ogt, %18, %19 : vector<64x128xf32>
    %21 = arith.extui %20 : vector<64x128xi1> to vector<64x128xi32>
    %22 = arith.sitofp %21 : vector<64x128xi32> to vector<64x128xf32>
    %c0_13 = arith.constant 0 : index
    %c0_14 = arith.constant 0 : index
    %23 = vector.load %arg19[%c0_13, %c0_14] : memref<64x128xf32, #tpu.memory_space<vmem>>, vector<64x128xf32>
    tpu.vector_store %arg19[%c0_13, %c0_14], %22 {strides = array<i32>} : memref<64x128xf32, #tpu.memory_space<vmem>>, vector<64x128xf32>,
    %c0_15 = arith.constant 0 : index
    %c0_16 = arith.constant 0 : index
    %24 = vector.load %arg7[%c0_15, %c0_16] : memref<64x64xbf16, #tpu.memory_space<vmem>>, vector<64x64xbf16>
    %c0_17 = arith.constant 0 : index
    %c0_18 = arith.constant 0 : index
    %25 = vector.load %arg3[%c0_17, %c0_18] : memref<64x256xbf16, #tpu.memory_space<vmem>>, vector<64x256xbf16>
    %cst_19 = arith.constant dense<0.000000e+00> : vector<64x256xf32>
    %26 = tpu.matmul %24, %25, %cst_19 {dimension_numbers = #tpu.dot_dimension_numbers<[1], [0], [0], [1], [0, 0, 1, 1], [], []>} : vector<64x64xbf16>, vector<64x256xbf16>, vector<64x256xf32> -> vector<64x256xf32>
    %27 = arith.truncf %26 : vector<64x256xf32> to vector<64x256xbf16>
    %c0_20 = arith.constant 0 : index
    %c0_21 = arith.constant 0 : index
    %28 = vector.load %arg8[%c0_20, %c0_21] : memref<128x128xbf16, #tpu.memory_space<vmem>>, vector<128x128xbf16>
    %29 = vector.extract_strided_slice %27 {offsets = [0, 0], sizes = [64, 128], strides = [1, 1]} : vector<64x256xbf16> to vector<64x128xbf16>
    %cst_22 = arith.constant dense<0.000000e+00> : vector<64x128xf32>
    %30 = tpu.matmul %29, %28, %cst_22 {dimension_numbers = #tpu.dot_dimension_numbers<[1], [0], [0], [1], [0, 0, 1, 1], [], []>} : vector<64x128xbf16>, vector<128x128xbf16>, vector<64x128xf32> -> vector<64x128xf32>
    %31 = vector.extract_strided_slice %27 {offsets = [0, 128], sizes = [64, 128], strides = [1, 1]} : vector<64x256xbf16> to vector<64x128xbf16>
    %cst_23 = arith.constant dense<0.000000e+00> : vector<64x128xf32>
    %32 = tpu.matmul %31, %28, %cst_23 {dimension_numbers = #tpu.dot_dimension_numbers<[1], [0], [0], [1], [0, 0, 1, 1], [], []>} : vector<64x128xbf16>, vector<128x128xbf16>, vector<64x128xf32> -> vector<64x128xf32>
    %cst_24 = arith.constant 0.000000e+00 : f32
    %33 = vector.broadcast %cst_24 : f32 to vector<64x128xf32>
    %cst_25 = arith.constant 0.000000e+00 : f32
    %34 = vector.broadcast %cst_25 : f32 to vector<64x128xf32>
    %cst_26 = arith.constant 1.000000e+00 : f32
    %35 = vector.broadcast %cst_26 : f32 to vector<64x128xf32>
    %36 = arith.cmpf oeq, %18, %35 : vector<64x128xf32>
    %c1 = arith.constant 1 : index
    %37 = memref.load %arg14[%c1] : memref<9xf32, #tpu.memory_space<smem>>
    %38 = vector.broadcast %37 : f32 to vector<64x128xf32>
    %39 = arith.select %36, %38, %33 : vector<64x128xi1>, vector<64x128xf32>
    %c1_27 = arith.constant 1 : index
    %40 = memref.load %arg15[%c1_27] : memref<9xf32, #tpu.memory_space<smem>>
    %41 = vector.broadcast %40 : f32 to vector<64x128xf32>
    %42 = arith.select %36, %41, %34 : vector<64x128xi1>, vector<64x128xf32>
    %cst_28 = arith.constant 2.000000e+00 : f32
    %43 = vector.broadcast %cst_28 : f32 to vector<64x128xf32>
    %44 = arith.cmpf oeq, %18, %43 : vector<64x128xf32>
    %c2 = arith.constant 2 : index
    %45 = memref.load %arg14[%c2] : memref<9xf32, #tpu.memory_space<smem>>
    %46 = vector.broadcast %45 : f32 to vector<64x128xf32>
    %47 = arith.select %44, %46, %39 : vector<64x128xi1>, vector<64x128xf32>
    %c2_29 = arith.constant 2 : index
    %48 = memref.load %arg15[%c2_29] : memref<9xf32, #tpu.memory_space<smem>>
    %49 = vector.broadcast %48 : f32 to vector<64x128xf32>
    %50 = arith.select %44, %49, %42 : vector<64x128xi1>, vector<64x128xf32>
    %cst_30 = arith.constant 3.000000e+00 : f32
    %51 = vector.broadcast %cst_30 : f32 to vector<64x128xf32>
    %52 = arith.cmpf oeq, %18, %51 : vector<64x128xf32>
    %c3 = arith.constant 3 : index
    %53 = memref.load %arg14[%c3] : memref<9xf32, #tpu.memory_space<smem>>
    %54 = vector.broadcast %53 : f32 to vector<64x128xf32>
    %55 = arith.select %52, %54, %47 : vector<64x128xi1>, vector<64x128xf32>
    %c3_31 = arith.constant 3 : index
    %56 = memref.load %arg15[%c3_31] : memref<9xf32, #tpu.memory_space<smem>>
    %57 = vector.broadcast %56 : f32 to vector<64x128xf32>
    %58 = arith.select %52, %57, %50 : vector<64x128xi1>, vector<64x128xf32>
    %cst_32 = arith.constant 4.000000e+00 : f32
    %59 = vector.broadcast %cst_32 : f32 to vector<64x128xf32>
    %60 = arith.cmpf oeq, %18, %59 : vector<64x128xf32>
    %c4 = arith.constant 4 : index
    %61 = memref.load %arg14[%c4] : memref<9xf32, #tpu.memory_space<smem>>
    %62 = vector.broadcast %61 : f32 to vector<64x128xf32>
    %63 = arith.select %60, %62, %55 : vector<64x128xi1>, vector<64x128xf32>
    %c4_33 = arith.constant 4 : index
    %64 = memref.load %arg15[%c4_33] : memref<9xf32, #tpu.memory_space<smem>>
    %65 = vector.broadcast %64 : f32 to vector<64x128xf32>
    %66 = arith.select %60, %65, %58 : vector<64x128xi1>, vector<64x128xf32>
    %cst_34 = arith.constant 5.000000e+00 : f32
    %67 = vector.broadcast %cst_34 : f32 to vector<64x128xf32>
    %68 = arith.cmpf oeq, %18, %67 : vector<64x128xf32>
    %c5 = arith.constant 5 : index
    %69 = memref.load %arg14[%c5] : memref<9xf32, #tpu.memory_space<smem>>
    %70 = vector.broadcast %69 : f32 to vector<64x128xf32>
    %71 = arith.select %68, %70, %63 : vector<64x128xi1>, vector<64x128xf32>
    %c5_35 = arith.constant 5 : index
    %72 = memref.load %arg15[%c5_35] : memref<9xf32, #tpu.memory_space<smem>>
    %73 = vector.broadcast %72 : f32 to vector<64x128xf32>
    %74 = arith.select %68, %73, %66 : vector<64x128xi1>, vector<64x128xf32>
    %cst_36 = arith.constant 6.000000e+00 : f32
    %75 = vector.broadcast %cst_36 : f32 to vector<64x128xf32>
    %76 = arith.cmpf oeq, %18, %75 : vector<64x128xf32>
    %c6 = arith.constant 6 : index
    %77 = memref.load %arg14[%c6] : memref<9xf32, #tpu.memory_space<smem>>
    %78 = vector.broadcast %77 : f32 to vector<64x128xf32>
    %79 = arith.select %76, %78, %71 : vector<64x128xi1>, vector<64x128xf32>
    %c6_37 = arith.constant 6 : index
    %80 = memref.load %arg15[%c6_37] : memref<9xf32, #tpu.memory_space<smem>>
    %81 = vector.broadcast %80 : f32 to vector<64x128xf32>
    %82 = arith.select %76, %81, %74 : vector<64x128xi1>, vector<64x128xf32>
    %cst_38 = arith.constant 7.000000e+00 : f32
    %83 = vector.broadcast %cst_38 : f32 to vector<64x128xf32>
    %84 = arith.cmpf oeq, %18, %83 : vector<64x128xf32>
    %c7 = arith.constant 7 : index
    %85 = memref.load %arg14[%c7] : memref<9xf32, #tpu.memory_space<smem>>
    %86 = vector.broadcast %85 : f32 to vector<64x128xf32>
    %87 = arith.select %84, %86, %79 : vector<64x128xi1>, vector<64x128xf32>
    %c7_39 = arith.constant 7 : index
    %88 = memref.load %arg15[%c7_39] : memref<9xf32, #tpu.memory_space<smem>>
    %89 = vector.broadcast %88 : f32 to vector<64x128xf32>
    %90 = arith.select %84, %89, %82 : vector<64x128xi1>, vector<64x128xf32>
    %cst_40 = arith.constant 8.000000e+00 : f32
    %91 = vector.broadcast %cst_40 : f32 to vector<64x128xf32>
    %92 = arith.cmpf oeq, %18, %91 : vector<64x128xf32>
    %c8 = arith.constant 8 : index
    %93 = memref.load %arg14[%c8] : memref<9xf32, #tpu.memory_space<smem>>
    %94 = vector.broadcast %93 : f32 to vector<64x128xf32>
    %95 = arith.select %92, %94, %87 : vector<64x128xi1>, vector<64x128xf32>
    %c8_41 = arith.constant 8 : index
    %96 = memref.load %arg15[%c8_41] : memref<9xf32, #tpu.memory_space<smem>>
    %97 = vector.broadcast %96 : f32 to vector<64x128xf32>
    %98 = arith.select %92, %97, %90 : vector<64x128xi1>, vector<64x128xf32>
    %99 = arith.mulf %98, %30 : vector<64x128xf32>
    %100 = arith.addf %95, %99 : vector<64x128xf32>
    %101 = vector.extract_strided_slice %3 {offsets = [0, 512], sizes = [64, 128], strides = [1, 1]} : vector<64x2560xbf16> to vector<64x128xbf16>
    %cst_42 = arith.constant dense<0.000000e+00> : vector<64x128xf32>
    %102 = tpu.matmul %101, %4, %cst_42 {dimension_numbers = #tpu.dot_dimension_numbers<[1], [0], [0], [1], [0, 0, 1, 1], [], []>} : vector<64x128xbf16>, vector<128x128xbf16>, vector<64x128xf32> -> vector<64x128xf32>
    %c0_43 = arith.constant 0 : index
    %103 = memref.load %arg16[%c0_43] : memref<16xf32, #tpu.memory_space<smem>>
    %104 = vector.broadcast %103 : f32 to vector<64x128xf32>
    %c0_44 = arith.constant 0 : index
    %105 = memref.load %arg17[%c0_44] : memref<16xf32, #tpu.memory_space<smem>>
    %106 = vector.broadcast %105 : f32 to vector<64x128xf32>
    %107 = vector.extract_strided_slice %3 {offsets = [0, 640], sizes = [64, 128], strides = [1, 1]} : vector<64x2560xbf16> to vector<64x128xbf16>
    %cst_45 = arith.constant dense<0.000000e+00> : vector<64x128xf32>
    %108 = tpu.matmul %107, %4, %cst_45 {dimension_numbers = #tpu.dot_dimension_numbers<[1], [0], [0], [1], [0, 0, 1, 1], [], []>} : vector<64x128xbf16>, vector<128x128xbf16>, vector<64x128xf32> -> vector<64x128xf32>
    %109 = arith.cmpf ogt, %108, %102 : vector<64x128xf32>
    %c1_46 = arith.constant 1 : index
    %110 = memref.load %arg16[%c1_46] : memref<16xf32, #tpu.memory_space<smem>>
    %111 = vector.broadcast %110 : f32 to vector<64x128xf32>
    %112 = arith.select %109, %111, %104 : vector<64x128xi1>, vector<64x128xf32>
    %c1_47 = arith.constant 1 : index
    %113 = memref.load %arg17[%c1_47] : memref<16xf32, #tpu.memory_space<smem>>
    %114 = vector.broadcast %113 : f32 to vector<64x128xf32>
    %115 = arith.select %109, %114, %106 : vector<64x128xi1>, vector<64x128xf32>
    %116 = arith.maximumf %102, %108 : vector<64x128xf32>
    %117 = vector.extract_strided_slice %3 {offsets = [0, 768], sizes = [64, 128], strides = [1, 1]} : vector<64x2560xbf16> to vector<64x128xbf16>
    %cst_48 = arith.constant dense<0.000000e+00> : vector<64x128xf32>
    %118 = tpu.matmul %117, %4, %cst_48 {dimension_numbers = #tpu.dot_dimension_numbers<[1], [0], [0], [1], [0, 0, 1, 1], [], []>} : vector<64x128xbf16>, vector<128x128xbf16>, vector<64x128xf32> -> vector<64x128xf32>
    %119 = arith.cmpf ogt, %118, %116 : vector<64x128xf32>
    %c2_49 = arith.constant 2 : index
    %120 = memref.load %arg16[%c2_49] : memref<16xf32, #tpu.memory_space<smem>>
    %121 = vector.broadcast %120 : f32 to vector<64x128xf32>
    %122 = arith.select %119, %121, %112 : vector<64x128xi1>, vector<64x128xf32>
    %c2_50 = arith.constant 2 : index
    %123 = memref.load %arg17[%c2_50] : memref<16xf32, #tpu.memory_space<smem>>
    %124 = vector.broadcast %123 : f32 to vector<64x128xf32>
    %125 = arith.select %119, %124, %115 : vector<64x128xi1>, vector<64x128xf32>
    %126 = arith.maximumf %116, %118 : vector<64x128xf32>
    %127 = vector.extract_strided_slice %3 {offsets = [0, 896], sizes = [64, 128], strides = [1, 1]} : vector<64x2560xbf16> to vector<64x128xbf16>
    %cst_51 = arith.constant dense<0.000000e+00> : vector<64x128xf32>
    %128 = tpu.matmul %127, %4, %cst_51 {dimension_numbers = #tpu.dot_dimension_numbers<[1], [0], [0], [1], [0, 0, 1, 1], [], []>} : vector<64x128xbf16>, vector<128x128xbf16>, vector<64x128xf32> -> vector<64x128xf32>
    %129 = arith.cmpf ogt, %128, %126 : vector<64x128xf32>
    %c3_52 = arith.constant 3 : index
    %130 = memref.load %arg16[%c3_52] : memref<16xf32, #tpu.memory_space<smem>>
    %131 = vector.broadcast %130 : f32 to vector<64x128xf32>
    %132 = arith.select %129, %131, %122 : vector<64x128xi1>, vector<64x128xf32>
    %c3_53 = arith.constant 3 : index
    %133 = memref.load %arg17[%c3_53] : memref<16xf32, #tpu.memory_space<smem>>
    %134 = vector.broadcast %133 : f32 to vector<64x128xf32>
    %135 = arith.select %129, %134, %125 : vector<64x128xi1>, vector<64x128xf32>
    %136 = arith.maximumf %126, %128 : vector<64x128xf32>
    %137 = vector.extract_strided_slice %3 {offsets = [0, 1024], sizes = [64, 128], strides = [1, 1]} : vector<64x2560xbf16> to vector<64x128xbf16>
    %cst_54 = arith.constant dense<0.000000e+00> : vector<64x128xf32>
    %138 = tpu.matmul %137, %4, %cst_54 {dimension_numbers = #tpu.dot_dimension_numbers<[1], [0], [0], [1], [0, 0, 1, 1], [], []>} : vector<64x128xbf16>, vector<128x128xbf16>, vector<64x128xf32> -> vector<64x128xf32>
    %139 = arith.cmpf ogt, %138, %136 : vector<64x128xf32>
    %c4_55 = arith.constant 4 : index
    %140 = memref.load %arg16[%c4_55] : memref<16xf32, #tpu.memory_space<smem>>
    %141 = vector.broadcast %140 : f32 to vector<64x128xf32>
    %142 = arith.select %139, %141, %132 : vector<64x128xi1>, vector<64x128xf32>
    %c4_56 = arith.constant 4 : index
    %143 = memref.load %arg17[%c4_56] : memref<16xf32, #tpu.memory_space<smem>>
    %144 = vector.broadcast %143 : f32 to vector<64x128xf32>
    %145 = arith.select %139, %144, %135 : vector<64x128xi1>, vector<64x128xf32>
    %146 = arith.maximumf %136, %138 : vector<64x128xf32>
    %147 = vector.extract_strided_slice %3 {offsets = [0, 1152], sizes = [64, 128], strides = [1, 1]} : vector<64x2560xbf16> to vector<64x128xbf16>
    %cst_57 = arith.constant dense<0.000000e+00> : vector<64x128xf32>
    %148 = tpu.matmul %147, %4, %cst_57 {dimension_numbers = #tpu.dot_dimension_numbers<[1], [0], [0], [1], [0, 0, 1, 1], [], []>} : vector<64x128xbf16>, vector<128x128xbf16>, vector<64x128xf32> -> vector<64x128xf32>
    %149 = arith.cmpf ogt, %148, %146 : vector<64x128xf32>
    %c5_58 = arith.constant 5 : index
    %150 = memref.load %arg16[%c5_58] : memref<16xf32, #tpu.memory_space<smem>>
    %151 = vector.broadcast %150 : f32 to vector<64x128xf32>
    %152 = arith.select %149, %151, %142 : vector<64x128xi1>, vector<64x128xf32>
    %c5_59 = arith.constant 5 : index
    %153 = memref.load %arg17[%c5_59] : memref<16xf32, #tpu.memory_space<smem>>
    %154 = vector.broadcast %153 : f32 to vector<64x128xf32>
    %155 = arith.select %149, %154, %145 : vector<64x128xi1>, vector<64x128xf32>
    %156 = arith.maximumf %146, %148 : vector<64x128xf32>
    %157 = vector.extract_strided_slice %3 {offsets = [0, 1280], sizes = [64, 128], strides = [1, 1]} : vector<64x2560xbf16> to vector<64x128xbf16>
    %cst_60 = arith.constant dense<0.000000e+00> : vector<64x128xf32>
    %158 = tpu.matmul %157, %4, %cst_60 {dimension_numbers = #tpu.dot_dimension_numbers<[1], [0], [0], [1], [0, 0, 1, 1], [], []>} : vector<64x128xbf16>, vector<128x128xbf16>, vector<64x128xf32> -> vector<64x128xf32>
    %159 = arith.cmpf ogt, %158, %156 : vector<64x128xf32>
    %c6_61 = arith.constant 6 : index
    %160 = memref.load %arg16[%c6_61] : memref<16xf32, #tpu.memory_space<smem>>
    %161 = vector.broadcast %160 : f32 to vector<64x128xf32>
    %162 = arith.select %159, %161, %152 : vector<64x128xi1>, vector<64x128xf32>
    %c6_62 = arith.constant 6 : index
    %163 = memref.load %arg17[%c6_62] : memref<16xf32, #tpu.memory_space<smem>>
    %164 = vector.broadcast %163 : f32 to vector<64x128xf32>
    %165 = arith.select %159, %164, %155 : vector<64x128xi1>, vector<64x128xf32>
    %166 = arith.maximumf %156, %158 : vector<64x128xf32>
    %167 = vector.extract_strided_slice %3 {offsets = [0, 1408], sizes = [64, 128], strides = [1, 1]} : vector<64x2560xbf16> to vector<64x128xbf16>
    %cst_63 = arith.constant dense<0.000000e+00> : vector<64x128xf32>
    %168 = tpu.matmul %167, %4, %cst_63 {dimension_numbers = #tpu.dot_dimension_numbers<[1], [0], [0], [1], [0, 0, 1, 1], [], []>} : vector<64x128xbf16>, vector<128x128xbf16>, vector<64x128xf32> -> vector<64x128xf32>
    %169 = arith.cmpf ogt, %168, %166 : vector<64x128xf32>
    %c7_64 = arith.constant 7 : index
    %170 = memref.load %arg16[%c7_64] : memref<16xf32, #tpu.memory_space<smem>>
    %171 = vector.broadcast %170 : f32 to vector<64x128xf32>
    %172 = arith.select %169, %171, %162 : vector<64x128xi1>, vector<64x128xf32>
    %c7_65 = arith.constant 7 : index
    %173 = memref.load %arg17[%c7_65] : memref<16xf32, #tpu.memory_space<smem>>
    %174 = vector.broadcast %173 : f32 to vector<64x128xf32>
    %175 = arith.select %169, %174, %165 : vector<64x128xi1>, vector<64x128xf32>
    %176 = arith.maximumf %166, %168 : vector<64x128xf32>
    %177 = vector.extract_strided_slice %3 {offsets = [0, 1536], sizes = [64, 128], strides = [1, 1]} : vector<64x2560xbf16> to vector<64x128xbf16>
    %cst_66 = arith.constant dense<0.000000e+00> : vector<64x128xf32>
    %178 = tpu.matmul %177, %4, %cst_66 {dimension_numbers = #tpu.dot_dimension_numbers<[1], [0], [0], [1], [0, 0, 1, 1], [], []>} : vector<64x128xbf16>, vector<128x128xbf16>, vector<64x128xf32> -> vector<64x128xf32>
    %179 = arith.cmpf ogt, %178, %176 : vector<64x128xf32>
    %c8_67 = arith.constant 8 : index
    %180 = memref.load %arg16[%c8_67] : memref<16xf32, #tpu.memory_space<smem>>
    %181 = vector.broadcast %180 : f32 to vector<64x128xf32>
    %182 = arith.select %179, %181, %172 : vector<64x128xi1>, vector<64x128xf32>
    %c8_68 = arith.constant 8 : index
    %183 = memref.load %arg17[%c8_68] : memref<16xf32, #tpu.memory_space<smem>>
    %184 = vector.broadcast %183 : f32 to vector<64x128xf32>
    %185 = arith.select %179, %184, %175 : vector<64x128xi1>, vector<64x128xf32>
    %186 = arith.maximumf %176, %178 : vector<64x128xf32>
    %187 = vector.extract_strided_slice %3 {offsets = [0, 1664], sizes = [64, 128], strides = [1, 1]} : vector<64x2560xbf16> to vector<64x128xbf16>
    %cst_69 = arith.constant dense<0.000000e+00> : vector<64x128xf32>
    %188 = tpu.matmul %187, %4, %cst_69 {dimension_numbers = #tpu.dot_dimension_numbers<[1], [0], [0], [1], [0, 0, 1, 1], [], []>} : vector<64x128xbf16>, vector<128x128xbf16>, vector<64x128xf32> -> vector<64x128xf32>
    %189 = arith.cmpf ogt, %188, %186 : vector<64x128xf32>
    %c9 = arith.constant 9 : index
    %190 = memref.load %arg16[%c9] : memref<16xf32, #tpu.memory_space<smem>>
    %191 = vector.broadcast %190 : f32 to vector<64x128xf32>
    %192 = arith.select %189, %191, %182 : vector<64x128xi1>, vector<64x128xf32>
    %c9_70 = arith.constant 9 : index
    %193 = memref.load %arg17[%c9_70] : memref<16xf32, #tpu.memory_space<smem>>
    %194 = vector.broadcast %193 : f32 to vector<64x128xf32>
    %195 = arith.select %189, %194, %185 : vector<64x128xi1>, vector<64x128xf32>
    %196 = arith.maximumf %186, %188 : vector<64x128xf32>
    %197 = vector.extract_strided_slice %3 {offsets = [0, 1792], sizes = [64, 128], strides = [1, 1]} : vector<64x2560xbf16> to vector<64x128xbf16>
    %cst_71 = arith.constant dense<0.000000e+00> : vector<64x128xf32>
    %198 = tpu.matmul %197, %4, %cst_71 {dimension_numbers = #tpu.dot_dimension_numbers<[1], [0], [0], [1], [0, 0, 1, 1], [], []>} : vector<64x128xbf16>, vector<128x128xbf16>, vector<64x128xf32> -> vector<64x128xf32>
    %199 = arith.cmpf ogt, %198, %196 : vector<64x128xf32>
    %c10 = arith.constant 10 : index
    %200 = memref.load %arg16[%c10] : memref<16xf32, #tpu.memory_space<smem>>
    %201 = vector.broadcast %200 : f32 to vector<64x128xf32>
    %202 = arith.select %199, %201, %192 : vector<64x128xi1>, vector<64x128xf32>
    %c10_72 = arith.constant 10 : index
    %203 = memref.load %arg17[%c10_72] : memref<16xf32, #tpu.memory_space<smem>>
    %204 = vector.broadcast %203 : f32 to vector<64x128xf32>
    %205 = arith.select %199, %204, %195 : vector<64x128xi1>, vector<64x128xf32>
    %206 = arith.maximumf %196, %198 : vector<64x128xf32>
    %207 = vector.extract_strided_slice %3 {offsets = [0, 1920], sizes = [64, 128], strides = [1, 1]} : vector<64x2560xbf16> to vector<64x128xbf16>
    %cst_73 = arith.constant dense<0.000000e+00> : vector<64x128xf32>
    %208 = tpu.matmul %207, %4, %cst_73 {dimension_numbers = #tpu.dot_dimension_numbers<[1], [0], [0], [1], [0, 0, 1, 1], [], []>} : vector<64x128xbf16>, vector<128x128xbf16>, vector<64x128xf32> -> vector<64x128xf32>
    %209 = arith.cmpf ogt, %208, %206 : vector<64x128xf32>
    %c11 = arith.constant 11 : index
    %210 = memref.load %arg16[%c11] : memref<16xf32, #tpu.memory_space<smem>>
    %211 = vector.broadcast %210 : f32 to vector<64x128xf32>
    %212 = arith.select %209, %211, %202 : vector<64x128xi1>, vector<64x128xf32>
    %c11_74 = arith.constant 11 : index
    %213 = memref.load %arg17[%c11_74] : memref<16xf32, #tpu.memory_space<smem>>
    %214 = vector.broadcast %213 : f32 to vector<64x128xf32>
    %215 = arith.select %209, %214, %205 : vector<64x128xi1>, vector<64x128xf32>
    %216 = arith.maximumf %206, %208 : vector<64x128xf32>
    %217 = vector.extract_strided_slice %3 {offsets = [0, 2048], sizes = [64, 128], strides = [1, 1]} : vector<64x2560xbf16> to vector<64x128xbf16>
    %cst_75 = arith.constant dense<0.000000e+00> : vector<64x128xf32>
    %218 = tpu.matmul %217, %4, %cst_75 {dimension_numbers = #tpu.dot_dimension_numbers<[1], [0], [0], [1], [0, 0, 1, 1], [], []>} : vector<64x128xbf16>, vector<128x128xbf16>, vector<64x128xf32> -> vector<64x128xf32>
    %219 = arith.cmpf ogt, %218, %216 : vector<64x128xf32>
    %c12 = arith.constant 12 : index
    %220 = memref.load %arg16[%c12] : memref<16xf32, #tpu.memory_space<smem>>
    %221 = vector.broadcast %220 : f32 to vector<64x128xf32>
    %222 = arith.select %219, %221, %212 : vector<64x128xi1>, vector<64x128xf32>
    %c12_76 = arith.constant 12 : index
    %223 = memref.load %arg17[%c12_76] : memref<16xf32, #tpu.memory_space<smem>>
    %224 = vector.broadcast %223 : f32 to vector<64x128xf32>
    %225 = arith.select %219, %224, %215 : vector<64x128xi1>, vector<64x128xf32>
    %226 = arith.maximumf %216, %218 : vector<64x128xf32>
    %227 = vector.extract_strided_slice %3 {offsets = [0, 2176], sizes = [64, 128], strides = [1, 1]} : vector<64x2560xbf16> to vector<64x128xbf16>
    %cst_77 = arith.constant dense<0.000000e+00> : vector<64x128xf32>
    %228 = tpu.matmul %227, %4, %cst_77 {dimension_numbers = #tpu.dot_dimension_numbers<[1], [0], [0], [1], [0, 0, 1, 1], [], []>} : vector<64x128xbf16>, vector<128x128xbf16>, vector<64x128xf32> -> vector<64x128xf32>
    %229 = arith.cmpf ogt, %228, %226 : vector<64x128xf32>
    %c13 = arith.constant 13 : index
    %230 = memref.load %arg16[%c13] : memref<16xf32, #tpu.memory_space<smem>>
    %231 = vector.broadcast %230 : f32 to vector<64x128xf32>
    %232 = arith.select %229, %231, %222 : vector<64x128xi1>, vector<64x128xf32>
    %c13_78 = arith.constant 13 : index
    %233 = memref.load %arg17[%c13_78] : memref<16xf32, #tpu.memory_space<smem>>
    %234 = vector.broadcast %233 : f32 to vector<64x128xf32>
    %235 = arith.select %229, %234, %225 : vector<64x128xi1>, vector<64x128xf32>
    %236 = arith.maximumf %226, %228 : vector<64x128xf32>
    %237 = vector.extract_strided_slice %3 {offsets = [0, 2304], sizes = [64, 128], strides = [1, 1]} : vector<64x2560xbf16> to vector<64x128xbf16>
    %cst_79 = arith.constant dense<0.000000e+00> : vector<64x128xf32>
    %238 = tpu.matmul %237, %4, %cst_79 {dimension_numbers = #tpu.dot_dimension_numbers<[1], [0], [0], [1], [0, 0, 1, 1], [], []>} : vector<64x128xbf16>, vector<128x128xbf16>, vector<64x128xf32> -> vector<64x128xf32>
    %239 = arith.cmpf ogt, %238, %236 : vector<64x128xf32>
    %c14 = arith.constant 14 : index
    %240 = memref.load %arg16[%c14] : memref<16xf32, #tpu.memory_space<smem>>
    %241 = vector.broadcast %240 : f32 to vector<64x128xf32>
    %242 = arith.select %239, %241, %232 : vector<64x128xi1>, vector<64x128xf32>
    %c14_80 = arith.constant 14 : index
    %243 = memref.load %arg17[%c14_80] : memref<16xf32, #tpu.memory_space<smem>>
    %244 = vector.broadcast %243 : f32 to vector<64x128xf32>
    %245 = arith.select %239, %244, %235 : vector<64x128xi1>, vector<64x128xf32>
    %246 = arith.maximumf %236, %238 : vector<64x128xf32>
    %247 = vector.extract_strided_slice %3 {offsets = [0, 2432], sizes = [64, 128], strides = [1, 1]} : vector<64x2560xbf16> to vector<64x128xbf16>
    %cst_81 = arith.constant dense<0.000000e+00> : vector<64x128xf32>
    %248 = tpu.matmul %247, %4, %cst_81 {dimension_numbers = #tpu.dot_dimension_numbers<[1], [0], [0], [1], [0, 0, 1, 1], [], []>} : vector<64x128xbf16>, vector<128x128xbf16>, vector<64x128xf32> -> vector<64x128xf32>
    %249 = arith.cmpf ogt, %248, %246 : vector<64x128xf32>
    %c15 = arith.constant 15 : index
    %250 = memref.load %arg16[%c15] : memref<16xf32, #tpu.memory_space<smem>>
    %251 = vector.broadcast %250 : f32 to vector<64x128xf32>
    %252 = arith.select %249, %251, %242 : vector<64x128xi1>, vector<64x128xf32>
    %c15_82 = arith.constant 15 : index
    %253 = memref.load %arg17[%c15_82] : memref<16xf32, #tpu.memory_space<smem>>
    %254 = vector.broadcast %253 : f32 to vector<64x128xf32>
    %255 = arith.select %249, %254, %245 : vector<64x128xi1>, vector<64x128xf32>
    %256 = arith.mulf %255, %32 : vector<64x128xf32>
    %257 = arith.addf %252, %256 : vector<64x128xf32>
    %cst_83 = arith.constant 1.000000e+00 : f32
    %258 = vector.broadcast %cst_83 : f32 to vector<64x128xf32>
    %259 = arith.subf %258, %22 : vector<64x128xf32>
    %260 = arith.mulf %259, %257 : vector<64x128xf32>
    %261 = arith.addf %100, %260 : vector<64x128xf32>
    %262 = vector.shape_cast %261 : vector<64x128xf32> to vector<1x64x128xf32>
    %cst_84 = arith.constant dense<0x7F800000> : vector<1xf32>
    %263 = vector.multi_reduction <minimumf>, %262, %cst_84 [1, 2] : vector<1x64x128xf32> to vector<1xf32>
    %264 = vector.shape_cast %263 : vector<1xf32> to vector<1x1x1xf32>
    %265 = vector.extract %264[0, 0, 0] : f32 from vector<1x1x1xf32>
    %266 = vector.shape_cast %261 : vector<64x128xf32> to vector<1x64x128xf32>
    %cst_85 = arith.constant dense<0xFF800000> : vector<1xf32>
    %267 = vector.multi_reduction <maximumf>, %266, %cst_85 [1, 2] : vector<1x64x128xf32> to vector<1xf32>
    %268 = vector.shape_cast %267 : vector<1xf32> to vector<1x1x1xf32>
    %269 = vector.extract %268[0, 0, 0] : f32 from vector<1x1x1xf32>
    %270 = arith.subf %269, %265 : f32
    %cst_86 = arith.constant 9.99999993E-9 : f32
    %271 = arith.addf %270, %cst_86 : f32
    %272 = vector.broadcast %265 : f32 to vector<64x128xf32>
    %273 = arith.subf %261, %272 : vector<64x128xf32>
    %cst_87 = arith.constant 1.000000e+00 : f32
    %274 = arith.divf %cst_87, %271 : f32
    %275 = vector.broadcast %274 : f32 to vector<64x128xf32>
    %276 = arith.mulf %273, %275 : vector<64x128xf32>
    %c0_88 = arith.constant 0 : index
    %277 = memref.load %arg13[%c0_88] : memref<1xf32, #tpu.memory_space<smem>>
    %cst_89 = arith.constant 9.99999993E-9 : f32
    %278 = vector.broadcast %cst_89 : f32 to vector<64x128xf32>
    %279 = arith.maximumf %276, %278 : vector<64x128xf32>
    %280 = math.log %279 : vector<64x128xf32>
    %281 = vector.broadcast %277 : f32 to vector<64x128xf32>
    %282 = arith.mulf %281, %280 : vector<64x128xf32>
    %283 = math.exp %282 : vector<64x128xf32>
    %284 = vector.broadcast %271 : f32 to vector<64x128xf32>
    %285 = arith.mulf %283, %284 : vector<64x128xf32>
    %286 = vector.broadcast %265 : f32 to vector<64x128xf32>
    %287 = arith.addf %285, %286 : vector<64x128xf32>
    %288 = arith.truncf %287 : vector<64x128xf32> to vector<64x128xbf16>
    %c0_90 = arith.constant 0 : index
    %c0_91 = arith.constant 0 : index
    %289 = vector.load %arg10[%c0_90, %c0_91] : memref<128x128xbf16, #tpu.memory_space<vmem>>, vector<128x128xbf16>
    %cst_92 = arith.constant dense<0.000000e+00> : vector<64x128xf32>
    %290 = tpu.matmul %288, %289, %cst_92 {dimension_numbers = #tpu.dot_dimension_numbers<[1], [0], [0], [1], [0, 0, 1, 1], [], []>} : vector<64x128xbf16>, vector<128x128xbf16>, vector<64x128xf32> -> vector<64x128xf32>
    %c0_93 = arith.constant 0 : index
    %c0_94 = arith.constant 0 : index
    %291 = vector.load %arg9[%c0_93, %c0_94] : memref<64x64xbf16, #tpu.memory_space<vmem>>, vector<64x64xbf16>
    %292 = arith.truncf %290 : vector<64x128xf32> to vector<64x128xbf16>
    %cst_95 = arith.constant dense<0.000000e+00> : vector<64x128xf32>
    %293 = tpu.matmul %291, %292, %cst_95 {dimension_numbers = #tpu.dot_dimension_numbers<[1], [0], [0], [1], [0, 0, 1, 1], [], []>} : vector<64x64xbf16>, vector<64x128xbf16>, vector<64x128xf32> -> vector<64x128xf32>
    %c0_96 = arith.constant 0 : index
    %c0_97 = arith.constant 0 : index
    %294 = vector.load %arg12[%c0_96, %c0_97] : memref<1x128xf32, #tpu.memory_space<vmem>>, vector<1x128xf32>
    %295 = vector.broadcast %294 : vector<1x128xf32> to vector<64x128xf32>
    %296 = arith.mulf %293, %295 : vector<64x128xf32>
    %c0_98 = arith.constant 0 : index
    %c0_99 = arith.constant 0 : index
    %297 = vector.load %arg4[%c0_98, %c0_99] : memref<64x128xf32, #tpu.memory_space<vmem>>, vector<64x128xf32>
    %298 = arith.mulf %296, %297 : vector<64x128xf32>
    %299 = arith.truncf %298 : vector<64x128xf32> to vector<64x128xbf16>
    %c0_100 = arith.constant 0 : index
    %c0_101 = arith.constant 0 : index
    %300 = vector.load %arg11[%c0_100, %c0_101] : memref<128x128xbf16, #tpu.memory_space<vmem>>, vector<128x128xbf16>
    %cst_102 = arith.constant dense<0.000000e+00> : vector<64x128xf32>
    %301 = tpu.matmul %299, %300, %cst_102 {dimension_numbers = #tpu.dot_dimension_numbers<[1], [0], [0], [1], [0, 0, 1, 1], [], []>} : vector<64x128xbf16>, vector<128x128xbf16>, vector<64x128xf32> -> vector<64x128xf32>
    %302 = vector.shape_cast %301 : vector<64x128xf32> to vector<1x64x128xf32>
    %cst_103 = arith.constant dense<0x7F800000> : vector<1xf32>
    %303 = vector.multi_reduction <minimumf>, %302, %cst_103 [1, 2] : vector<1x64x128xf32> to vector<1xf32>
    %304 = vector.shape_cast %303 : vector<1xf32> to vector<1x1x1xf32>
    %305 = vector.extract %304[0, 0, 0] : f32 from vector<1x1x1xf32>
    %306 = vector.shape_cast %301 : vector<64x128xf32> to vector<1x64x128xf32>
    %cst_104 = arith.constant dense<0xFF800000> : vector<1xf32>
    %307 = vector.multi_reduction <maximumf>, %306, %cst_104 [1, 2] : vector<1x64x128xf32> to vector<1xf32>
    %308 = vector.shape_cast %307 : vector<1xf32> to vector<1x1x1xf32>
    %309 = vector.extract %308[0, 0, 0] : f32 from vector<1x1x1xf32>
    %310 = vector.broadcast %305 : f32 to vector<64x128xf32>
    %311 = arith.subf %301, %310 : vector<64x128xf32>
    %312 = arith.subf %309, %305 : f32
    %cst_105 = arith.constant 9.99999993E-9 : f32
    %313 = arith.addf %312, %cst_105 : f32
    %cst_106 = arith.constant 1.000000e+00 : f32
    %314 = arith.divf %cst_106, %313 : f32
    %315 = vector.broadcast %314 : f32 to vector<64x128xf32>
    %316 = arith.mulf %311, %315 : vector<64x128xf32>
    %c0_107 = arith.constant 0 : index
    %c0_108 = arith.constant 0 : index
    %317 = vector.load %arg18[%c0_107, %c0_108] : memref<64x128xf32, #tpu.memory_space<vmem>>, vector<64x128xf32>
    tpu.vector_store %arg18[%c0_107, %c0_108], %316 {strides = array<i32>} : memref<64x128xf32, #tpu.memory_space<vmem>>, vector<64x128xf32>,
    return
  }
  func.func @transform_0(%arg0: i32) -> (i32, i32) {
    %c0_i32 = arith.constant 0 : i32
    %c0_i32_0 = arith.constant 0 : i32
    %c0_i32_1 = arith.constant 0 : i32
    return %c0_i32, %c0_i32_0 : i32, i32
  }
  func.func @transform_1(%arg0: i32) -> (i32, i32) {
    %c0_i32 = arith.constant 0 : i32
    %c0_i32_0 = arith.constant 0 : i32
    %c0_i32_1 = arith.constant 0 : i32
    return %c0_i32, %c0_i32_0 : i32, i32
  }
  func.func @transform_2(%arg0: i32) -> (i32, i32) {
    %c0_i32 = arith.constant 0 : i32
    %c0_i32_0 = arith.constant 0 : i32
    %c0_i32_1 = arith.constant 0 : i32
    return %c0_i32, %c0_i32_0 : i32, i32
  }
  func.func @transform_3(%arg0: i32) -> (i32, i32) {
    %c0_i32 = arith.constant 0 : i32
    %c0_i32_0 = arith.constant 0 : i32
    %c0_i32_1 = arith.constant 0 : i32
    return %c0_i32, %c0_i32_0 : i32, i32
  }
  func.func @transform_4(%arg0: i32) -> (i32, i32) {
    %c0_i32 = arith.constant 0 : i32
    %c0_i32_0 = arith.constant 0 : i32
    %c0_i32_1 = arith.constant 0 : i32
    return %c0_i32, %c0_i32_0 : i32, i32
  }
  func.func @transform_5(%arg0: i32) -> (i32, i32) {
    %c0_i32 = arith.constant 0 : i32
    %c0_i32_0 = arith.constant 0 : i32
    %c0_i32_1 = arith.constant 0 : i32
    return %c0_i32, %c0_i32_0 : i32, i32
  }
  func.func @transform_6(%arg0: i32) -> (i32, i32) {
    %c0_i32 = arith.constant 0 : i32
    %c0_i32_0 = arith.constant 0 : i32
    %c0_i32_1 = arith.constant 0 : i32
    return %c0_i32, %c0_i32_0 : i32, i32
  }
  func.func @transform_7(%arg0: i32) -> (i32, i32) {
    %c0_i32 = arith.constant 0 : i32
    %c0_i32_0 = arith.constant 0 : i32
    %c0_i32_1 = arith.constant 0 : i32
    return %c0_i32, %c0_i32_0 : i32, i32
  }
  func.func @transform_8(%arg0: i32) -> (i32, i32) {
    %c0_i32 = arith.constant 0 : i32
    %c0_i32_0 = arith.constant 0 : i32
    %c0_i32_1 = arith.constant 0 : i32
    return %c0_i32, %c0_i32_0 : i32, i32
  }
  func.func @transform_9(%arg0: i32) -> (i32, i32) {
    %c0_i32 = arith.constant 0 : i32
    %c0_i32_0 = arith.constant 0 : i32
    %c0_i32_1 = arith.constant 0 : i32
    return %c0_i32, %c0_i32_0 : i32, i32
  }
  func.func @transform_10(%arg0: i32) -> (i32, i32) {
    %c0_i32 = arith.constant 0 : i32
    %c0_i32_0 = arith.constant 0 : i32
    %c0_i32_1 = arith.constant 0 : i32
    return %c0_i32, %c0_i32_0 : i32, i32
  }
  func.func @transform_11(%arg0: i32) -> (i32, i32) {
    %c0_i32 = arith.constant 0 : i32
    %c0_i32_0 = arith.constant 0 : i32
    %c0_i32_1 = arith.constant 0 : i32
    return %c0_i32, %c0_i32_0 : i32, i32
  }
  func.func @transform_12(%arg0: i32) -> i32 {
    %c0_i32 = arith.constant 0 : i32
    %c0_i32_0 = arith.constant 0 : i32
    return %c0_i32 : i32
  }
  func.func @transform_13(%arg0: i32) -> i32 {
    %c0_i32 = arith.constant 0 : i32
    %c0_i32_0 = arith.constant 0 : i32
    return %c0_i32 : i32
  }
  func.func @transform_14(%arg0: i32) -> i32 {
    %c0_i32 = arith.constant 0 : i32
    %c0_i32_0 = arith.constant 0 : i32
    return %c0_i32 : i32
  }
  func.func @transform_15(%arg0: i32) -> i32 {
    %c0_i32 = arith.constant 0 : i32
    %c0_i32_0 = arith.constant 0 : i32
    return %c0_i32 : i32
  }
  func.func @transform_16(%arg0: i32) -> i32 {
    %c0_i32 = arith.constant 0 : i32
    %c0_i32_0 = arith.constant 0 : i32
    return %c0_i32 : i32
  }
  func.func @transform_17(%arg0: i32) -> (i32, i32) {
    %c0_i32 = arith.constant 0 : i32
    %c0_i32_0 = arith.constant 0 : i32
    %c0_i32_1 = arith.constant 0 : i32
    return %c0_i32, %c0_i32_0 : i32, i32
  }
  func.func @transform_18(%arg0: i32) -> (i32, i32) {
    %c0_i32 = arith.constant 0 : i32
    %c0_i32_0 = arith.constant 0 : i32
    %c0_i32_1 = arith.constant 0 : i32
    return %c0_i32, %c0_i32_0 : i32, i32
  }
}

</mosaic_0001>

<llo_original>
// kernel: synth_vessel_photo_image.3
$region0: #{synth_vessel_photo_image.3}
  #allocation0 [shape = 'u32[]', space=smem, size = 0x4, offset = 0x4, fixed_abs, tag = 'smem constant byte address 0x4 - core index']
  #allocation1 [shape = 'u32[72,128]{1,0:T(1,128)}', space=vmem, size = 0x9000, scoped, tag = 'internal scratch']
  #allocation2 [shape = 'f32[1]{0:T(128)S(6)}', space=smem, size = 0x200, scoped, tag = 'scoped memory for synth_vessel_photo_image.3']
  %s0 = inlined_call_operand.vmem [shape: f32[64,128], index: 0, kind: input, shape index: {}]
  %s1 = inlined_call_operand.vmem [shape: bf16[64,2560], index: 1, kind: input, shape index: {}]
  %s2 = inlined_call_operand.vmem [shape: bf16[64,256], index: 2, kind: input, shape index: {}]
  %s3 = inlined_call_operand.vmem [shape: f32[64,128], index: 3, kind: input, shape index: {}]
  %s4 = inlined_call_operand.vmem [shape: bf16[64,64], index: 4, kind: input, shape index: {}]
  %s5 = inlined_call_operand.vmem [shape: bf16[128,128], index: 5, kind: input, shape index: {}]
  %s6 = inlined_call_operand.vmem [shape: bf16[64,64], index: 6, kind: input, shape index: {}]
  %s7 = inlined_call_operand.vmem [shape: bf16[128,128], index: 7, kind: input, shape index: {}]
  %s8 = inlined_call_operand.vmem [shape: bf16[64,64], index: 8, kind: input, shape index: {}]
  %s9 = inlined_call_operand.vmem [shape: bf16[128,128], index: 9, kind: input, shape index: {}]
  %s10 = inlined_call_operand.vmem [shape: bf16[128,128], index: 10, kind: input, shape index: {}]
  %s11 = inlined_call_operand.vmem [shape: f32[1,128], index: 11, kind: input, shape index: {}]
  %s12 = inlined_call_operand.<no memory space> [shape: f32[1], index: 12, kind: input, shape index: {}]
  %s13 = inlined_call_operand.vmem [shape: f32[9], index: 13, kind: input, shape index: {}]
  %s14 = inlined_call_operand.vmem [shape: f32[9], index: 14, kind: input, shape index: {}]
  %s15 = inlined_call_operand.vmem [shape: f32[16], index: 15, kind: input, shape index: {}]
  %s16 = inlined_call_operand.vmem [shape: f32[16], index: 16, kind: input, shape index: {}]
  %s17 = inlined_call_operand.hbm [shape: f32[64,128], index: 17, kind: output, shape index: {0}]
  %s18 = inlined_call_operand.hbm [shape: f32[64,128], index: 18, kind: output, shape index: {1}]
  %19 = xla_tuple %s17, %s18
  %s20 = sld [smem:[#allocation0]]
  $region102: #{synth_vessel_photo_image.3} parent=0
    _
  %s22 = ssub.s32 1, %s20
  %s23 = scalar_select 0, %s22, %s20
  %24 = sst [smem:[#allocation2]] %s12
  $region1: #{synth_vessel_photo_image.3} parent=0
    #allocation3 [shape = 'u8[512]{0}', space=smem, size = 0x200, scoped, tag = 'input window, operand 13, single buffered']
    #allocation4 [shape = 's32[1]{0}', space=sflag, size = 0x4, scoped, tag = 'scoped memory for synth_vessel_photo_image.3']
    #allocation5 [shape = 's32[1]{0}', space=sflag, size = 0x4, scoped, tag = 'scoped memory for synth_vessel_photo_image.3']
    #allocation6 [shape = 'u8[512]{0}', space=smem, size = 0x200, scoped, tag = 'input window, operand 14, single buffered']
    #allocation7 [shape = 's32[1]{0}', space=sflag, size = 0x4, scoped, tag = 'scoped memory for synth_vessel_photo_image.3']
    #allocation8 [shape = 'u8[512]{0}', space=smem, size = 0x200, scoped, tag = 'input window, operand 15, single buffered']
    #allocation9 [shape = 'u8[512]{0}', space=smem, size = 0x200, scoped, tag = 'input window, operand 16, single buffered']
    #allocation10 [shape = 's32[1]{0}', space=sflag, size = 0x4, scoped, tag = 'scoped memory for synth_vessel_photo_image.3']
    #allocation11 [shape = 'u8[32768]{0}', space=vmem, size = 0x8000, scoped, tag = 'output window, operand 0, single buffered']
    #allocation12 [shape = 'u8[32768]{0}', space=vmem, size = 0x8000, scoped, tag = 'output window, operand 1, single buffered']
    #allocation13 [shape = 's32[1]{0}', space=sflag, size = 0x4, scoped, tag = 'scoped memory for synth_vessel_photo_image.3']
    %25 = vsyncpa [#allocation5], 0
    %26 = vsyncpa [#allocation7], 0
    %27 = vsyncpa [#allocation10], 0
    %28 = vsyncpa [#allocation4], 0
    %29 = vsyncpa [#allocation13], 0
    // Predicated region
    $region2: #{synth_vessel_photo_image.3} parent=1 // pred_check
      _
    $region3: #{synth_vessel_photo_image.3} parent=1 // pred_check_branch
      %31 = sbr.rel (0) target = $region5
    $region4: #{synth_vessel_photo_image.3} parent=1 // pred_region
      _
    $region5: #{synth_vessel_photo_image.3} parent=1 // pred_fallthru
      _
    // Predicated region
    $region6: #{synth_vessel_photo_image.3} parent=1 // pred_check
      _
    $region7: #{synth_vessel_photo_image.3} parent=1 // pred_check_branch
      %33 = sbr.rel (0) target = $region9
    $region8: #{synth_vessel_photo_image.3} parent=1 // pred_region
      _
    $region9: #{synth_vessel_photo_image.3} parent=1 // pred_fallthru
      _
    // Predicated region
    $region10: #{synth_vessel_photo_image.3} parent=1 // pred_check
      _
    $region11: #{synth_vessel_photo_image.3} parent=1 // pred_check_branch
      %35 = sbr.rel (0) target = $region13
    $region12: #{synth_vessel_photo_image.3} parent=1 // pred_region
      _
    $region13: #{synth_vessel_photo_image.3} parent=1 // pred_fallthru
      _
    // Predicated region
    $region14: #{synth_vessel_photo_image.3} parent=1 // pred_check
      _
    $region15: #{synth_vessel_photo_image.3} parent=1 // pred_check_branch
      %37 = sbr.rel (0) target = $region17
    $region16: #{synth_vessel_photo_image.3} parent=1 // pred_region
      _
    $region17: #{synth_vessel_photo_image.3} parent=1 // pred_fallthru
      _
    // Predicated region
    $region18: #{synth_vessel_photo_image.3} parent=1 // pred_check
      _
    $region19: #{synth_vessel_photo_image.3} parent=1 // pred_check_branch
      %39 = sbr.rel (0) target = $region21
    $region20: #{synth_vessel_photo_image.3} parent=1 // pred_region
      _
    $region21: #{synth_vessel_photo_image.3} parent=1 // pred_fallthru
      _
    // Predicated region
    $region22: #{synth_vessel_photo_image.3} parent=1 // pred_check
      _
    $region23: #{synth_vessel_photo_image.3} parent=1 // pred_check_branch
      %41 = sbr.rel (0) target = $region25
    $region24: #{synth_vessel_photo_image.3} parent=1 // pred_region
      _
    $region25: #{synth_vessel_photo_image.3} parent=1 // pred_fallthru
      _
    // Predicated region
    $region26: #{synth_vessel_photo_image.3} parent=1 // pred_check
      _
    $region27: #{synth_vessel_photo_image.3} parent=1 // pred_check_branch
      %43 = sbr.rel (0) target = $region29
    $region28: #{synth_vessel_photo_image.3} parent=1 // pred_region
      _
    $region29: #{synth_vessel_photo_image.3} parent=1 // pred_fallthru
      _
    // Predicated region
    $region30: #{synth_vessel_photo_image.3} parent=1 // pred_check
      _
    $region31: #{synth_vessel_photo_image.3} parent=1 // pred_check_branch
      %45 = sbr.rel (0) target = $region33
    $region32: #{synth_vessel_photo_image.3} parent=1 // pred_region
      _
    $region33: #{synth_vessel_photo_image.3} parent=1 // pred_fallthru
      _
    // Predicated region
    $region34: #{synth_vessel_photo_image.3} parent=1 // pred_check
      _
    $region35: #{synth_vessel_photo_image.3} parent=1 // pred_check_branch
      %47 = sbr.rel (0) target = $region37
    $region36: #{synth_vessel_photo_image.3} parent=1 // pred_region
      _
    $region37: #{synth_vessel_photo_image.3} parent=1 // pred_fallthru
      _
    // Predicated region
    $region38: #{synth_vessel_photo_image.3} parent=1 // pred_check
      _
    $region39: #{synth_vessel_photo_image.3} parent=1 // pred_check_branch
      %49 = sbr.rel (0) target = $region41
    $region40: #{synth_vessel_photo_image.3} parent=1 // pred_region
      _
    $region41: #{synth_vessel_photo_image.3} parent=1 // pred_fallthru
      _
    // Predicated region
    $region42: #{synth_vessel_photo_image.3} parent=1 // pred_check
      _
    $region43: #{synth_vessel_photo_image.3} parent=1 // pred_check_branch
      %51 = sbr.rel (0) target = $region45
    $region44: #{synth_vessel_photo_image.3} parent=1 // pred_region
      _
    $region45: #{synth_vessel_photo_image.3} parent=1 // pred_fallthru
      _
    // Predicated region
    $region46: #{synth_vessel_photo_image.3} parent=1 // pred_check
      _
    $region47: #{synth_vessel_photo_image.3} parent=1 // pred_check_branch
      %53 = sbr.rel (0) target = $region49
    $region48: #{synth_vessel_photo_image.3} parent=1 // pred_region
      _
    $region49: #{synth_vessel_photo_image.3} parent=1 // pred_fallthru
      _
    // Predicated region
    $region50: #{synth_vessel_photo_image.3} parent=1 // pred_check
      _
    $region51: #{synth_vessel_photo_image.3} parent=1 // pred_check_branch
      %55 = sbr.rel (0) target = $region53
    $region52: #{synth_vessel_photo_image.3} parent=1 // pred_region
      _
    $region53: #{synth_vessel_photo_image.3} parent=1 // pred_fallthru
      _
    // Predicated region
    $region54: #{synth_vessel_photo_image.3} parent=1 // pred_check
      _
    $region55: #{synth_vessel_photo_image.3} parent=1 // pred_check_branch
      %57 = sbr.rel (0) target = $region57
    $region56: #{synth_vessel_photo_image.3} parent=1 // pred_region
      %59 = vsyncadd [#allocation5], 0
      %s61 = sshll.u32 %s13, 4
      %s62 = int_to_ptr.vmem [resolvable:$true] %s61
      %64 = dma.vmem_to_smem %s62, 16, [#allocation3], [#allocation5]
    $region57: #{synth_vessel_photo_image.3} parent=1 // pred_fallthru
      _
    // Predicated region
    $region58: #{synth_vessel_photo_image.3} parent=1 // pred_check
      _
    $region59: #{synth_vessel_photo_image.3} parent=1 // pred_check_branch
      %66 = sbr.rel (0) target = $region61
    $region60: #{synth_vessel_photo_image.3} parent=1 // pred_region
      %68 = vsyncadd [#allocation7], 0
      %s70 = sshll.u32 %s14, 4
      %s71 = int_to_ptr.vmem [resolvable:$true] %s70
      %73 = dma.vmem_to_smem %s71, 16, [#allocation6], [#allocation7]
    $region61: #{synth_vessel_photo_image.3} parent=1 // pred_fallthru
      _
    // Predicated region
    $region62: #{synth_vessel_photo_image.3} parent=1 // pred_check
      _
    $region63: #{synth_vessel_photo_image.3} parent=1 // pred_check_branch
      %75 = sbr.rel (0) target = $region65
    $region64: #{synth_vessel_photo_image.3} parent=1 // pred_region
      %77 = vsyncadd [#allocation7], 0
      %s79 = sshll.u32 %s15, 4
      %s80 = int_to_ptr.vmem [resolvable:$true] %s79
      %82 = dma.vmem_to_smem %s80, 16, [#allocation8], [#allocation7]
    $region65: #{synth_vessel_photo_image.3} parent=1 // pred_fallthru
      _
    // Predicated region
    $region66: #{synth_vessel_photo_image.3} parent=1 // pred_check
      _
    $region67: #{synth_vessel_photo_image.3} parent=1 // pred_check_branch
      %84 = sbr.rel (0) target = $region69
    $region68: #{synth_vessel_photo_image.3} parent=1 // pred_region
      %86 = vsyncadd [#allocation10], 0
      %s88 = sshll.u32 %s16, 4
      %s89 = int_to_ptr.vmem [resolvable:$true] %s88
      %91 = dma.vmem_to_smem %s89, 16, [#allocation9], [#allocation10]
    $region69: #{synth_vessel_photo_image.3} parent=1 // pred_fallthru
      _
    // Predicated region
    $region70: #{synth_vessel_photo_image.3} parent=1 // pred_check
      _
    $region71: #{synth_vessel_photo_image.3} parent=1 // pred_check_branch
      %93 = sbr.rel (0) target = $region73
    $region72: #{synth_vessel_photo_image.3} parent=1 // pred_region
      %95 = dma.done [#allocation5], 16
    $region73: #{synth_vessel_photo_image.3} parent=1 // pred_fallthru
      _
    // Predicated region
    $region74: #{synth_vessel_photo_image.3} parent=1 // pred_check
      _
    $region75: #{synth_vessel_photo_image.3} parent=1 // pred_check_branch
      %97 = sbr.rel (0) target = $region77
    $region76: #{synth_vessel_photo_image.3} parent=1 // pred_region
      %99 = dma.done [#allocation7], 16
    $region77: #{synth_vessel_photo_image.3} parent=1 // pred_fallthru
      _
    // Predicated region
    $region78: #{synth_vessel_photo_image.3} parent=1 // pred_check
      _
    $region79: #{synth_vessel_photo_image.3} parent=1 // pred_check_branch
      %101 = sbr.rel (0) target = $region81
    $region80: #{synth_vessel_photo_image.3} parent=1 // pred_region
      %103 = dma.done [#allocation7], 16
    $region81: #{synth_vessel_photo_image.3} parent=1 // pred_fallthru
      _
    // Predicated region
    $region82: #{synth_vessel_photo_image.3} parent=1 // pred_check
      _
    $region83: #{synth_vessel_photo_image.3} parent=1 // pred_check_branch
      %105 = sbr.rel (0) target = $region85
    $region84: #{synth_vessel_photo_image.3} parent=1 // pred_region
      %107 = dma.done [#allocation10], 16
    $region85: #{synth_vessel_photo_image.3} parent=1 // pred_fallthru
      _
    %108 = sfence
    %v110 = vld [vmem:[%s4] sm:$0xf]
    %v111 = vld [vmem:[%s4 + $0x4] sm:$0xf]
    %v112 = vld [vmem:[%s4 + $0x8] sm:$0xf]
    %v113 = vld [vmem:[%s4 + $0xc] sm:$0xf]
    %v114 = vld [vmem:[%s4 + $0x10] sm:$0xf]
    %v115 = vld [vmem:[%s4 + $0x14] sm:$0xf]
    %v116 = vld [vmem:[%s4 + $0x18] sm:$0xf]
    %v117 = vld [vmem:[%s4 + $0x1c] sm:$0xf]
    %v118 = vld [vmem:[%s1] sm:$0xff]
    %v119 = vld [vmem:[%s1 + $0x8] sm:$0xff]
    %v120 = vld [vmem:[%s1 + $0x10] sm:$0xff]
    %v121 = vld [vmem:[%s1 + $0x18] sm:$0xff]
    %v122 = vld [vmem:[%s1 + $0x20] sm:$0xff]
    %v123 = vld [vmem:[%s1 + $0x28] sm:$0xff]
    %v124 = vld [vmem:[%s1 + $0x30] sm:$0xff]
    %v125 = vld [vmem:[%s1 + $0x38] sm:$0xff]
    %v126 = vld [vmem:[%s1 + $0x40] sm:$0xff]
    %v127 = vld [vmem:[%s1 + $0x48] sm:$0xff]
    %v128 = vld [vmem:[%s1 + $0x50] sm:$0xff]
    %v129 = vld [vmem:[%s1 + $0x58] sm:$0xff]
    %v130 = vld [vmem:[%s1 + $0x60] sm:$0xff]
    %v131 = vld [vmem:[%s1 + $0x68] sm:$0xff]
    %v132 = vld [vmem:[%s1 + $0x70] sm:$0xff]
    %v133 = vld [vmem:[%s1 + $0x78] sm:$0xff]
    %v134 = vld [vmem:[%s1 + $0x80] sm:$0xff]
    %v135 = vld [vmem:[%s1 + $0x88] sm:$0xff]
    %v136 = vld [vmem:[%s1 + $0x90] sm:$0xff]
    %v137 = vld [vmem:[%s1 + $0x98] sm:$0xff]
    %v138 = vld [vmem:[%s1 + $0xa0] sm:$0xff]
    %v139 = vld [vmem:[%s1 + $0xa8] sm:$0xff]
    %v140 = vld [vmem:[%s1 + $0xb0] sm:$0xff]
    %v141 = vld [vmem:[%s1 + $0xb8] sm:$0xff]
    %v142 = vld [vmem:[%s1 + $0xc0] sm:$0xff]
    %v143 = vld [vmem:[%s1 + $0xc8] sm:$0xff]
    %v144 = vld [vmem:[%s1 + $0xd0] sm:$0xff]
    %v145 = vld [vmem:[%s1 + $0xd8] sm:$0xff]
    %v146 = vld [vmem:[%s1 + $0xe0] sm:$0xff]
    %v147 = vld [vmem:[%s1 + $0xe8] sm:$0xff]
    %v148 = vld [vmem:[%s1 + $0xf0] sm:$0xff]
    %v149 = vld [vmem:[%s1 + $0xf8] sm:$0xff]
    %v150 = vld [vmem:[%s1 + $0x100] sm:$0xff]
    %v151 = vld [vmem:[%s1 + $0x108] sm:$0xff]
    %v152 = vld [vmem:[%s1 + $0x110] sm:$0xff]
    %v153 = vld [vmem:[%s1 + $0x118] sm:$0xff]
    %v154 = vld [vmem:[%s1 + $0x120] sm:$0xff]
    %v155 = vld [vmem:[%s1 + $0x128] sm:$0xff]
    %v156 = vld [vmem:[%s1 + $0x130] sm:$0xff]
    %v157 = vld [vmem:[%s1 + $0x138] sm:$0xff]
    %v158 = vld [vmem:[%s1 + $0x140] sm:$0xff]
    %v159 = vld [vmem:[%s1 + $0x148] sm:$0xff]
    %v160 = vld [vmem:[%s1 + $0x150] sm:$0xff]
    %v161 = vld [vmem:[%s1 + $0x158] sm:$0xff]
    %v162 = vld [vmem:[%s1 + $0x160] sm:$0xff]
    %v163 = vld [vmem:[%s1 + $0x168] sm:$0xff]
    %v164 = vld [vmem:[%s1 + $0x170] sm:$0xff]
    %v165 = vld [vmem:[%s1 + $0x178] sm:$0xff]
    %v166 = vld [vmem:[%s1 + $0x180] sm:$0xff]
    %v167 = vld [vmem:[%s1 + $0x188] sm:$0xff]
    %v168 = vld [vmem:[%s1 + $0x190] sm:$0xff]
    %v169 = vld [vmem:[%s1 + $0x198] sm:$0xff]
    %v170 = vld [vmem:[%s1 + $0x1a0] sm:$0xff]
    %v171 = vld [vmem:[%s1 + $0x1a8] sm:$0xff]
    %v172 = vld [vmem:[%s1 + $0x1b0] sm:$0xff]
    %v173 = vld [vmem:[%s1 + $0x1b8] sm:$0xff]
    %v174 = vld [vmem:[%s1 + $0x1c0] sm:$0xff]
    %v175 = vld [vmem:[%s1 + $0x1c8] sm:$0xff]
    %v176 = vld [vmem:[%s1 + $0x1d0] sm:$0xff]
    %v177 = vld [vmem:[%s1 + $0x1d8] sm:$0xff]
    %v178 = vld [vmem:[%s1 + $0x1e0] sm:$0xff]
    %v179 = vld [vmem:[%s1 + $0x1e8] sm:$0xff]
    %v180 = vld [vmem:[%s1 + $0x1f0] sm:$0xff]
    %v181 = vld [vmem:[%s1 + $0x1f8] sm:$0xff]
    %v182 = vld [vmem:[%s1 + $0x200] sm:$0xff]
    %v183 = vld [vmem:[%s1 + $0x208] sm:$0xff]
    %v184 = vld [vmem:[%s1 + $0x210] sm:$0xff]
    %v185 = vld [vmem:[%s1 + $0x218] sm:$0xff]
    %v186 = vld [vmem:[%s1 + $0x220] sm:$0xff]
    %v187 = vld [vmem:[%s1 + $0x228] sm:$0xff]
    %v188 = vld [vmem:[%s1 + $0x230] sm:$0xff]
    %v189 = vld [vmem:[%s1 + $0x238] sm:$0xff]
    %v190 = vld [vmem:[%s1 + $0x240] sm:$0xff]
    %v191 = vld [vmem:[%s1 + $0x248] sm:$0xff]
    %v192 = vld [vmem:[%s1 + $0x250] sm:$0xff]
    %v193 = vld [vmem:[%s1 + $0x258] sm:$0xff]
    %v194 = vld [vmem:[%s1 + $0x260] sm:$0xff]
    %v195 = vld [vmem:[%s1 + $0x268] sm:$0xff]
    %v196 = vld [vmem:[%s1 + $0x270] sm:$0xff]
    %v197 = vld [vmem:[%s1 + $0x278] sm:$0xff]
    %v206 = vunpack.c.l.b16 %v110
    %v207 = vunpack.c.l.b16 %v111
    %v208 = vunpack.c.l.b16 %v112
    %v209 = vunpack.c.l.b16 %v113
    %v210 = vunpack.c.l.b16 %v114
    %v211 = vunpack.c.l.b16 %v115
    %v212 = vunpack.c.l.b16 %v116
    %v213 = vunpack.c.l.b16 %v117
    %v214 = vpack.c.b16 %v207, %v206
    %v215 = vpack.c.b16 %v209, %v208
    %v216 = vpack.c.b16 %v211, %v210
    %v217 = vpack.c.b16 %v213, %v212
    %v298 = vunpack.c.l.b16 %v118
    %v299 = vunpack.c.h.b16 %v118
    %v300 = vunpack.c.l.b16 %v119
    %v301 = vunpack.c.h.b16 %v119
    %v302 = vunpack.c.l.b16 %v120
    %v303 = vunpack.c.h.b16 %v120
    %v304 = vunpack.c.l.b16 %v121
    %v305 = vunpack.c.h.b16 %v121
    %v306 = vunpack.c.l.b16 %v122
    %v307 = vunpack.c.h.b16 %v122
    %v308 = vunpack.c.l.b16 %v123
    %v309 = vunpack.c.h.b16 %v123
    %v310 = vunpack.c.l.b16 %v124
    %v311 = vunpack.c.h.b16 %v124
    %v312 = vunpack.c.l.b16 %v125
    %v313 = vunpack.c.h.b16 %v125
    %v314 = vunpack.c.l.b16 %v126
    %v315 = vunpack.c.h.b16 %v126
    %v316 = vunpack.c.l.b16 %v127
    %v317 = vunpack.c.h.b16 %v127
    %v318 = vunpack.c.l.b16 %v128
    %v319 = vunpack.c.h.b16 %v128
    %v320 = vunpack.c.l.b16 %v129
    %v321 = vunpack.c.h.b16 %v129
    %v322 = vunpack.c.l.b16 %v130
    %v323 = vunpack.c.h.b16 %v130
    %v324 = vunpack.c.l.b16 %v131
    %v325 = vunpack.c.h.b16 %v131
    %v326 = vunpack.c.l.b16 %v132
    %v327 = vunpack.c.h.b16 %v132
    %v328 = vunpack.c.l.b16 %v133
    %v329 = vunpack.c.h.b16 %v133
    %v330 = vunpack.c.l.b16 %v134
    %v331 = vunpack.c.h.b16 %v134
    %v332 = vunpack.c.l.b16 %v135
    %v333 = vunpack.c.h.b16 %v135
    %v334 = vunpack.c.l.b16 %v136
    %v335 = vunpack.c.h.b16 %v136
    %v336 = vunpack.c.l.b16 %v137
    %v337 = vunpack.c.h.b16 %v137
    %v338 = vunpack.c.l.b16 %v138
    %v339 = vunpack.c.h.b16 %v138
    %v340 = vunpack.c.l.b16 %v139
    %v341 = vunpack.c.h.b16 %v139
    %v342 = vunpack.c.l.b16 %v140
    %v343 = vunpack.c.h.b16 %v140
    %v344 = vunpack.c.l.b16 %v141
    %v345 = vunpack.c.h.b16 %v141
    %v346 = vunpack.c.l.b16 %v142
    %v347 = vunpack.c.h.b16 %v142
    %v348 = vunpack.c.l.b16 %v143
    %v349 = vunpack.c.h.b16 %v143
    %v350 = vunpack.c.l.b16 %v144
    %v351 = vunpack.c.h.b16 %v144
    %v352 = vunpack.c.l.b16 %v145
    %v353 = vunpack.c.h.b16 %v145
    %v354 = vunpack.c.l.b16 %v146
    %v355 = vunpack.c.h.b16 %v146
    %v356 = vunpack.c.l.b16 %v147
    %v357 = vunpack.c.h.b16 %v147
    %v358 = vunpack.c.l.b16 %v148
    %v359 = vunpack.c.h.b16 %v148
    %v360 = vunpack.c.l.b16 %v149
    %v361 = vunpack.c.h.b16 %v149
    %v362 = vunpack.c.l.b16 %v150
    %v363 = vunpack.c.h.b16 %v150
    %v364 = vunpack.c.l.b16 %v151
    %v365 = vunpack.c.h.b16 %v151
    %v366 = vunpack.c.l.b16 %v152
    %v367 = vunpack.c.h.b16 %v152
    %v368 = vunpack.c.l.b16 %v153
    %v369 = vunpack.c.h.b16 %v153
    %v370 = vunpack.c.l.b16 %v154
    %v371 = vunpack.c.h.b16 %v154
    %v372 = vunpack.c.l.b16 %v155
    %v373 = vunpack.c.h.b16 %v155
    %v374 = vunpack.c.l.b16 %v156
    %v375 = vunpack.c.h.b16 %v156
    %v376 = vunpack.c.l.b16 %v157
    %v377 = vunpack.c.h.b16 %v157
    %v378 = vunpack.c.l.b16 %v158
    %v379 = vunpack.c.h.b16 %v158
    %v380 = vunpack.c.l.b16 %v159
    %v381 = vunpack.c.h.b16 %v159
    %v382 = vunpack.c.l.b16 %v160
    %v383 = vunpack.c.h.b16 %v160
    %v384 = vunpack.c.l.b16 %v161
    %v385 = vunpack.c.h.b16 %v161
    %v386 = vunpack.c.l.b16 %v162
    %v387 = vunpack.c.h.b16 %v162
    %v388 = vunpack.c.l.b16 %v163
    %v389 = vunpack.c.h.b16 %v163
    %v390 = vunpack.c.l.b16 %v164
    %v391 = vunpack.c.h.b16 %v164
    %v392 = vunpack.c.l.b16 %v165
    %v393 = vunpack.c.h.b16 %v165
    %v394 = vunpack.c.l.b16 %v166
    %v395 = vunpack.c.h.b16 %v166
    %v396 = vunpack.c.l.b16 %v167
    %v397 = vunpack.c.h.b16 %v167
    %v398 = vunpack.c.l.b16 %v168
    %v399 = vunpack.c.h.b16 %v168
    %v400 = vunpack.c.l.b16 %v169
    %v401 = vunpack.c.h.b16 %v169
    %v402 = vunpack.c.l.b16 %v170
    %v403 = vunpack.c.h.b16 %v170
    %v404 = vunpack.c.l.b16 %v171
    %v405 = vunpack.c.h.b16 %v171
    %v406 = vunpack.c.l.b16 %v172
    %v407 = vunpack.c.h.b16 %v172
    %v408 = vunpack.c.l.b16 %v173
    %v409 = vunpack.c.h.b16 %v173
    %v410 = vunpack.c.l.b16 %v174
    %v411 = vunpack.c.h.b16 %v174
    %v412 = vunpack.c.l.b16 %v175
    %v413 = vunpack.c.h.b16 %v175
    %v414 = vunpack.c.l.b16 %v176
    %v415 = vunpack.c.h.b16 %v176
    %v416 = vunpack.c.l.b16 %v177
    %v417 = vunpack.c.h.b16 %v177
    %v418 = vunpack.c.l.b16 %v178
    %v419 = vunpack.c.h.b16 %v178
    %v420 = vunpack.c.l.b16 %v179
    %v421 = vunpack.c.h.b16 %v179
    %v422 = vunpack.c.l.b16 %v180
    %v423 = vunpack.c.h.b16 %v180
    %v424 = vunpack.c.l.b16 %v181
    %v425 = vunpack.c.h.b16 %v181
    %v426 = vunpack.c.l.b16 %v182
    %v427 = vunpack.c.h.b16 %v182
    %v428 = vunpack.c.l.b16 %v183
    %v429 = vunpack.c.h.b16 %v183
    %v430 = vunpack.c.l.b16 %v184
    %v431 = vunpack.c.h.b16 %v184
    %v432 = vunpack.c.l.b16 %v185
    %v433 = vunpack.c.h.b16 %v185
    %v434 = vunpack.c.l.b16 %v186
    %v435 = vunpack.c.h.b16 %v186
    %v436 = vunpack.c.l.b16 %v187
    %v437 = vunpack.c.h.b16 %v187
    %v438 = vunpack.c.l.b16 %v188
    %v439 = vunpack.c.h.b16 %v188
    %v440 = vunpack.c.l.b16 %v189
    %v441 = vunpack.c.h.b16 %v189
    %v442 = vunpack.c.l.b16 %v190
    %v443 = vunpack.c.h.b16 %v190
    %v444 = vunpack.c.l.b16 %v191
    %v445 = vunpack.c.h.b16 %v191
    %v446 = vunpack.c.l.b16 %v192
    %v447 = vunpack.c.h.b16 %v192
    %v448 = vunpack.c.l.b16 %v193
    %v449 = vunpack.c.h.b16 %v193
    %v450 = vunpack.c.l.b16 %v194
    %v451 = vunpack.c.h.b16 %v194
    %v452 = vunpack.c.l.b16 %v195
    %v453 = vunpack.c.h.b16 %v195
    %v454 = vunpack.c.l.b16 %v196
    %v455 = vunpack.c.h.b16 %v196
    %v456 = vunpack.c.l.b16 %v197
    %v457 = vunpack.c.h.b16 %v197
    %v458 = vpack.c.b16 %v318, %v298
    %v459 = vpack.c.b16 %v319, %v299
    %v460 = vpack.c.b16 %v320, %v300
    %v461 = vpack.c.b16 %v321, %v301
    %v462 = vpack.c.b16 %v322, %v302
    %v463 = vpack.c.b16 %v323, %v303
    %v464 = vpack.c.b16 %v324, %v304
    %v465 = vpack.c.b16 %v325, %v305
    %v466 = vpack.c.b16 %v326, %v306
    %v467 = vpack.c.b16 %v327, %v307
    %v468 = vpack.c.b16 %v328, %v308
    %v469 = vpack.c.b16 %v329, %v309
    %v470 = vpack.c.b16 %v330, %v310
    %v471 = vpack.c.b16 %v331, %v311
    %v472 = vpack.c.b16 %v332, %v312
    %v473 = vpack.c.b16 %v333, %v313
    %v474 = vpack.c.b16 %v334, %v314
    %v475 = vpack.c.b16 %v335, %v315
    %v476 = vpack.c.b16 %v336, %v316
    %v477 = vpack.c.b16 %v337, %v317
    %v478 = vpack.c.b16 %v358, %v338
    %v479 = vpack.c.b16 %v359, %v339
    %v480 = vpack.c.b16 %v360, %v340
    %v481 = vpack.c.b16 %v361, %v341
    %v482 = vpack.c.b16 %v362, %v342
    %v483 = vpack.c.b16 %v363, %v343
    %v484 = vpack.c.b16 %v364, %v344
    %v485 = vpack.c.b16 %v365, %v345
    %v486 = vpack.c.b16 %v366, %v346
    %v487 = vpack.c.b16 %v367, %v347
    %v488 = vpack.c.b16 %v368, %v348
    %v489 = vpack.c.b16 %v369, %v349
    %v490 = vpack.c.b16 %v370, %v350
    %v491 = vpack.c.b16 %v371, %v351
    %v492 = vpack.c.b16 %v372, %v352
    %v493 = vpack.c.b16 %v373, %v353
    %v494 = vpack.c.b16 %v374, %v354
    %v495 = vpack.c.b16 %v375, %v355
    %v496 = vpack.c.b16 %v376, %v356
    %v497 = vpack.c.b16 %v377, %v357
    %v498 = vpack.c.b16 %v398, %v378
    %v499 = vpack.c.b16 %v399, %v379
    %v500 = vpack.c.b16 %v400, %v380
    %v501 = vpack.c.b16 %v401, %v381
    %v502 = vpack.c.b16 %v402, %v382
    %v503 = vpack.c.b16 %v403, %v383
    %v504 = vpack.c.b16 %v404, %v384
    %v505 = vpack.c.b16 %v405, %v385
    %v506 = vpack.c.b16 %v406, %v386
    %v507 = vpack.c.b16 %v407, %v387
    %v508 = vpack.c.b16 %v408, %v388
    %v509 = vpack.c.b16 %v409, %v389
    %v510 = vpack.c.b16 %v410, %v390
    %v511 = vpack.c.b16 %v411, %v391
    %v512 = vpack.c.b16 %v412, %v392
    %v513 = vpack.c.b16 %v413, %v393
    %v514 = vpack.c.b16 %v414, %v394
    %v515 = vpack.c.b16 %v415, %v395
    %v516 = vpack.c.b16 %v416, %v396
    %v517 = vpack.c.b16 %v417, %v397
    %v518 = vpack.c.b16 %v438, %v418
    %v519 = vpack.c.b16 %v439, %v419
    %v520 = vpack.c.b16 %v440, %v420
    %v521 = vpack.c.b16 %v441, %v421
    %v522 = vpack.c.b16 %v442, %v422
    %v523 = vpack.c.b16 %v443, %v423
    %v524 = vpack.c.b16 %v444, %v424
    %v525 = vpack.c.b16 %v445, %v425
    %v526 = vpack.c.b16 %v446, %v426
    %v527 = vpack.c.b16 %v447, %v427
    %v528 = vpack.c.b16 %v448, %v428
    %v529 = vpack.c.b16 %v449, %v429
    %v530 = vpack.c.b16 %v450, %v430
    %v531 = vpack.c.b16 %v451, %v431
    %v532 = vpack.c.b16 %v452, %v432
    %v533 = vpack.c.b16 %v453, %v433
    %v534 = vpack.c.b16 %v454, %v434
    %v535 = vpack.c.b16 %v455, %v435
    %v536 = vpack.c.b16 %v456, %v436
    %v537 = vpack.c.b16 %v457, %v437
    %vm618 = vcmask 523264
    %v620 = vsel %vm618, %v214, 0
    %v623 = vsel %vm618, %v215, 0
    %v626 = vsel %vm618, %v216, 0
    %v629 = vsel %vm618, %v217, 0
    %631 = vmatpush.bf16.msra.mxu0 0
    %632 = vmatpush.bf16.msra.mxu0 0
    %633 = vmatpush.bf16.msra.mxu0 0
    %634 = vmatpush.bf16.msra.mxu0 0
    %635 = vmatpush.bf16.msra.mxu0 %v518
    %636 = vmatpush.bf16.msra.mxu0 %v498
    %637 = vmatpush.bf16.msra.mxu0 %v478
    %638 = vmatpush.bf16.msra.mxu0 %v458
    %639 = vmatmul.bf16.gmra.mxu0 %v620
    %v640 = vpop.f32.mrf.mxu0
    %v641 = vadd.f32 0.0, %v640
    %v642 = vpop.f32.mrf.mxu0
    %v643 = vadd.f32 0.0, %v642
    %644 = vmatmul.bf16.gmra.mxu0 %v623
    %v645 = vpop.f32.mrf.mxu0
    %v646 = vadd.f32 0.0, %v645
    %v647 = vpop.f32.mrf.mxu0
    %v648 = vadd.f32 0.0, %v647
    %649 = vmatmul.bf16.gmra.mxu0 %v626
    %v650 = vpop.f32.mrf.mxu0
    %v651 = vadd.f32 0.0, %v650
    %v652 = vpop.f32.mrf.mxu0
    %v653 = vadd.f32 0.0, %v652
    %654 = vmatmul.bf16.gmra.mxu0 %v629
    %v655 = vpop.f32.mrf.mxu0
    %v656 = vadd.f32 0.0, %v655
    %v657 = vpop.f32.mrf.mxu0
    %v658 = vadd.f32 0.0, %v657
    %659 = vdwg.mxu0
    %660 = vmatpush.bf16.msra.mxu0 0
    %661 = vmatpush.bf16.msra.mxu0 0
    %662 = vmatpush.bf16.msra.mxu0 0
    %663 = vmatpush.bf16.msra.mxu0 0
    %664 = vmatpush.bf16.msra.mxu0 %v519
    %665 = vmatpush.bf16.msra.mxu0 %v499
    %666 = vmatpush.bf16.msra.mxu0 %v479
    %667 = vmatpush.bf16.msra.mxu0 %v459
    %668 = vmatmul.bf16.gmra.mxu0 %v620
    %v669 = vpop.f32.mrf.mxu0
    %v670 = vadd.f32 0.0, %v669
    %v671 = vpop.f32.mrf.mxu0
    %v672 = vadd.f32 0.0, %v671
    %673 = vmatmul.bf16.gmra.mxu0 %v623
    %v674 = vpop.f32.mrf.mxu0
    %v675 = vadd.f32 0.0, %v674
    %v676 = vpop.f32.mrf.mxu0
    %v677 = vadd.f32 0.0, %v676
    %678 = vmatmul.bf16.gmra.mxu0 %v626
    %v679 = vpop.f32.mrf.mxu0
    %v680 = vadd.f32 0.0, %v679
    %v681 = vpop.f32.mrf.mxu0
    %v682 = vadd.f32 0.0, %v681
    %683 = vmatmul.bf16.gmra.mxu0 %v629
    %v684 = vpop.f32.mrf.mxu0
    %v685 = vadd.f32 0.0, %v684
    %v686 = vpop.f32.mrf.mxu0
    %v687 = vadd.f32 0.0, %v686
    %688 = vdwg.mxu0
    %689 = vmatpush.bf16.msra.mxu0 0
    %690 = vmatpush.bf16.msra.mxu0 0
    %691 = vmatpush.bf16.msra.mxu0 0
    %692 = vmatpush.bf16.msra.mxu0 0
    %693 = vmatpush.bf16.msra.mxu0 %v520
    %694 = vmatpush.bf16.msra.mxu0 %v500
    %695 = vmatpush.bf16.msra.mxu0 %v480
    %696 = vmatpush.bf16.msra.mxu0 %v460
    %697 = vmatmul.bf16.gmra.mxu0 %v620
    %v698 = vpop.f32.mrf.mxu0
    %v699 = vadd.f32 0.0, %v698
    %v700 = vpop.f32.mrf.mxu0
    %v701 = vadd.f32 0.0, %v700
    %702 = vmatmul.bf16.gmra.mxu0 %v623
    %v703 = vpop.f32.mrf.mxu0
    %v704 = vadd.f32 0.0, %v703
    %v705 = vpop.f32.mrf.mxu0
    %v706 = vadd.f32 0.0, %v705
    %707 = vmatmul.bf16.gmra.mxu0 %v626
    %v708 = vpop.f32.mrf.mxu0
    %v709 = vadd.f32 0.0, %v708
    %v710 = vpop.f32.mrf.mxu0
    %v711 = vadd.f32 0.0, %v710
    %712 = vmatmul.bf16.gmra.mxu0 %v629
    %v713 = vpop.f32.mrf.mxu0
    %v714 = vadd.f32 0.0, %v713
    %v715 = vpop.f32.mrf.mxu0
    %v716 = vadd.f32 0.0, %v715
    %717 = vdwg.mxu0
    %718 = vmatpush.bf16.msra.mxu0 0
    %719 = vmatpush.bf16.msra.mxu0 0
    %720 = vmatpush.bf16.msra.mxu0 0
    %721 = vmatpush.bf16.msra.mxu0 0
    %722 = vmatpush.bf16.msra.mxu0 %v521
    %723 = vmatpush.bf16.msra.mxu0 %v501
    %724 = vmatpush.bf16.msra.mxu0 %v481
    %725 = vmatpush.bf16.msra.mxu0 %v461
    %726 = vmatmul.bf16.gmra.mxu0 %v620
    %v727 = vpop.f32.mrf.mxu0
    %v728 = vadd.f32 0.0, %v727
    %v729 = vpop.f32.mrf.mxu0
    %v730 = vadd.f32 0.0, %v729
    %731 = vmatmul.bf16.gmra.mxu0 %v623
    %v732 = vpop.f32.mrf.mxu0
    %v733 = vadd.f32 0.0, %v732
    %v734 = vpop.f32.mrf.mxu0
    %v735 = vadd.f32 0.0, %v734
    %736 = vmatmul.bf16.gmra.mxu0 %v626
    %v737 = vpop.f32.mrf.mxu0
    %v738 = vadd.f32 0.0, %v737
    %v739 = vpop.f32.mrf.mxu0
    %v740 = vadd.f32 0.0, %v739
    %741 = vmatmul.bf16.gmra.mxu0 %v629
    %v742 = vpop.f32.mrf.mxu0
    %v743 = vadd.f32 0.0, %v742
    %v744 = vpop.f32.mrf.mxu0
    %v745 = vadd.f32 0.0, %v744
    %746 = vdwg.mxu0
    %747 = vmatpush.bf16.msra.mxu0 0
    %748 = vmatpush.bf16.msra.mxu0 0
    %749 = vmatpush.bf16.msra.mxu0 0
    %750 = vmatpush.bf16.msra.mxu0 0
    %751 = vmatpush.bf16.msra.mxu0 %v522
    %752 = vmatpush.bf16.msra.mxu0 %v502
    %753 = vmatpush.bf16.msra.mxu0 %v482
    %754 = vmatpush.bf16.msra.mxu0 %v462
    %755 = vmatmul.bf16.gmra.mxu0 %v620
    %v756 = vpop.f32.mrf.mxu0
    %v757 = vadd.f32 0.0, %v756
    %v758 = vpop.f32.mrf.mxu0
    %v759 = vadd.f32 0.0, %v758
    %760 = vmatmul.bf16.gmra.mxu0 %v623
    %v761 = vpop.f32.mrf.mxu0
    %v762 = vadd.f32 0.0, %v761
    %v763 = vpop.f32.mrf.mxu0
    %v764 = vadd.f32 0.0, %v763
    %765 = vmatmul.bf16.gmra.mxu0 %v626
    %v766 = vpop.f32.mrf.mxu0
    %v767 = vadd.f32 0.0, %v766
    %v768 = vpop.f32.mrf.mxu0
    %v769 = vadd.f32 0.0, %v768
    %770 = vmatmul.bf16.gmra.mxu0 %v629
    %v771 = vpop.f32.mrf.mxu0
    %v772 = vadd.f32 0.0, %v771
    %v773 = vpop.f32.mrf.mxu0
    %v774 = vadd.f32 0.0, %v773
    %775 = vdwg.mxu0
    %776 = vmatpush.bf16.msra.mxu0 0
    %777 = vmatpush.bf16.msra.mxu0 0
    %778 = vmatpush.bf16.msra.mxu0 0
    %779 = vmatpush.bf16.msra.mxu0 0
    %780 = vmatpush.bf16.msra.mxu0 %v523
    %781 = vmatpush.bf16.msra.mxu0 %v503
    %782 = vmatpush.bf16.msra.mxu0 %v483
    %783 = vmatpush.bf16.msra.mxu0 %v463
    %784 = vmatmul.bf16.gmra.mxu0 %v620
    %v785 = vpop.f32.mrf.mxu0
    %v786 = vadd.f32 0.0, %v785
    %v787 = vpop.f32.mrf.mxu0
    %v788 = vadd.f32 0.0, %v787
    %789 = vmatmul.bf16.gmra.mxu0 %v623
    %v790 = vpop.f32.mrf.mxu0
    %v791 = vadd.f32 0.0, %v790
    %v792 = vpop.f32.mrf.mxu0
    %v793 = vadd.f32 0.0, %v792
    %794 = vmatmul.bf16.gmra.mxu0 %v626
    %v795 = vpop.f32.mrf.mxu0
    %v796 = vadd.f32 0.0, %v795
    %v797 = vpop.f32.mrf.mxu0
    %v798 = vadd.f32 0.0, %v797
    %799 = vmatmul.bf16.gmra.mxu0 %v629
    %v800 = vpop.f32.mrf.mxu0
    %v801 = vadd.f32 0.0, %v800
    %v802 = vpop.f32.mrf.mxu0
    %v803 = vadd.f32 0.0, %v802
    %804 = vdwg.mxu0
    %805 = vmatpush.bf16.msra.mxu0 0
    %806 = vmatpush.bf16.msra.mxu0 0
    %807 = vmatpush.bf16.msra.mxu0 0
    %808 = vmatpush.bf16.msra.mxu0 0
    %809 = vmatpush.bf16.msra.mxu0 %v524
    %810 = vmatpush.bf16.msra.mxu0 %v504
    %811 = vmatpush.bf16.msra.mxu0 %v484
    %812 = vmatpush.bf16.msra.mxu0 %v464
    %813 = vmatmul.bf16.gmra.mxu0 %v620
    %v814 = vpop.f32.mrf.mxu0
    %v815 = vadd.f32 0.0, %v814
    %v816 = vpop.f32.mrf.mxu0
    %v817 = vadd.f32 0.0, %v816
    %818 = vmatmul.bf16.gmra.mxu0 %v623
    %v819 = vpop.f32.mrf.mxu0
    %v820 = vadd.f32 0.0, %v819
    %v821 = vpop.f32.mrf.mxu0
    %v822 = vadd.f32 0.0, %v821
    %823 = vmatmul.bf16.gmra.mxu0 %v626
    %v824 = vpop.f32.mrf.mxu0
    %v825 = vadd.f32 0.0, %v824
    %v826 = vpop.f32.mrf.mxu0
    %v827 = vadd.f32 0.0, %v826
    %828 = vmatmul.bf16.gmra.mxu0 %v629
    %v829 = vpop.f32.mrf.mxu0
    %v830 = vadd.f32 0.0, %v829
    %v831 = vpop.f32.mrf.mxu0
    %v832 = vadd.f32 0.0, %v831
    %833 = vdwg.mxu0
    %834 = vmatpush.bf16.msra.mxu0 0
    %835 = vmatpush.bf16.msra.mxu0 0
    %836 = vmatpush.bf16.msra.mxu0 0
    %837 = vmatpush.bf16.msra.mxu0 0
    %838 = vmatpush.bf16.msra.mxu0 %v525
    %839 = vmatpush.bf16.msra.mxu0 %v505
    %840 = vmatpush.bf16.msra.mxu0 %v485
    %841 = vmatpush.bf16.msra.mxu0 %v465
    %842 = vmatmul.bf16.gmra.mxu0 %v620
    %v843 = vpop.f32.mrf.mxu0
    %v844 = vadd.f32 0.0, %v843
    %v845 = vpop.f32.mrf.mxu0
    %v846 = vadd.f32 0.0, %v845
    %847 = vmatmul.bf16.gmra.mxu0 %v623
    %v848 = vpop.f32.mrf.mxu0
    %v849 = vadd.f32 0.0, %v848
    %v850 = vpop.f32.mrf.mxu0
    %v851 = vadd.f32 0.0, %v850
    %852 = vmatmul.bf16.gmra.mxu0 %v626
    %v853 = vpop.f32.mrf.mxu0
    %v854 = vadd.f32 0.0, %v853
    %v855 = vpop.f32.mrf.mxu0
    %v856 = vadd.f32 0.0, %v855
    %857 = vmatmul.bf16.gmra.mxu0 %v629
    %v858 = vpop.f32.mrf.mxu0
    %v859 = vadd.f32 0.0, %v858
    %v860 = vpop.f32.mrf.mxu0
    %v861 = vadd.f32 0.0, %v860
    %862 = vdwg.mxu0
    %863 = vmatpush.bf16.msra.mxu0 0
    %864 = vmatpush.bf16.msra.mxu0 0
    %865 = vmatpush.bf16.msra.mxu0 0
    %866 = vmatpush.bf16.msra.mxu0 0
    %867 = vmatpush.bf16.msra.mxu0 %v526
    %868 = vmatpush.bf16.msra.mxu0 %v506
    %869 = vmatpush.bf16.msra.mxu0 %v486
    %870 = vmatpush.bf16.msra.mxu0 %v466
    %871 = vmatmul.bf16.gmra.mxu0 %v620
    %v872 = vpop.f32.mrf.mxu0
    %v873 = vadd.f32 0.0, %v872
    %v874 = vpop.f32.mrf.mxu0
    %v875 = vadd.f32 0.0, %v874
    %876 = vmatmul.bf16.gmra.mxu0 %v623
    %v877 = vpop.f32.mrf.mxu0
    %v878 = vadd.f32 0.0, %v877
    %v879 = vpop.f32.mrf.mxu0
    %v880 = vadd.f32 0.0, %v879
    %881 = vmatmul.bf16.gmra.mxu0 %v626
    %v882 = vpop.f32.mrf.mxu0
    %v883 = vadd.f32 0.0, %v882
    %v884 = vpop.f32.mrf.mxu0
    %v885 = vadd.f32 0.0, %v884
    %886 = vmatmul.bf16.gmra.mxu0 %v629
    %v887 = vpop.f32.mrf.mxu0
    %v888 = vadd.f32 0.0, %v887
    %v889 = vpop.f32.mrf.mxu0
    %v890 = vadd.f32 0.0, %v889
    %891 = vdwg.mxu0
    %892 = vmatpush.bf16.msra.mxu0 0
    %893 = vmatpush.bf16.msra.mxu0 0
    %894 = vmatpush.bf16.msra.mxu0 0
    %895 = vmatpush.bf16.msra.mxu0 0
    %896 = vmatpush.bf16.msra.mxu0 %v527
    %897 = vmatpush.bf16.msra.mxu0 %v507
    %898 = vmatpush.bf16.msra.mxu0 %v487
    %899 = vmatpush.bf16.msra.mxu0 %v467
    %900 = vmatmul.bf16.gmra.mxu0 %v620
    %v901 = vpop.f32.mrf.mxu0
    %v902 = vadd.f32 0.0, %v901
    %v903 = vpop.f32.mrf.mxu0
    %v904 = vadd.f32 0.0, %v903
    %905 = vmatmul.bf16.gmra.mxu0 %v623
    %v906 = vpop.f32.mrf.mxu0
    %v907 = vadd.f32 0.0, %v906
    %v908 = vpop.f32.mrf.mxu0
    %v909 = vadd.f32 0.0, %v908
    %910 = vmatmul.bf16.gmra.mxu0 %v626
    %v911 = vpop.f32.mrf.mxu0
    %v912 = vadd.f32 0.0, %v911
    %v913 = vpop.f32.mrf.mxu0
    %v914 = vadd.f32 0.0, %v913
    %915 = vmatmul.bf16.gmra.mxu0 %v629
    %v916 = vpop.f32.mrf.mxu0
    %v917 = vadd.f32 0.0, %v916
    %v918 = vpop.f32.mrf.mxu0
    %v919 = vadd.f32 0.0, %v918
    %920 = vdwg.mxu0
    %921 = vmatpush.bf16.msra.mxu0 0
    %922 = vmatpush.bf16.msra.mxu0 0
    %923 = vmatpush.bf16.msra.mxu0 0
    %924 = vmatpush.bf16.msra.mxu0 0
    %925 = vmatpush.bf16.msra.mxu0 %v528
    %926 = vmatpush.bf16.msra.mxu0 %v508
    %927 = vmatpush.bf16.msra.mxu0 %v488
    %928 = vmatpush.bf16.msra.mxu0 %v468
    %929 = vmatmul.bf16.gmra.mxu0 %v620
    %v930 = vpop.f32.mrf.mxu0
    %v931 = vadd.f32 0.0, %v930
    %v932 = vpop.f32.mrf.mxu0
    %v933 = vadd.f32 0.0, %v932
    %934 = vmatmul.bf16.gmra.mxu0 %v623
    %v935 = vpop.f32.mrf.mxu0
    %v936 = vadd.f32 0.0, %v935
    %v937 = vpop.f32.mrf.mxu0
    %v938 = vadd.f32 0.0, %v937
    %939 = vmatmul.bf16.gmra.mxu0 %v626
    %v940 = vpop.f32.mrf.mxu0
    %v941 = vadd.f32 0.0, %v940
    %v942 = vpop.f32.mrf.mxu0
    %v943 = vadd.f32 0.0, %v942
    %944 = vmatmul.bf16.gmra.mxu0 %v629
    %v945 = vpop.f32.mrf.mxu0
    %v946 = vadd.f32 0.0, %v945
    %v947 = vpop.f32.mrf.mxu0
    %v948 = vadd.f32 0.0, %v947
    %949 = vdwg.mxu0
    %950 = vmatpush.bf16.msra.mxu0 0
    %951 = vmatpush.bf16.msra.mxu0 0
    %952 = vmatpush.bf16.msra.mxu0 0
    %953 = vmatpush.bf16.msra.mxu0 0
    %954 = vmatpush.bf16.msra.mxu0 %v529
    %955 = vmatpush.bf16.msra.mxu0 %v509
    %956 = vmatpush.bf16.msra.mxu0 %v489
    %957 = vmatpush.bf16.msra.mxu0 %v469
    %958 = vmatmul.bf16.gmra.mxu0 %v620
    %v959 = vpop.f32.mrf.mxu0
    %v960 = vadd.f32 0.0, %v959
    %v961 = vpop.f32.mrf.mxu0
    %v962 = vadd.f32 0.0, %v961
    %963 = vmatmul.bf16.gmra.mxu0 %v623
    %v964 = vpop.f32.mrf.mxu0
    %v965 = vadd.f32 0.0, %v964
    %v966 = vpop.f32.mrf.mxu0
    %v967 = vadd.f32 0.0, %v966
    %968 = vmatmul.bf16.gmra.mxu0 %v626
    %v969 = vpop.f32.mrf.mxu0
    %v970 = vadd.f32 0.0, %v969
    %v971 = vpop.f32.mrf.mxu0
    %v972 = vadd.f32 0.0, %v971
    %973 = vmatmul.bf16.gmra.mxu0 %v629
    %v974 = vpop.f32.mrf.mxu0
    %v975 = vadd.f32 0.0, %v974
    %v976 = vpop.f32.mrf.mxu0
    %v977 = vadd.f32 0.0, %v976
    %978 = vdwg.mxu0
    %979 = vmatpush.bf16.msra.mxu0 0
    %980 = vmatpush.bf16.msra.mxu0 0
    %981 = vmatpush.bf16.msra.mxu0 0
    %982 = vmatpush.bf16.msra.mxu0 0
    %983 = vmatpush.bf16.msra.mxu0 %v530
    %984 = vmatpush.bf16.msra.mxu0 %v510
    %985 = vmatpush.bf16.msra.mxu0 %v490
    %986 = vmatpush.bf16.msra.mxu0 %v470
    %987 = vmatmul.bf16.gmra.mxu0 %v620
    %v988 = vpop.f32.mrf.mxu0
    %v989 = vadd.f32 0.0, %v988
    %v990 = vpop.f32.mrf.mxu0
    %v991 = vadd.f32 0.0, %v990
    %992 = vmatmul.bf16.gmra.mxu0 %v623
    %v993 = vpop.f32.mrf.mxu0
    %v994 = vadd.f32 0.0, %v993
    %v995 = vpop.f32.mrf.mxu0
    %v996 = vadd.f32 0.0, %v995
    %997 = vmatmul.bf16.gmra.mxu0 %v626
    %v998 = vpop.f32.mrf.mxu0
    %v999 = vadd.f32 0.0, %v998
    %v1000 = vpop.f32.mrf.mxu0
    %v1001 = vadd.f32 0.0, %v1000
    %1002 = vmatmul.bf16.gmra.mxu0 %v629
    %v1003 = vpop.f32.mrf.mxu0
    %v1004 = vadd.f32 0.0, %v1003
    %v1005 = vpop.f32.mrf.mxu0
    %v1006 = vadd.f32 0.0, %v1005
    %1007 = vdwg.mxu0
    %1008 = vmatpush.bf16.msra.mxu0 0
    %1009 = vmatpush.bf16.msra.mxu0 0
    %1010 = vmatpush.bf16.msra.mxu0 0
    %1011 = vmatpush.bf16.msra.mxu0 0
    %1012 = vmatpush.bf16.msra.mxu0 %v531
    %1013 = vmatpush.bf16.msra.mxu0 %v511
    %1014 = vmatpush.bf16.msra.mxu0 %v491
    %1015 = vmatpush.bf16.msra.mxu0 %v471
    %1016 = vmatmul.bf16.gmra.mxu0 %v620
    %v1017 = vpop.f32.mrf.mxu0
    %v1018 = vadd.f32 0.0, %v1017
    %v1019 = vpop.f32.mrf.mxu0
    %v1020 = vadd.f32 0.0, %v1019
    %1021 = vmatmul.bf16.gmra.mxu0 %v623
    %v1022 = vpop.f32.mrf.mxu0
    %v1023 = vadd.f32 0.0, %v1022
    %v1024 = vpop.f32.mrf.mxu0
    %v1025 = vadd.f32 0.0, %v1024
    %1026 = vmatmul.bf16.gmra.mxu0 %v626
    %v1027 = vpop.f32.mrf.mxu0
    %v1028 = vadd.f32 0.0, %v1027
    %v1029 = vpop.f32.mrf.mxu0
    %v1030 = vadd.f32 0.0, %v1029
    %1031 = vmatmul.bf16.gmra.mxu0 %v629
    %v1032 = vpop.f32.mrf.mxu0
    %v1033 = vadd.f32 0.0, %v1032
    %v1034 = vpop.f32.mrf.mxu0
    %v1035 = vadd.f32 0.0, %v1034
    %1036 = vdwg.mxu0
    %1037 = vmatpush.bf16.msra.mxu0 0
    %1038 = vmatpush.bf16.msra.mxu0 0
    %1039 = vmatpush.bf16.msra.mxu0 0
    %1040 = vmatpush.bf16.msra.mxu0 0
    %1041 = vmatpush.bf16.msra.mxu0 %v532
    %1042 = vmatpush.bf16.msra.mxu0 %v512
    %1043 = vmatpush.bf16.msra.mxu0 %v492
    %1044 = vmatpush.bf16.msra.mxu0 %v472
    %1045 = vmatmul.bf16.gmra.mxu0 %v620
    %v1046 = vpop.f32.mrf.mxu0
    %v1047 = vadd.f32 0.0, %v1046
    %v1048 = vpop.f32.mrf.mxu0
    %v1049 = vadd.f32 0.0, %v1048
    %1050 = vmatmul.bf16.gmra.mxu0 %v623
    %v1051 = vpop.f32.mrf.mxu0
    %v1052 = vadd.f32 0.0, %v1051
    %v1053 = vpop.f32.mrf.mxu0
    %v1054 = vadd.f32 0.0, %v1053
    %1055 = vmatmul.bf16.gmra.mxu0 %v626
    %v1056 = vpop.f32.mrf.mxu0
    %v1057 = vadd.f32 0.0, %v1056
    %v1058 = vpop.f32.mrf.mxu0
    %v1059 = vadd.f32 0.0, %v1058
    %1060 = vmatmul.bf16.gmra.mxu0 %v629
    %v1061 = vpop.f32.mrf.mxu0
    %v1062 = vadd.f32 0.0, %v1061
    %v1063 = vpop.f32.mrf.mxu0
    %v1064 = vadd.f32 0.0, %v1063
    %1065 = vdwg.mxu0
    %1066 = vmatpush.bf16.msra.mxu0 0
    %1067 = vmatpush.bf16.msra.mxu0 0
    %1068 = vmatpush.bf16.msra.mxu0 0
    %1069 = vmatpush.bf16.msra.mxu0 0
    %1070 = vmatpush.bf16.msra.mxu0 %v533
    %1071 = vmatpush.bf16.msra.mxu0 %v513
    %1072 = vmatpush.bf16.msra.mxu0 %v493
    %1073 = vmatpush.bf16.msra.mxu0 %v473
    %1074 = vmatmul.bf16.gmra.mxu0 %v620
    %v1075 = vpop.f32.mrf.mxu0
    %v1076 = vadd.f32 0.0, %v1075
    %v1077 = vpop.f32.mrf.mxu0
    %v1078 = vadd.f32 0.0, %v1077
    %1079 = vmatmul.bf16.gmra.mxu0 %v623
    %v1080 = vpop.f32.mrf.mxu0
    %v1081 = vadd.f32 0.0, %v1080
    %v1082 = vpop.f32.mrf.mxu0
    %v1083 = vadd.f32 0.0, %v1082
    %1084 = vmatmul.bf16.gmra.mxu0 %v626
    %v1085 = vpop.f32.mrf.mxu0
    %v1086 = vadd.f32 0.0, %v1085
    %v1087 = vpop.f32.mrf.mxu0
    %v1088 = vadd.f32 0.0, %v1087
    %1089 = vmatmul.bf16.gmra.mxu0 %v629
    %v1090 = vpop.f32.mrf.mxu0
    %v1091 = vadd.f32 0.0, %v1090
    %v1092 = vpop.f32.mrf.mxu0
    %v1093 = vadd.f32 0.0, %v1092
    %1094 = vdwg.mxu0
    %1095 = vmatpush.bf16.msra.mxu0 0
    %1096 = vmatpush.bf16.msra.mxu0 0
    %1097 = vmatpush.bf16.msra.mxu0 0
    %1098 = vmatpush.bf16.msra.mxu0 0
    %1099 = vmatpush.bf16.msra.mxu0 %v534
    %1100 = vmatpush.bf16.msra.mxu0 %v514
    %1101 = vmatpush.bf16.msra.mxu0 %v494
    %1102 = vmatpush.bf16.msra.mxu0 %v474
    %1103 = vmatmul.bf16.gmra.mxu0 %v620
    %v1104 = vpop.f32.mrf.mxu0
    %v1105 = vadd.f32 0.0, %v1104
    %v1106 = vpop.f32.mrf.mxu0
    %v1107 = vadd.f32 0.0, %v1106
    %1108 = vmatmul.bf16.gmra.mxu0 %v623
    %v1109 = vpop.f32.mrf.mxu0
    %v1110 = vadd.f32 0.0, %v1109
    %v1111 = vpop.f32.mrf.mxu0
    %v1112 = vadd.f32 0.0, %v1111
    %1113 = vmatmul.bf16.gmra.mxu0 %v626
    %v1114 = vpop.f32.mrf.mxu0
    %v1115 = vadd.f32 0.0, %v1114
    %v1116 = vpop.f32.mrf.mxu0
    %v1117 = vadd.f32 0.0, %v1116
    %1118 = vmatmul.bf16.gmra.mxu0 %v629
    %v1119 = vpop.f32.mrf.mxu0
    %v1120 = vadd.f32 0.0, %v1119
    %v1121 = vpop.f32.mrf.mxu0
    %v1122 = vadd.f32 0.0, %v1121
    %1123 = vdwg.mxu0
    %1124 = vmatpush.bf16.msra.mxu0 0
    %1125 = vmatpush.bf16.msra.mxu0 0
    %1126 = vmatpush.bf16.msra.mxu0 0
    %1127 = vmatpush.bf16.msra.mxu0 0
    %1128 = vmatpush.bf16.msra.mxu0 %v535
    %1129 = vmatpush.bf16.msra.mxu0 %v515
    %1130 = vmatpush.bf16.msra.mxu0 %v495
    %1131 = vmatpush.bf16.msra.mxu0 %v475
    %1132 = vmatmul.bf16.gmra.mxu0 %v620
    %v1133 = vpop.f32.mrf.mxu0
    %v1134 = vadd.f32 0.0, %v1133
    %v1135 = vpop.f32.mrf.mxu0
    %v1136 = vadd.f32 0.0, %v1135
    %1137 = vmatmul.bf16.gmra.mxu0 %v623
    %v1138 = vpop.f32.mrf.mxu0
    %v1139 = vadd.f32 0.0, %v1138
    %v1140 = vpop.f32.mrf.mxu0
    %v1141 = vadd.f32 0.0, %v1140
    %1142 = vmatmul.bf16.gmra.mxu0 %v626
    %v1143 = vpop.f32.mrf.mxu0
    %v1144 = vadd.f32 0.0, %v1143
    %v1145 = vpop.f32.mrf.mxu0
    %v1146 = vadd.f32 0.0, %v1145
    %1147 = vmatmul.bf16.gmra.mxu0 %v629
    %v1148 = vpop.f32.mrf.mxu0
    %v1149 = vadd.f32 0.0, %v1148
    %v1150 = vpop.f32.mrf.mxu0
    %v1151 = vadd.f32 0.0, %v1150
    %1152 = vdwg.mxu0
    %1153 = vmatpush.bf16.msra.mxu0 0
    %1154 = vmatpush.bf16.msra.mxu0 0
    %1155 = vmatpush.bf16.msra.mxu0 0
    %1156 = vmatpush.bf16.msra.mxu0 0
    %1157 = vmatpush.bf16.msra.mxu0 %v536
    %1158 = vmatpush.bf16.msra.mxu0 %v516
    %1159 = vmatpush.bf16.msra.mxu0 %v496
    %1160 = vmatpush.bf16.msra.mxu0 %v476
    %1161 = vmatmul.bf16.gmra.mxu0 %v620
    %v1162 = vpop.f32.mrf.mxu0
    %v1163 = vadd.f32 0.0, %v1162
    %v1164 = vpop.f32.mrf.mxu0
    %v1165 = vadd.f32 0.0, %v1164
    %1166 = vmatmul.bf16.gmra.mxu0 %v623
    %v1167 = vpop.f32.mrf.mxu0
    %v1168 = vadd.f32 0.0, %v1167
    %v1169 = vpop.f32.mrf.mxu0
    %v1170 = vadd.f32 0.0, %v1169
    %1171 = vmatmul.bf16.gmra.mxu0 %v626
    %v1172 = vpop.f32.mrf.mxu0
    %v1173 = vadd.f32 0.0, %v1172
    %v1174 = vpop.f32.mrf.mxu0
    %v1175 = vadd.f32 0.0, %v1174
    %1176 = vmatmul.bf16.gmra.mxu0 %v629
    %v1177 = vpop.f32.mrf.mxu0
    %v1178 = vadd.f32 0.0, %v1177
    %v1179 = vpop.f32.mrf.mxu0
    %v1180 = vadd.f32 0.0, %v1179
    %1181 = vdwg.mxu0
    %1182 = vmatpush.bf16.msra.mxu0 0
    %1183 = vmatpush.bf16.msra.mxu0 0
    %1184 = vmatpush.bf16.msra.mxu0 0
    %1185 = vmatpush.bf16.msra.mxu0 0
    %1186 = vmatpush.bf16.msra.mxu0 %v537
    %1187 = vmatpush.bf16.msra.mxu0 %v517
    %1188 = vmatpush.bf16.msra.mxu0 %v497
    %1189 = vmatpush.bf16.msra.mxu0 %v477
    %1190 = vmatmul.bf16.gmra.mxu0 %v620
    %v1191 = vpop.f32.mrf.mxu0
    %v1192 = vadd.f32 0.0, %v1191
    %v1193 = vpop.f32.mrf.mxu0
    %v1194 = vadd.f32 0.0, %v1193
    %1195 = vmatmul.bf16.gmra.mxu0 %v623
    %v1196 = vpop.f32.mrf.mxu0
    %v1197 = vadd.f32 0.0, %v1196
    %v1198 = vpop.f32.mrf.mxu0
    %v1199 = vadd.f32 0.0, %v1198
    %1200 = vmatmul.bf16.gmra.mxu0 %v626
    %v1201 = vpop.f32.mrf.mxu0
    %v1202 = vadd.f32 0.0, %v1201
    %v1203 = vpop.f32.mrf.mxu0
    %v1204 = vadd.f32 0.0, %v1203
    %1205 = vmatmul.bf16.gmra.mxu0 %v629
    %v1206 = vpop.f32.mrf.mxu0
    %v1207 = vadd.f32 0.0, %v1206
    %v1208 = vpop.f32.mrf.mxu0
    %v1209 = vadd.f32 0.0, %v1208
    %1210 = vdwg.mxu0
    %v1211 = vpack.c.bf16 %v670, %v641
    %v1212 = vpack.c.bf16 %v728, %v699
    %v1213 = vpack.c.bf16 %v786, %v757
    %v1214 = vpack.c.bf16 %v844, %v815
    %v1215 = vpack.c.bf16 %v902, %v873
    %v1216 = vpack.c.bf16 %v960, %v931
    %v1217 = vpack.c.bf16 %v1018, %v989
    %v1218 = vpack.c.bf16 %v1076, %v1047
    %v1219 = vpack.c.bf16 %v1134, %v1105
    %v1220 = vpack.c.bf16 %v1192, %v1163
    %v1221 = vpack.c.bf16 %v672, %v643
    %v1222 = vpack.c.bf16 %v730, %v701
    %v1223 = vpack.c.bf16 %v788, %v759
    %v1224 = vpack.c.bf16 %v846, %v817
    %v1225 = vpack.c.bf16 %v904, %v875
    %v1226 = vpack.c.bf16 %v962, %v933
    %v1227 = vpack.c.bf16 %v1020, %v991
    %v1228 = vpack.c.bf16 %v1078, %v1049
    %v1229 = vpack.c.bf16 %v1136, %v1107
    %v1230 = vpack.c.bf16 %v1194, %v1165
    %v1231 = vpack.c.bf16 %v675, %v646
    %v1232 = vpack.c.bf16 %v733, %v704
    %v1233 = vpack.c.bf16 %v791, %v762
    %v1234 = vpack.c.bf16 %v849, %v820
    %v1235 = vpack.c.bf16 %v907, %v878
    %v1236 = vpack.c.bf16 %v965, %v936
    %v1237 = vpack.c.bf16 %v1023, %v994
    %v1238 = vpack.c.bf16 %v1081, %v1052
    %v1239 = vpack.c.bf16 %v1139, %v1110
    %v1240 = vpack.c.bf16 %v1197, %v1168
    %v1241 = vpack.c.bf16 %v677, %v648
    %v1242 = vpack.c.bf16 %v735, %v706
    %v1243 = vpack.c.bf16 %v793, %v764
    %v1244 = vpack.c.bf16 %v851, %v822
    %v1245 = vpack.c.bf16 %v909, %v880
    %v1246 = vpack.c.bf16 %v967, %v938
    %v1247 = vpack.c.bf16 %v1025, %v996
    %v1248 = vpack.c.bf16 %v1083, %v1054
    %v1249 = vpack.c.bf16 %v1141, %v1112
    %v1250 = vpack.c.bf16 %v1199, %v1170
    %v1251 = vpack.c.bf16 %v680, %v651
    %v1252 = vpack.c.bf16 %v738, %v709
    %v1253 = vpack.c.bf16 %v796, %v767
    %v1254 = vpack.c.bf16 %v854, %v825
    %v1255 = vpack.c.bf16 %v912, %v883
    %v1256 = vpack.c.bf16 %v970, %v941
    %v1257 = vpack.c.bf16 %v1028, %v999
    %v1258 = vpack.c.bf16 %v1086, %v1057
    %v1259 = vpack.c.bf16 %v1144, %v1115
    %v1260 = vpack.c.bf16 %v1202, %v1173
    %v1261 = vpack.c.bf16 %v682, %v653
    %v1262 = vpack.c.bf16 %v740, %v711
    %v1263 = vpack.c.bf16 %v798, %v769
    %v1264 = vpack.c.bf16 %v856, %v827
    %v1265 = vpack.c.bf16 %v914, %v885
    %v1266 = vpack.c.bf16 %v972, %v943
    %v1267 = vpack.c.bf16 %v1030, %v1001
    %v1268 = vpack.c.bf16 %v1088, %v1059
    %v1269 = vpack.c.bf16 %v1146, %v1117
    %v1270 = vpack.c.bf16 %v1204, %v1175
    %v1271 = vpack.c.bf16 %v685, %v656
    %v1272 = vpack.c.bf16 %v743, %v714
    %v1273 = vpack.c.bf16 %v801, %v772
    %v1274 = vpack.c.bf16 %v859, %v830
    %v1275 = vpack.c.bf16 %v917, %v888
    %v1276 = vpack.c.bf16 %v975, %v946
    %v1277 = vpack.c.bf16 %v1033, %v1004
    %v1278 = vpack.c.bf16 %v1091, %v1062
    %v1279 = vpack.c.bf16 %v1149, %v1120
    %v1280 = vpack.c.bf16 %v1207, %v1178
    %v1281 = vpack.c.bf16 %v687, %v658
    %v1282 = vpack.c.bf16 %v745, %v716
    %v1283 = vpack.c.bf16 %v803, %v774
    %v1284 = vpack.c.bf16 %v861, %v832
    %v1285 = vpack.c.bf16 %v919, %v890
    %v1286 = vpack.c.bf16 %v977, %v948
    %v1287 = vpack.c.bf16 %v1035, %v1006
    %v1288 = vpack.c.bf16 %v1093, %v1064
    %v1289 = vpack.c.bf16 %v1151, %v1122
    %v1290 = vpack.c.bf16 %v1209, %v1180
    %v1291 = vld [vmem:[%s5] sm:$0xf]
    %v1292 = vld [vmem:[%s5 + $0x4] sm:$0xf]
    %v1293 = vld [vmem:[%s5 + $0x8] sm:$0xf]
    %v1294 = vld [vmem:[%s5 + $0xc] sm:$0xf]
    %v1295 = vld [vmem:[%s5 + $0x10] sm:$0xf]
    %v1296 = vld [vmem:[%s5 + $0x14] sm:$0xf]
    %v1297 = vld [vmem:[%s5 + $0x18] sm:$0xf]
    %v1298 = vld [vmem:[%s5 + $0x1c] sm:$0xf]
    %v1299 = vld [vmem:[%s5 + $0x20] sm:$0xf]
    %v1300 = vld [vmem:[%s5 + $0x24] sm:$0xf]
    %v1301 = vld [vmem:[%s5 + $0x28] sm:$0xf]
    %v1302 = vld [vmem:[%s5 + $0x2c] sm:$0xf]
    %v1303 = vld [vmem:[%s5 + $0x30] sm:$0xf]
    %v1304 = vld [vmem:[%s5 + $0x34] sm:$0xf]
    %v1305 = vld [vmem:[%s5 + $0x38] sm:$0xf]
    %v1306 = vld [vmem:[%s5 + $0x3c] sm:$0xf]
    %v1315 = vunpack.c.l.b16 %v1211
    %v1316 = vunpack.c.l.b16 %v1221
    %v1317 = vunpack.c.l.b16 %v1231
    %v1318 = vunpack.c.l.b16 %v1241
    %v1319 = vunpack.c.l.b16 %v1251
    %v1320 = vunpack.c.l.b16 %v1261
    %v1321 = vunpack.c.l.b16 %v1271
    %v1322 = vunpack.c.l.b16 %v1281
    %v1323 = vpack.c.b16 %v1316, %v1315
    %v1324 = vpack.c.b16 %v1318, %v1317
    %v1325 = vpack.c.b16 %v1320, %v1319
    %v1326 = vpack.c.b16 %v1322, %v1321
    %v1347 = vunpack.c.l.b16 %v1291
    %v1348 = vunpack.c.l.b16 %v1292
    %v1349 = vunpack.c.l.b16 %v1293
    %v1350 = vunpack.c.l.b16 %v1294
    %v1351 = vunpack.c.l.b16 %v1295
    %v1352 = vunpack.c.l.b16 %v1296
    %v1353 = vunpack.c.l.b16 %v1297
    %v1354 = vunpack.c.l.b16 %v1298
    %v1355 = vunpack.c.l.b16 %v1299
    %v1356 = vunpack.c.l.b16 %v1300
    %v1357 = vunpack.c.l.b16 %v1301
    %v1358 = vunpack.c.l.b16 %v1302
    %v1359 = vunpack.c.l.b16 %v1303
    %v1360 = vunpack.c.l.b16 %v1304
    %v1361 = vunpack.c.l.b16 %v1305
    %v1362 = vunpack.c.l.b16 %v1306
    %v1363 = vpack.c.b16 %v1348, %v1347
    %v1364 = vpack.c.b16 %v1350, %v1349
    %v1365 = vpack.c.b16 %v1352, %v1351
    %v1366 = vpack.c.b16 %v1354, %v1353
    %v1367 = vpack.c.b16 %v1356, %v1355
    %v1368 = vpack.c.b16 %v1358, %v1357
    %v1369 = vpack.c.b16 %v1360, %v1359
    %v1370 = vpack.c.b16 %v1362, %v1361
    %1379 = vmatpush.bf16.msra.mxu0 %v1370
    %1380 = vmatpush.bf16.msra.mxu0 %v1369
    %1381 = vmatpush.bf16.msra.mxu0 %v1368
    %1382 = vmatpush.bf16.msra.mxu0 %v1367
    %1383 = vmatpush.bf16.msra.mxu0 %v1366
    %1384 = vmatpush.bf16.msra.mxu0 %v1365
    %1385 = vmatpush.bf16.msra.mxu0 %v1364
    %1386 = vmatpush.bf16.msra.mxu0 %v1363
    %1387 = vmatmul.bf16.gmra.mxu0 %v1323
    %v1388 = vpop.f32.mrf.mxu0
    %v1389 = vadd.f32 0.0, %v1388
    %v1390 = vpop.f32.mrf.mxu0
    %v1391 = vadd.f32 0.0, %v1390
    %1392 = vmatmul.bf16.gmra.mxu0 %v1324
    %v1393 = vpop.f32.mrf.mxu0
    %v1394 = vadd.f32 0.0, %v1393
    %v1395 = vpop.f32.mrf.mxu0
    %v1396 = vadd.f32 0.0, %v1395
    %1397 = vmatmul.bf16.gmra.mxu0 %v1325
    %v1398 = vpop.f32.mrf.mxu0
    %v1399 = vadd.f32 0.0, %v1398
    %v1400 = vpop.f32.mrf.mxu0
    %v1401 = vadd.f32 0.0, %v1400
    %1402 = vmatmul.bf16.gmra.mxu0 %v1326
    %v1403 = vpop.f32.mrf.mxu0
    %v1404 = vadd.f32 0.0, %v1403
    %v1405 = vpop.f32.mrf.mxu0
    %v1406 = vadd.f32 0.0, %v1405
    %1407 = vdwg.mxu0
    %v1408 = vunpack.c.h.b16 %v1211
    %v1409 = vunpack.c.h.b16 %v1221
    %v1410 = vunpack.c.h.b16 %v1231
    %v1411 = vunpack.c.h.b16 %v1241
    %v1412 = vunpack.c.h.b16 %v1251
    %v1413 = vunpack.c.h.b16 %v1261
    %v1414 = vunpack.c.h.b16 %v1271
    %v1415 = vunpack.c.h.b16 %v1281
    %v1416 = vpack.c.b16 %v1409, %v1408
    %v1417 = vpack.c.b16 %v1411, %v1410
    %v1418 = vpack.c.b16 %v1413, %v1412
    %v1419 = vpack.c.b16 %v1415, %v1414
    %1424 = vmatpush.bf16.msra.mxu0 %v1370
    %1425 = vmatpush.bf16.msra.mxu0 %v1369
    %1426 = vmatpush.bf16.msra.mxu0 %v1368
    %1427 = vmatpush.bf16.msra.mxu0 %v1367
    %1428 = vmatpush.bf16.msra.mxu0 %v1366
    %1429 = vmatpush.bf16.msra.mxu0 %v1365
    %1430 = vmatpush.bf16.msra.mxu0 %v1364
    %1431 = vmatpush.bf16.msra.mxu0 %v1363
    %1432 = vmatmul.bf16.gmra.mxu0 %v1416
    %v1433 = vpop.f32.mrf.mxu0
    %v1434 = vadd.f32 0.0, %v1433
    %v1435 = vpop.f32.mrf.mxu0
    %v1436 = vadd.f32 0.0, %v1435
    %1437 = vmatmul.bf16.gmra.mxu0 %v1417
    %v1438 = vpop.f32.mrf.mxu0
    %v1439 = vadd.f32 0.0, %v1438
    %v1440 = vpop.f32.mrf.mxu0
    %v1441 = vadd.f32 0.0, %v1440
    %1442 = vmatmul.bf16.gmra.mxu0 %v1418
    %v1443 = vpop.f32.mrf.mxu0
    %v1444 = vadd.f32 0.0, %v1443
    %v1445 = vpop.f32.mrf.mxu0
    %v1446 = vadd.f32 0.0, %v1445
    %1447 = vmatmul.bf16.gmra.mxu0 %v1419
    %v1448 = vpop.f32.mrf.mxu0
    %v1449 = vadd.f32 0.0, %v1448
    %v1450 = vpop.f32.mrf.mxu0
    %v1451 = vadd.f32 0.0, %v1450
    %1452 = vdwg.mxu0
    %v1461 = vunpack.c.l.b16 %v1212
    %v1462 = vunpack.c.l.b16 %v1222
    %v1463 = vunpack.c.l.b16 %v1232
    %v1464 = vunpack.c.l.b16 %v1242
    %v1465 = vunpack.c.l.b16 %v1252
    %v1466 = vunpack.c.l.b16 %v1262
    %v1467 = vunpack.c.l.b16 %v1272
    %v1468 = vunpack.c.l.b16 %v1282
    %v1469 = vpack.c.b16 %v1462, %v1461
    %v1470 = vpack.c.b16 %v1464, %v1463
    %v1471 = vpack.c.b16 %v1466, %v1465
    %v1472 = vpack.c.b16 %v1468, %v1467
    %1477 = vmatpush.bf16.msra.mxu0 %v1370
    %1478 = vmatpush.bf16.msra.mxu0 %v1369
    %1479 = vmatpush.bf16.msra.mxu0 %v1368
    %1480 = vmatpush.bf16.msra.mxu0 %v1367
    %1481 = vmatpush.bf16.msra.mxu0 %v1366
    %1482 = vmatpush.bf16.msra.mxu0 %v1365
    %1483 = vmatpush.bf16.msra.mxu0 %v1364
    %1484 = vmatpush.bf16.msra.mxu0 %v1363
    %1485 = vmatmul.bf16.gmra.mxu0 %v1469
    %v1486 = vpop.f32.mrf.mxu0
    %v1487 = vadd.f32 0.0, %v1486
    %v1488 = vpop.f32.mrf.mxu0
    %v1489 = vadd.f32 0.0, %v1488
    %1490 = vmatmul.bf16.gmra.mxu0 %v1470
    %v1491 = vpop.f32.mrf.mxu0
    %v1492 = vadd.f32 0.0, %v1491
    %v1493 = vpop.f32.mrf.mxu0
    %v1494 = vadd.f32 0.0, %v1493
    %1495 = vmatmul.bf16.gmra.mxu0 %v1471
    %v1496 = vpop.f32.mrf.mxu0
    %v1497 = vadd.f32 0.0, %v1496
    %v1498 = vpop.f32.mrf.mxu0
    %v1499 = vadd.f32 0.0, %v1498
    %1500 = vmatmul.bf16.gmra.mxu0 %v1472
    %v1501 = vpop.f32.mrf.mxu0
    %v1502 = vadd.f32 0.0, %v1501
    %v1503 = vpop.f32.mrf.mxu0
    %v1504 = vadd.f32 0.0, %v1503
    %1505 = vdwg.mxu0
    %v1506 = vmax.f32 %v1434, %v1487
    %v1507 = vmax.f32 %v1436, %v1489
    %v1508 = vmax.f32 %v1439, %v1492
    %v1509 = vmax.f32 %v1441, %v1494
    %v1510 = vmax.f32 %v1444, %v1497
    %v1511 = vmax.f32 %v1446, %v1499
    %v1512 = vmax.f32 %v1449, %v1502
    %v1513 = vmax.f32 %v1451, %v1504
    %v1514 = vunpack.c.h.b16 %v1212
    %v1515 = vunpack.c.h.b16 %v1222
    %v1516 = vunpack.c.h.b16 %v1232
    %v1517 = vunpack.c.h.b16 %v1242
    %v1518 = vunpack.c.h.b16 %v1252
    %v1519 = vunpack.c.h.b16 %v1262
    %v1520 = vunpack.c.h.b16 %v1272
    %v1521 = vunpack.c.h.b16 %v1282
    %v1522 = vpack.c.b16 %v1515, %v1514
    %v1523 = vpack.c.b16 %v1517, %v1516
    %v1524 = vpack.c.b16 %v1519, %v1518
    %v1525 = vpack.c.b16 %v1521, %v1520
    %1530 = vmatpush.bf16.msra.mxu0 %v1370
    %1531 = vmatpush.bf16.msra.mxu0 %v1369
    %1532 = vmatpush.bf16.msra.mxu0 %v1368
    %1533 = vmatpush.bf16.msra.mxu0 %v1367
    %1534 = vmatpush.bf16.msra.mxu0 %v1366
    %1535 = vmatpush.bf16.msra.mxu0 %v1365
    %1536 = vmatpush.bf16.msra.mxu0 %v1364
    %1537 = vmatpush.bf16.msra.mxu0 %v1363
    %1538 = vmatmul.bf16.gmra.mxu0 %v1522
    %v1539 = vpop.f32.mrf.mxu0
    %v1540 = vadd.f32 0.0, %v1539
    %v1541 = vpop.f32.mrf.mxu0
    %v1542 = vadd.f32 0.0, %v1541
    %1543 = vmatmul.bf16.gmra.mxu0 %v1523
    %v1544 = vpop.f32.mrf.mxu0
    %v1545 = vadd.f32 0.0, %v1544
    %v1546 = vpop.f32.mrf.mxu0
    %v1547 = vadd.f32 0.0, %v1546
    %1548 = vmatmul.bf16.gmra.mxu0 %v1524
    %v1549 = vpop.f32.mrf.mxu0
    %v1550 = vadd.f32 0.0, %v1549
    %v1551 = vpop.f32.mrf.mxu0
    %v1552 = vadd.f32 0.0, %v1551
    %1553 = vmatmul.bf16.gmra.mxu0 %v1525
    %v1554 = vpop.f32.mrf.mxu0
    %v1555 = vadd.f32 0.0, %v1554
    %v1556 = vpop.f32.mrf.mxu0
    %v1557 = vadd.f32 0.0, %v1556
    %1558 = vdwg.mxu0
    %v1559 = vmax.f32 %v1506, %v1540
    %v1560 = vmax.f32 %v1507, %v1542
    %v1561 = vmax.f32 %v1508, %v1545
    %v1562 = vmax.f32 %v1509, %v1547
    %v1563 = vmax.f32 %v1510, %v1550
    %v1564 = vmax.f32 %v1511, %v1552
    %v1565 = vmax.f32 %v1512, %v1555
    %v1566 = vmax.f32 %v1513, %v1557
    %vm1567 = vcmp.gt.f32.partialorder %v1559, %v1389
    %vm1568 = vcmp.gt.f32.partialorder %v1560, %v1391
    %vm1569 = vcmp.gt.f32.partialorder %v1561, %v1394
    %vm1570 = vcmp.gt.f32.partialorder %v1562, %v1396
    %vm1571 = vcmp.gt.f32.partialorder %v1563, %v1399
    %vm1572 = vcmp.gt.f32.partialorder %v1564, %v1401
    %vm1573 = vcmp.gt.f32.partialorder %v1565, %v1404
    %vm1574 = vcmp.gt.f32.partialorder %v1566, %v1406
    %v1575 = vld [vmem:[%s0] sm:$0xff]
    %v1576 = vld [vmem:[%s0 + $0x8] sm:$0xff]
    %v1577 = vld [vmem:[%s0 + $0x10] sm:$0xff]
    %v1578 = vld [vmem:[%s0 + $0x18] sm:$0xff]
    %v1579 = vld [vmem:[%s0 + $0x20] sm:$0xff]
    %v1580 = vld [vmem:[%s0 + $0x28] sm:$0xff]
    %v1581 = vld [vmem:[%s0 + $0x30] sm:$0xff]
    %v1582 = vld [vmem:[%s0 + $0x38] sm:$0xff]
    %v1583 = vsel %vm1567, %v1575, 0.0
    %v1584 = vsel %vm1568, %v1576, 0.0
    %v1585 = vsel %vm1569, %v1577, 0.0
    %v1586 = vsel %vm1570, %v1578, 0.0
    %v1587 = vsel %vm1571, %v1579, 0.0
    %v1588 = vsel %vm1572, %v1580, 0.0
    %v1589 = vsel %vm1573, %v1581, 0.0
    %v1590 = vsel %vm1574, %v1582, 0.0
    %vm1591 = vcmp.gt.f32.partialorder %v1583, 0.0
    %vm1592 = vcmp.gt.f32.partialorder %v1584, 0.0
    %vm1593 = vcmp.gt.f32.partialorder %v1585, 0.0
    %vm1594 = vcmp.gt.f32.partialorder %v1586, 0.0
    %vm1595 = vcmp.gt.f32.partialorder %v1587, 0.0
    %vm1596 = vcmp.gt.f32.partialorder %v1588, 0.0
    %vm1597 = vcmp.gt.f32.partialorder %v1589, 0.0
    %vm1598 = vcmp.gt.f32.partialorder %v1590, 0.0
    %v1599 = vsel %vm1591, 1, 0
    %v1600 = vsel %vm1592, 1, 0
    %v1601 = vsel %vm1593, 1, 0
    %v1602 = vsel %vm1594, 1, 0
    %v1603 = vsel %vm1595, 1, 0
    %v1604 = vsel %vm1596, 1, 0
    %v1605 = vsel %vm1597, 1, 0
    %v1606 = vsel %vm1598, 1, 0
    %v1607 = vcvt.s32.f32 %v1599
    %v1608 = vcvt.s32.f32 %v1600
    %v1609 = vcvt.s32.f32 %v1601
    %v1610 = vcvt.s32.f32 %v1602
    %v1611 = vcvt.s32.f32 %v1603
    %v1612 = vcvt.s32.f32 %v1604
    %v1613 = vcvt.s32.f32 %v1605
    %v1614 = vcvt.s32.f32 %v1606
    %1615 = vst [vmem:[#allocation12] sm:$0xff] %v1607
    %1616 = vst [vmem:[#allocation12 + $0x8] sm:$0xff] %v1608
    %1617 = vst [vmem:[#allocation12 + $0x10] sm:$0xff] %v1609
    %1618 = vst [vmem:[#allocation12 + $0x18] sm:$0xff] %v1610
    %1619 = vst [vmem:[#allocation12 + $0x20] sm:$0xff] %v1611
    %1620 = vst [vmem:[#allocation12 + $0x28] sm:$0xff] %v1612
    %1621 = vst [vmem:[#allocation12 + $0x30] sm:$0xff] %v1613
    %1622 = vst [vmem:[#allocation12 + $0x38] sm:$0xff] %v1614
    %v1623 = vld [vmem:[%s6] sm:$0xf]
    %v1624 = vld [vmem:[%s6 + $0x4] sm:$0xf]
    %v1625 = vld [vmem:[%s6 + $0x8] sm:$0xf]
    %v1626 = vld [vmem:[%s6 + $0xc] sm:$0xf]
    %v1627 = vld [vmem:[%s6 + $0x10] sm:$0xf]
    %v1628 = vld [vmem:[%s6 + $0x14] sm:$0xf]
    %v1629 = vld [vmem:[%s6 + $0x18] sm:$0xf]
    %v1630 = vld [vmem:[%s6 + $0x1c] sm:$0xf]
    %v1631 = vld [vmem:[%s2] sm:$0xff]
    %v1632 = vld [vmem:[%s2 + $0x8] sm:$0xff]
    %v1633 = vld [vmem:[%s2 + $0x10] sm:$0xff]
    %v1634 = vld [vmem:[%s2 + $0x18] sm:$0xff]
    %v1635 = vld [vmem:[%s2 + $0x20] sm:$0xff]
    %v1636 = vld [vmem:[%s2 + $0x28] sm:$0xff]
    %v1637 = vld [vmem:[%s2 + $0x30] sm:$0xff]
    %v1638 = vld [vmem:[%s2 + $0x38] sm:$0xff]
    %v1647 = vunpack.c.l.b16 %v1623
    %v1648 = vunpack.c.l.b16 %v1624
    %v1649 = vunpack.c.l.b16 %v1625
    %v1650 = vunpack.c.l.b16 %v1626
    %v1651 = vunpack.c.l.b16 %v1627
    %v1652 = vunpack.c.l.b16 %v1628
    %v1653 = vunpack.c.l.b16 %v1629
    %v1654 = vunpack.c.l.b16 %v1630
    %v1655 = vpack.c.b16 %v1648, %v1647
    %v1656 = vpack.c.b16 %v1650, %v1649
    %v1657 = vpack.c.b16 %v1652, %v1651
    %v1658 = vpack.c.b16 %v1654, %v1653
    %v1667 = vunpack.c.l.b16 %v1631
    %v1668 = vunpack.c.h.b16 %v1631
    %v1669 = vunpack.c.l.b16 %v1632
    %v1670 = vunpack.c.h.b16 %v1632
    %v1671 = vunpack.c.l.b16 %v1633
    %v1672 = vunpack.c.h.b16 %v1633
    %v1673 = vunpack.c.l.b16 %v1634
    %v1674 = vunpack.c.h.b16 %v1634
    %v1675 = vunpack.c.l.b16 %v1635
    %v1676 = vunpack.c.h.b16 %v1635
    %v1677 = vunpack.c.l.b16 %v1636
    %v1678 = vunpack.c.h.b16 %v1636
    %v1679 = vunpack.c.l.b16 %v1637
    %v1680 = vunpack.c.h.b16 %v1637
    %v1681 = vunpack.c.l.b16 %v1638
    %v1682 = vunpack.c.h.b16 %v1638
    %v1683 = vpack.c.b16 %v1669, %v1667
    %v1684 = vpack.c.b16 %v1670, %v1668
    %v1685 = vpack.c.b16 %v1673, %v1671
    %v1686 = vpack.c.b16 %v1674, %v1672
    %v1687 = vpack.c.b16 %v1677, %v1675
    %v1688 = vpack.c.b16 %v1678, %v1676
    %v1689 = vpack.c.b16 %v1681, %v1679
    %v1690 = vpack.c.b16 %v1682, %v1680
    %v1700 = vsel %vm618, %v1655, 0
    %v1703 = vsel %vm618, %v1656, 0
    %v1706 = vsel %vm618, %v1657, 0
    %v1709 = vsel %vm618, %v1658, 0
    %1711 = vmatpush.bf16.msra.mxu0 0
    %1712 = vmatpush.bf16.msra.mxu0 0
    %1713 = vmatpush.bf16.msra.mxu0 0
    %1714 = vmatpush.bf16.msra.mxu0 0
    %1715 = vmatpush.bf16.msra.mxu0 %v1689
    %1716 = vmatpush.bf16.msra.mxu0 %v1687
    %1717 = vmatpush.bf16.msra.mxu0 %v1685
    %1718 = vmatpush.bf16.msra.mxu0 %v1683
    %1719 = vmatmul.bf16.gmra.mxu0 %v1700
    %v1720 = vpop.f32.mrf.mxu0
    %v1721 = vadd.f32 0.0, %v1720
    %v1722 = vpop.f32.mrf.mxu0
    %v1723 = vadd.f32 0.0, %v1722
    %1724 = vmatmul.bf16.gmra.mxu0 %v1703
    %v1725 = vpop.f32.mrf.mxu0
    %v1726 = vadd.f32 0.0, %v1725
    %v1727 = vpop.f32.mrf.mxu0
    %v1728 = vadd.f32 0.0, %v1727
    %1729 = vmatmul.bf16.gmra.mxu0 %v1706
    %v1730 = vpop.f32.mrf.mxu0
    %v1731 = vadd.f32 0.0, %v1730
    %v1732 = vpop.f32.mrf.mxu0
    %v1733 = vadd.f32 0.0, %v1732
    %1734 = vmatmul.bf16.gmra.mxu0 %v1709
    %v1735 = vpop.f32.mrf.mxu0
    %v1736 = vadd.f32 0.0, %v1735
    %v1737 = vpop.f32.mrf.mxu0
    %v1738 = vadd.f32 0.0, %v1737
    %1739 = vdwg.mxu0
    %1740 = vmatpush.bf16.msra.mxu0 0
    %1741 = vmatpush.bf16.msra.mxu0 0
    %1742 = vmatpush.bf16.msra.mxu0 0
    %1743 = vmatpush.bf16.msra.mxu0 0
    %1744 = vmatpush.bf16.msra.mxu0 %v1690
    %1745 = vmatpush.bf16.msra.mxu0 %v1688
    %1746 = vmatpush.bf16.msra.mxu0 %v1686
    %1747 = vmatpush.bf16.msra.mxu0 %v1684
    %1748 = vmatmul.bf16.gmra.mxu0 %v1700
    %v1749 = vpop.f32.mrf.mxu0
    %v1750 = vadd.f32 0.0, %v1749
    %v1751 = vpop.f32.mrf.mxu0
    %v1752 = vadd.f32 0.0, %v1751
    %1753 = vmatmul.bf16.gmra.mxu0 %v1703
    %v1754 = vpop.f32.mrf.mxu0
    %v1755 = vadd.f32 0.0, %v1754
    %v1756 = vpop.f32.mrf.mxu0
    %v1757 = vadd.f32 0.0, %v1756
    %1758 = vmatmul.bf16.gmra.mxu0 %v1706
    %v1759 = vpop.f32.mrf.mxu0
    %v1760 = vadd.f32 0.0, %v1759
    %v1761 = vpop.f32.mrf.mxu0
    %v1762 = vadd.f32 0.0, %v1761
    %1763 = vmatmul.bf16.gmra.mxu0 %v1709
    %v1764 = vpop.f32.mrf.mxu0
    %v1765 = vadd.f32 0.0, %v1764
    %v1766 = vpop.f32.mrf.mxu0
    %v1767 = vadd.f32 0.0, %v1766
    %1768 = vdwg.mxu0
    %v1769 = vpack.c.bf16 %v1750, %v1721
    %v1770 = vpack.c.bf16 %v1752, %v1723
    %v1771 = vpack.c.bf16 %v1755, %v1726
    %v1772 = vpack.c.bf16 %v1757, %v1728
    %v1773 = vpack.c.bf16 %v1760, %v1731
    %v1774 = vpack.c.bf16 %v1762, %v1733
    %v1775 = vpack.c.bf16 %v1765, %v1736
    %v1776 = vpack.c.bf16 %v1767, %v1738
    %v1777 = vld [vmem:[%s7] sm:$0xf]
    %v1778 = vld [vmem:[%s7 + $0x4] sm:$0xf]
    %v1779 = vld [vmem:[%s7 + $0x8] sm:$0xf]
    %v1780 = vld [vmem:[%s7 + $0xc] sm:$0xf]
    %v1781 = vld [vmem:[%s7 + $0x10] sm:$0xf]
    %v1782 = vld [vmem:[%s7 + $0x14] sm:$0xf]
    %v1783 = vld [vmem:[%s7 + $0x18] sm:$0xf]
    %v1784 = vld [vmem:[%s7 + $0x1c] sm:$0xf]
    %v1785 = vld [vmem:[%s7 + $0x20] sm:$0xf]
    %v1786 = vld [vmem:[%s7 + $0x24] sm:$0xf]
    %v1787 = vld [vmem:[%s7 + $0x28] sm:$0xf]
    %v1788 = vld [vmem:[%s7 + $0x2c] sm:$0xf]
    %v1789 = vld [vmem:[%s7 + $0x30] sm:$0xf]
    %v1790 = vld [vmem:[%s7 + $0x34] sm:$0xf]
    %v1791 = vld [vmem:[%s7 + $0x38] sm:$0xf]
    %v1792 = vld [vmem:[%s7 + $0x3c] sm:$0xf]
    %v1801 = vunpack.c.l.b16 %v1769
    %v1802 = vunpack.c.l.b16 %v1770
    %v1803 = vunpack.c.l.b16 %v1771
    %v1804 = vunpack.c.l.b16 %v1772
    %v1805 = vunpack.c.l.b16 %v1773
    %v1806 = vunpack.c.l.b16 %v1774
    %v1807 = vunpack.c.l.b16 %v1775
    %v1808 = vunpack.c.l.b16 %v1776
    %v1809 = vpack.c.b16 %v1802, %v1801
    %v1810 = vpack.c.b16 %v1804, %v1803
    %v1811 = vpack.c.b16 %v1806, %v1805
    %v1812 = vpack.c.b16 %v1808, %v1807
    %v1833 = vunpack.c.l.b16 %v1777
    %v1834 = vunpack.c.l.b16 %v1778
    %v1835 = vunpack.c.l.b16 %v1779
    %v1836 = vunpack.c.l.b16 %v1780
    %v1837 = vunpack.c.l.b16 %v1781
    %v1838 = vunpack.c.l.b16 %v1782
    %v1839 = vunpack.c.l.b16 %v1783
    %v1840 = vunpack.c.l.b16 %v1784
    %v1841 = vunpack.c.l.b16 %v1785
    %v1842 = vunpack.c.l.b16 %v1786
    %v1843 = vunpack.c.l.b16 %v1787
    %v1844 = vunpack.c.l.b16 %v1788
    %v1845 = vunpack.c.l.b16 %v1789
    %v1846 = vunpack.c.l.b16 %v1790
    %v1847 = vunpack.c.l.b16 %v1791
    %v1848 = vunpack.c.l.b16 %v1792
    %v1849 = vpack.c.b16 %v1834, %v1833
    %v1850 = vpack.c.b16 %v1836, %v1835
    %v1851 = vpack.c.b16 %v1838, %v1837
    %v1852 = vpack.c.b16 %v1840, %v1839
    %v1853 = vpack.c.b16 %v1842, %v1841
    %v1854 = vpack.c.b16 %v1844, %v1843
    %v1855 = vpack.c.b16 %v1846, %v1845
    %v1856 = vpack.c.b16 %v1848, %v1847
    %1865 = vmatpush.bf16.msra.mxu0 %v1856
    %1866 = vmatpush.bf16.msra.mxu0 %v1855
    %1867 = vmatpush.bf16.msra.mxu0 %v1854
    %1868 = vmatpush.bf16.msra.mxu0 %v1853
    %1869 = vmatpush.bf16.msra.mxu0 %v1852
    %1870 = vmatpush.bf16.msra.mxu0 %v1851
    %1871 = vmatpush.bf16.msra.mxu0 %v1850
    %1872 = vmatpush.bf16.msra.mxu0 %v1849
    %1873 = vmatmul.bf16.gmra.mxu0 %v1809
    %v1874 = vpop.f32.mrf.mxu0
    %v1875 = vadd.f32 0.0, %v1874
    %v1876 = vpop.f32.mrf.mxu0
    %v1877 = vadd.f32 0.0, %v1876
    %1878 = vmatmul.bf16.gmra.mxu0 %v1810
    %v1879 = vpop.f32.mrf.mxu0
    %v1880 = vadd.f32 0.0, %v1879
    %v1881 = vpop.f32.mrf.mxu0
    %v1882 = vadd.f32 0.0, %v1881
    %1883 = vmatmul.bf16.gmra.mxu0 %v1811
    %v1884 = vpop.f32.mrf.mxu0
    %v1885 = vadd.f32 0.0, %v1884
    %v1886 = vpop.f32.mrf.mxu0
    %v1887 = vadd.f32 0.0, %v1886
    %1888 = vmatmul.bf16.gmra.mxu0 %v1812
    %v1889 = vpop.f32.mrf.mxu0
    %v1890 = vadd.f32 0.0, %v1889
    %v1891 = vpop.f32.mrf.mxu0
    %v1892 = vadd.f32 0.0, %v1891
    %1893 = vdwg.mxu0
    %v1894 = vunpack.c.h.b16 %v1769
    %v1895 = vunpack.c.h.b16 %v1770
    %v1896 = vunpack.c.h.b16 %v1771
    %v1897 = vunpack.c.h.b16 %v1772
    %v1898 = vunpack.c.h.b16 %v1773
    %v1899 = vunpack.c.h.b16 %v1774
    %v1900 = vunpack.c.h.b16 %v1775
    %v1901 = vunpack.c.h.b16 %v1776
    %v1902 = vpack.c.b16 %v1895, %v1894
    %v1903 = vpack.c.b16 %v1897, %v1896
    %v1904 = vpack.c.b16 %v1899, %v1898
    %v1905 = vpack.c.b16 %v1901, %v1900
    %1910 = vmatpush.bf16.msra.mxu0 %v1856
    %1911 = vmatpush.bf16.msra.mxu0 %v1855
    %1912 = vmatpush.bf16.msra.mxu0 %v1854
    %1913 = vmatpush.bf16.msra.mxu0 %v1853
    %1914 = vmatpush.bf16.msra.mxu0 %v1852
    %1915 = vmatpush.bf16.msra.mxu0 %v1851
    %1916 = vmatpush.bf16.msra.mxu0 %v1850
    %1917 = vmatpush.bf16.msra.mxu0 %v1849
    %1918 = vmatmul.bf16.gmra.mxu0 %v1902
    %v1919 = vpop.f32.mrf.mxu0
    %v1920 = vadd.f32 0.0, %v1919
    %v1921 = vpop.f32.mrf.mxu0
    %v1922 = vadd.f32 0.0, %v1921
    %1923 = vmatmul.bf16.gmra.mxu0 %v1903
    %v1924 = vpop.f32.mrf.mxu0
    %v1925 = vadd.f32 0.0, %v1924
    %v1926 = vpop.f32.mrf.mxu0
    %v1927 = vadd.f32 0.0, %v1926
    %1928 = vmatmul.bf16.gmra.mxu0 %v1904
    %v1929 = vpop.f32.mrf.mxu0
    %v1930 = vadd.f32 0.0, %v1929
    %v1931 = vpop.f32.mrf.mxu0
    %v1932 = vadd.f32 0.0, %v1931
    %1933 = vmatmul.bf16.gmra.mxu0 %v1905
    %v1934 = vpop.f32.mrf.mxu0
    %v1935 = vadd.f32 0.0, %v1934
    %v1936 = vpop.f32.mrf.mxu0
    %v1937 = vadd.f32 0.0, %v1936
    %1938 = vdwg.mxu0
    %vm1939 = vcmp.eq.f32.partialorder %v1583, 1.0
    %vm1940 = vcmp.eq.f32.partialorder %v1584, 1.0
    %vm1941 = vcmp.eq.f32.partialorder %v1585, 1.0
    %vm1942 = vcmp.eq.f32.partialorder %v1586, 1.0
    %vm1943 = vcmp.eq.f32.partialorder %v1587, 1.0
    %vm1944 = vcmp.eq.f32.partialorder %v1588, 1.0
    %vm1945 = vcmp.eq.f32.partialorder %v1589, 1.0
    %vm1946 = vcmp.eq.f32.partialorder %v1590, 1.0
    %s1947 = sld [smem:[#allocation3 + $0x1]]
    %v1948 = vstv %s1947
    %v1949 = vsel %vm1939, %v1948, 0.0
    %v1950 = vsel %vm1940, %v1948, 0.0
    %v1951 = vsel %vm1941, %v1948, 0.0
    %v1952 = vsel %vm1942, %v1948, 0.0
    %v1953 = vsel %vm1943, %v1948, 0.0
    %v1954 = vsel %vm1944, %v1948, 0.0
    %v1955 = vsel %vm1945, %v1948, 0.0
    %v1956 = vsel %vm1946, %v1948, 0.0
    %s1957 = sld [smem:[#allocation6 + $0x1]]
    %v1958 = vstv %s1957
    %v1959 = vsel %vm1939, %v1958, 0.0
    %v1960 = vsel %vm1940, %v1958, 0.0
    %v1961 = vsel %vm1941, %v1958, 0.0
    %v1962 = vsel %vm1942, %v1958, 0.0
    %v1963 = vsel %vm1943, %v1958, 0.0
    %v1964 = vsel %vm1944, %v1958, 0.0
    %v1965 = vsel %vm1945, %v1958, 0.0
    %v1966 = vsel %vm1946, %v1958, 0.0
    %vm1967 = vcmp.eq.f32.partialorder %v1583, 2.0
    %vm1968 = vcmp.eq.f32.partialorder %v1584, 2.0
    %vm1969 = vcmp.eq.f32.partialorder %v1585, 2.0
    %vm1970 = vcmp.eq.f32.partialorder %v1586, 2.0
    %vm1971 = vcmp.eq.f32.partialorder %v1587, 2.0
    %vm1972 = vcmp.eq.f32.partialorder %v1588, 2.0
    %vm1973 = vcmp.eq.f32.partialorder %v1589, 2.0
    %vm1974 = vcmp.eq.f32.partialorder %v1590, 2.0
    %s1975 = sld [smem:[#allocation3 + $0x2]]
    %v1976 = vstv %s1975
    %v1977 = vsel %vm1967, %v1976, %v1949
    %v1978 = vsel %vm1968, %v1976, %v1950
    %v1979 = vsel %vm1969, %v1976, %v1951
    %v1980 = vsel %vm1970, %v1976, %v1952
    %v1981 = vsel %vm1971, %v1976, %v1953
    %v1982 = vsel %vm1972, %v1976, %v1954
    %v1983 = vsel %vm1973, %v1976, %v1955
    %v1984 = vsel %vm1974, %v1976, %v1956
    %s1985 = sld [smem:[#allocation6 + $0x2]]
    %v1986 = vstv %s1985
    %v1987 = vsel %vm1967, %v1986, %v1959
    %v1988 = vsel %vm1968, %v1986, %v1960
    %v1989 = vsel %vm1969, %v1986, %v1961
    %v1990 = vsel %vm1970, %v1986, %v1962
    %v1991 = vsel %vm1971, %v1986, %v1963
    %v1992 = vsel %vm1972, %v1986, %v1964
    %v1993 = vsel %vm1973, %v1986, %v1965
    %v1994 = vsel %vm1974, %v1986, %v1966
    %vm1995 = vcmp.eq.f32.partialorder %v1583, 3.0
    %vm1996 = vcmp.eq.f32.partialorder %v1584, 3.0
    %vm1997 = vcmp.eq.f32.partialorder %v1585, 3.0
    %vm1998 = vcmp.eq.f32.partialorder %v1586, 3.0
    %vm1999 = vcmp.eq.f32.partialorder %v1587, 3.0
    %vm2000 = vcmp.eq.f32.partialorder %v1588, 3.0
    %vm2001 = vcmp.eq.f32.partialorder %v1589, 3.0
    %vm2002 = vcmp.eq.f32.partialorder %v1590, 3.0
    %s2003 = sld [smem:[#allocation3 + $0x3]]
    %v2004 = vstv %s2003
    %v2005 = vsel %vm1995, %v2004, %v1977
    %v2006 = vsel %vm1996, %v2004, %v1978
    %v2007 = vsel %vm1997, %v2004, %v1979
    %v2008 = vsel %vm1998, %v2004, %v1980
    %v2009 = vsel %vm1999, %v2004, %v1981
    %v2010 = vsel %vm2000, %v2004, %v1982
    %v2011 = vsel %vm2001, %v2004, %v1983
    %v2012 = vsel %vm2002, %v2004, %v1984
    %s2013 = sld [smem:[#allocation6 + $0x3]]
    %v2014 = vstv %s2013
    %v2015 = vsel %vm1995, %v2014, %v1987
    %v2016 = vsel %vm1996, %v2014, %v1988
    %v2017 = vsel %vm1997, %v2014, %v1989
    %v2018 = vsel %vm1998, %v2014, %v1990
    %v2019 = vsel %vm1999, %v2014, %v1991
    %v2020 = vsel %vm2000, %v2014, %v1992
    %v2021 = vsel %vm2001, %v2014, %v1993
    %v2022 = vsel %vm2002, %v2014, %v1994
    %vm2023 = vcmp.eq.f32.partialorder %v1583, 4.0
    %vm2024 = vcmp.eq.f32.partialorder %v1584, 4.0
    %vm2025 = vcmp.eq.f32.partialorder %v1585, 4.0
    %vm2026 = vcmp.eq.f32.partialorder %v1586, 4.0
    %vm2027 = vcmp.eq.f32.partialorder %v1587, 4.0
    %vm2028 = vcmp.eq.f32.partialorder %v1588, 4.0
    %vm2029 = vcmp.eq.f32.partialorder %v1589, 4.0
    %vm2030 = vcmp.eq.f32.partialorder %v1590, 4.0
    %s2031 = sld [smem:[#allocation3 + $0x4]]
    %v2032 = vstv %s2031
    %v2033 = vsel %vm2023, %v2032, %v2005
    %v2034 = vsel %vm2024, %v2032, %v2006
    %v2035 = vsel %vm2025, %v2032, %v2007
    %v2036 = vsel %vm2026, %v2032, %v2008
    %v2037 = vsel %vm2027, %v2032, %v2009
    %v2038 = vsel %vm2028, %v2032, %v2010
    %v2039 = vsel %vm2029, %v2032, %v2011
    %v2040 = vsel %vm2030, %v2032, %v2012
    %s2041 = sld [smem:[#allocation6 + $0x4]]
    %v2042 = vstv %s2041
    %v2043 = vsel %vm2023, %v2042, %v2015
    %v2044 = vsel %vm2024, %v2042, %v2016
    %v2045 = vsel %vm2025, %v2042, %v2017
    %v2046 = vsel %vm2026, %v2042, %v2018
    %v2047 = vsel %vm2027, %v2042, %v2019
    %v2048 = vsel %vm2028, %v2042, %v2020
    %v2049 = vsel %vm2029, %v2042, %v2021
    %v2050 = vsel %vm2030, %v2042, %v2022
    %vm2051 = vcmp.eq.f32.partialorder %v1583, 5.0
    %vm2052 = vcmp.eq.f32.partialorder %v1584, 5.0
    %vm2053 = vcmp.eq.f32.partialorder %v1585, 5.0
    %vm2054 = vcmp.eq.f32.partialorder %v1586, 5.0
    %vm2055 = vcmp.eq.f32.partialorder %v1587, 5.0
    %vm2056 = vcmp.eq.f32.partialorder %v1588, 5.0
    %vm2057 = vcmp.eq.f32.partialorder %v1589, 5.0
    %vm2058 = vcmp.eq.f32.partialorder %v1590, 5.0
    %s2059 = sld [smem:[#allocation3 + $0x5]]
    %v2060 = vstv %s2059
    %v2061 = vsel %vm2051, %v2060, %v2033
    %v2062 = vsel %vm2052, %v2060, %v2034
    %v2063 = vsel %vm2053, %v2060, %v2035
    %v2064 = vsel %vm2054, %v2060, %v2036
    %v2065 = vsel %vm2055, %v2060, %v2037
    %v2066 = vsel %vm2056, %v2060, %v2038
    %v2067 = vsel %vm2057, %v2060, %v2039
    %v2068 = vsel %vm2058, %v2060, %v2040
    %s2069 = sld [smem:[#allocation6 + $0x5]]
    %v2070 = vstv %s2069
    %v2071 = vsel %vm2051, %v2070, %v2043
    %v2072 = vsel %vm2052, %v2070, %v2044
    %v2073 = vsel %vm2053, %v2070, %v2045
    %v2074 = vsel %vm2054, %v2070, %v2046
    %v2075 = vsel %vm2055, %v2070, %v2047
    %v2076 = vsel %vm2056, %v2070, %v2048
    %v2077 = vsel %vm2057, %v2070, %v2049
    %v2078 = vsel %vm2058, %v2070, %v2050
    %vm2079 = vcmp.eq.f32.partialorder %v1583, 6.0
    %vm2080 = vcmp.eq.f32.partialorder %v1584, 6.0
    %vm2081 = vcmp.eq.f32.partialorder %v1585, 6.0
    %vm2082 = vcmp.eq.f32.partialorder %v1586, 6.0
    %vm2083 = vcmp.eq.f32.partialorder %v1587, 6.0
    %vm2084 = vcmp.eq.f32.partialorder %v1588, 6.0
    %vm2085 = vcmp.eq.f32.partialorder %v1589, 6.0
    %vm2086 = vcmp.eq.f32.partialorder %v1590, 6.0
    %s2087 = sld [smem:[#allocation3 + $0x6]]
    %v2088 = vstv %s2087
    %v2089 = vsel %vm2079, %v2088, %v2061
    %v2090 = vsel %vm2080, %v2088, %v2062
    %v2091 = vsel %vm2081, %v2088, %v2063
    %v2092 = vsel %vm2082, %v2088, %v2064
    %v2093 = vsel %vm2083, %v2088, %v2065
    %v2094 = vsel %vm2084, %v2088, %v2066
    %v2095 = vsel %vm2085, %v2088, %v2067
    %v2096 = vsel %vm2086, %v2088, %v2068
    %s2097 = sld [smem:[#allocation6 + $0x6]]
    %v2098 = vstv %s2097
    %v2099 = vsel %vm2079, %v2098, %v2071
    %v2100 = vsel %vm2080, %v2098, %v2072
    %v2101 = vsel %vm2081, %v2098, %v2073
    %v2102 = vsel %vm2082, %v2098, %v2074
    %v2103 = vsel %vm2083, %v2098, %v2075
    %v2104 = vsel %vm2084, %v2098, %v2076
    %v2105 = vsel %vm2085, %v2098, %v2077
    %v2106 = vsel %vm2086, %v2098, %v2078
    %vm2107 = vcmp.eq.f32.partialorder %v1583, 7.0
    %vm2108 = vcmp.eq.f32.partialorder %v1584, 7.0
    %vm2109 = vcmp.eq.f32.partialorder %v1585, 7.0
    %vm2110 = vcmp.eq.f32.partialorder %v1586, 7.0
    %vm2111 = vcmp.eq.f32.partialorder %v1587, 7.0
    %vm2112 = vcmp.eq.f32.partialorder %v1588, 7.0
    %vm2113 = vcmp.eq.f32.partialorder %v1589, 7.0
    %vm2114 = vcmp.eq.f32.partialorder %v1590, 7.0
    %s2115 = sld [smem:[#allocation3 + $0x7]]
    %v2116 = vstv %s2115
    %v2117 = vsel %vm2107, %v2116, %v2089
    %v2118 = vsel %vm2108, %v2116, %v2090
    %v2119 = vsel %vm2109, %v2116, %v2091
    %v2120 = vsel %vm2110, %v2116, %v2092
    %v2121 = vsel %vm2111, %v2116, %v2093
    %v2122 = vsel %vm2112, %v2116, %v2094
    %v2123 = vsel %vm2113, %v2116, %v2095
    %v2124 = vsel %vm2114, %v2116, %v2096
    %s2125 = sld [smem:[#allocation6 + $0x7]]
    %v2126 = vstv %s2125
    %v2127 = vsel %vm2107, %v2126, %v2099
    %v2128 = vsel %vm2108, %v2126, %v2100
    %v2129 = vsel %vm2109, %v2126, %v2101
    %v2130 = vsel %vm2110, %v2126, %v2102
    %v2131 = vsel %vm2111, %v2126, %v2103
    %v2132 = vsel %vm2112, %v2126, %v2104
    %v2133 = vsel %vm2113, %v2126, %v2105
    %v2134 = vsel %vm2114, %v2126, %v2106
    %vm2135 = vcmp.eq.f32.partialorder %v1583, 8.0
    %vm2136 = vcmp.eq.f32.partialorder %v1584, 8.0
    %vm2137 = vcmp.eq.f32.partialorder %v1585, 8.0
    %vm2138 = vcmp.eq.f32.partialorder %v1586, 8.0
    %vm2139 = vcmp.eq.f32.partialorder %v1587, 8.0
    %vm2140 = vcmp.eq.f32.partialorder %v1588, 8.0
    %vm2141 = vcmp.eq.f32.partialorder %v1589, 8.0
    %vm2142 = vcmp.eq.f32.partialorder %v1590, 8.0
    %s2143 = sld [smem:[#allocation3 + $0x8]]
    %v2144 = vstv %s2143
    %v2145 = vsel %vm2135, %v2144, %v2117
    %v2146 = vsel %vm2136, %v2144, %v2118
    %v2147 = vsel %vm2137, %v2144, %v2119
    %v2148 = vsel %vm2138, %v2144, %v2120
    %v2149 = vsel %vm2139, %v2144, %v2121
    %v2150 = vsel %vm2140, %v2144, %v2122
    %v2151 = vsel %vm2141, %v2144, %v2123
    %v2152 = vsel %vm2142, %v2144, %v2124
    %s2153 = sld [smem:[#allocation6 + $0x8]]
    %v2154 = vstv %s2153
    %v2155 = vsel %vm2135, %v2154, %v2127
    %v2156 = vsel %vm2136, %v2154, %v2128
    %v2157 = vsel %vm2137, %v2154, %v2129
    %v2158 = vsel %vm2138, %v2154, %v2130
    %v2159 = vsel %vm2139, %v2154, %v2131
    %v2160 = vsel %vm2140, %v2154, %v2132
    %v2161 = vsel %vm2141, %v2154, %v2133
    %v2162 = vsel %vm2142, %v2154, %v2134
    %v2163 = vmul.f32 %v2155, %v1875
    %v2164 = vmul.f32 %v2156, %v1877
    %v2165 = vmul.f32 %v2157, %v1880
    %v2166 = vmul.f32 %v2158, %v1882
    %v2167 = vmul.f32 %v2159, %v1885
    %v2168 = vmul.f32 %v2160, %v1887
    %v2169 = vmul.f32 %v2161, %v1890
    %v2170 = vmul.f32 %v2162, %v1892
    %v2171 = vadd.f32 %v2145, %v2163
    %v2172 = vadd.f32 %v2146, %v2164
    %v2173 = vadd.f32 %v2147, %v2165
    %v2174 = vadd.f32 %v2148, %v2166
    %v2175 = vadd.f32 %v2149, %v2167
    %v2176 = vadd.f32 %v2150, %v2168
    %v2177 = vadd.f32 %v2151, %v2169
    %v2178 = vadd.f32 %v2152, %v2170
    %v2187 = vunpack.c.l.b16 %v1213
    %v2188 = vunpack.c.l.b16 %v1223
    %v2189 = vunpack.c.l.b16 %v1233
    %v2190 = vunpack.c.l.b16 %v1243
    %v2191 = vunpack.c.l.b16 %v1253
    %v2192 = vunpack.c.l.b16 %v1263
    %v2193 = vunpack.c.l.b16 %v1273
    %v2194 = vunpack.c.l.b16 %v1283
    %v2195 = vpack.c.b16 %v2188, %v2187
    %v2196 = vpack.c.b16 %v2190, %v2189
    %v2197 = vpack.c.b16 %v2192, %v2191
    %v2198 = vpack.c.b16 %v2194, %v2193
    %2203 = vmatpush.bf16.msra.mxu0 %v1370
    %2204 = vmatpush.bf16.msra.mxu0 %v1369
    %2205 = vmatpush.bf16.msra.mxu0 %v1368
    %2206 = vmatpush.bf16.msra.mxu0 %v1367
    %2207 = vmatpush.bf16.msra.mxu0 %v1366
    %2208 = vmatpush.bf16.msra.mxu0 %v1365
    %2209 = vmatpush.bf16.msra.mxu0 %v1364
    %2210 = vmatpush.bf16.msra.mxu0 %v1363
    %2211 = vmatmul.bf16.gmra.mxu0 %v2195
    %v2212 = vpop.f32.mrf.mxu0
    %v2213 = vadd.f32 0.0, %v2212
    %v2214 = vpop.f32.mrf.mxu0
    %v2215 = vadd.f32 0.0, %v2214
    %2216 = vmatmul.bf16.gmra.mxu0 %v2196
    %v2217 = vpop.f32.mrf.mxu0
    %v2218 = vadd.f32 0.0, %v2217
    %v2219 = vpop.f32.mrf.mxu0
    %v2220 = vadd.f32 0.0, %v2219
    %2221 = vmatmul.bf16.gmra.mxu0 %v2197
    %v2222 = vpop.f32.mrf.mxu0
    %v2223 = vadd.f32 0.0, %v2222
    %v2224 = vpop.f32.mrf.mxu0
    %v2225 = vadd.f32 0.0, %v2224
    %2226 = vmatmul.bf16.gmra.mxu0 %v2198
    %v2227 = vpop.f32.mrf.mxu0
    %v2228 = vadd.f32 0.0, %v2227
    %v2229 = vpop.f32.mrf.mxu0
    %v2230 = vadd.f32 0.0, %v2229
    %2231 = vdwg.mxu0
    %s2232 = sld [smem:[#allocation8]]
    %v2233 = vstv %s2232
    %s2234 = sld [smem:[#allocation9]]
    %v2235 = vstv %s2234
    %v2236 = vunpack.c.h.b16 %v1213
    %v2237 = vunpack.c.h.b16 %v1223
    %v2238 = vunpack.c.h.b16 %v1233
    %v2239 = vunpack.c.h.b16 %v1243
    %v2240 = vunpack.c.h.b16 %v1253
    %v2241 = vunpack.c.h.b16 %v1263
    %v2242 = vunpack.c.h.b16 %v1273
    %v2243 = vunpack.c.h.b16 %v1283
    %v2244 = vpack.c.b16 %v2237, %v2236
    %v2245 = vpack.c.b16 %v2239, %v2238
    %v2246 = vpack.c.b16 %v2241, %v2240
    %v2247 = vpack.c.b16 %v2243, %v2242
    %2252 = vmatpush.bf16.msra.mxu0 %v1370
    %2253 = vmatpush.bf16.msra.mxu0 %v1369
    %2254 = vmatpush.bf16.msra.mxu0 %v1368
    %2255 = vmatpush.bf16.msra.mxu0 %v1367
    %2256 = vmatpush.bf16.msra.mxu0 %v1366
    %2257 = vmatpush.bf16.msra.mxu0 %v1365
    %2258 = vmatpush.bf16.msra.mxu0 %v1364
    %2259 = vmatpush.bf16.msra.mxu0 %v1363
    %2260 = vmatmul.bf16.gmra.mxu0 %v2244
    %v2261 = vpop.f32.mrf.mxu0
    %v2262 = vadd.f32 0.0, %v2261
    %v2263 = vpop.f32.mrf.mxu0
    %v2264 = vadd.f32 0.0, %v2263
    %2265 = vmatmul.bf16.gmra.mxu0 %v2245
    %v2266 = vpop.f32.mrf.mxu0
    %v2267 = vadd.f32 0.0, %v2266
    %v2268 = vpop.f32.mrf.mxu0
    %v2269 = vadd.f32 0.0, %v2268
    %2270 = vmatmul.bf16.gmra.mxu0 %v2246
    %v2271 = vpop.f32.mrf.mxu0
    %v2272 = vadd.f32 0.0, %v2271
    %v2273 = vpop.f32.mrf.mxu0
    %v2274 = vadd.f32 0.0, %v2273
    %2275 = vmatmul.bf16.gmra.mxu0 %v2247
    %v2276 = vpop.f32.mrf.mxu0
    %v2277 = vadd.f32 0.0, %v2276
    %v2278 = vpop.f32.mrf.mxu0
    %v2279 = vadd.f32 0.0, %v2278
    %2280 = vdwg.mxu0
    %vm2281 = vcmp.gt.f32.partialorder %v2262, %v2213
    %vm2282 = vcmp.gt.f32.partialorder %v2264, %v2215
    %vm2283 = vcmp.gt.f32.partialorder %v2267, %v2218
    %vm2284 = vcmp.gt.f32.partialorder %v2269, %v2220
    %vm2285 = vcmp.gt.f32.partialorder %v2272, %v2223
    %vm2286 = vcmp.gt.f32.partialorder %v2274, %v2225
    %vm2287 = vcmp.gt.f32.partialorder %v2277, %v2228
    %vm2288 = vcmp.gt.f32.partialorder %v2279, %v2230
    %s2289 = sld [smem:[#allocation8 + $0x1]]
    %v2290 = vstv %s2289
    %v2291 = vsel %vm2281, %v2290, %v2233
    %v2292 = vsel %vm2282, %v2290, %v2233
    %v2293 = vsel %vm2283, %v2290, %v2233
    %v2294 = vsel %vm2284, %v2290, %v2233
    %v2295 = vsel %vm2285, %v2290, %v2233
    %v2296 = vsel %vm2286, %v2290, %v2233
    %v2297 = vsel %vm2287, %v2290, %v2233
    %v2298 = vsel %vm2288, %v2290, %v2233
    %s2299 = sld [smem:[#allocation9 + $0x1]]
    %v2300 = vstv %s2299
    %v2301 = vsel %vm2281, %v2300, %v2235
    %v2302 = vsel %vm2282, %v2300, %v2235
    %v2303 = vsel %vm2283, %v2300, %v2235
    %v2304 = vsel %vm2284, %v2300, %v2235
    %v2305 = vsel %vm2285, %v2300, %v2235
    %v2306 = vsel %vm2286, %v2300, %v2235
    %v2307 = vsel %vm2287, %v2300, %v2235
    %v2308 = vsel %vm2288, %v2300, %v2235
    %v2309 = vmax.f32 %v2213, %v2262
    %v2310 = vmax.f32 %v2215, %v2264
    %v2311 = vmax.f32 %v2218, %v2267
    %v2312 = vmax.f32 %v2220, %v2269
    %v2313 = vmax.f32 %v2223, %v2272
    %v2314 = vmax.f32 %v2225, %v2274
    %v2315 = vmax.f32 %v2228, %v2277
    %v2316 = vmax.f32 %v2230, %v2279
    %v2325 = vunpack.c.l.b16 %v1214
    %v2326 = vunpack.c.l.b16 %v1224
    %v2327 = vunpack.c.l.b16 %v1234
    %v2328 = vunpack.c.l.b16 %v1244
    %v2329 = vunpack.c.l.b16 %v1254
    %v2330 = vunpack.c.l.b16 %v1264
    %v2331 = vunpack.c.l.b16 %v1274
    %v2332 = vunpack.c.l.b16 %v1284
    %v2333 = vpack.c.b16 %v2326, %v2325
    %v2334 = vpack.c.b16 %v2328, %v2327
    %v2335 = vpack.c.b16 %v2330, %v2329
    %v2336 = vpack.c.b16 %v2332, %v2331
    %2341 = vmatpush.bf16.msra.mxu0 %v1370
    %2342 = vmatpush.bf16.msra.mxu0 %v1369
    %2343 = vmatpush.bf16.msra.mxu0 %v1368
    %2344 = vmatpush.bf16.msra.mxu0 %v1367
    %2345 = vmatpush.bf16.msra.mxu0 %v1366
    %2346 = vmatpush.bf16.msra.mxu0 %v1365
    %2347 = vmatpush.bf16.msra.mxu0 %v1364
    %2348 = vmatpush.bf16.msra.mxu0 %v1363
    %2349 = vmatmul.bf16.gmra.mxu0 %v2333
    %v2350 = vpop.f32.mrf.mxu0
    %v2351 = vadd.f32 0.0, %v2350
    %v2352 = vpop.f32.mrf.mxu0
    %v2353 = vadd.f32 0.0, %v2352
    %2354 = vmatmul.bf16.gmra.mxu0 %v2334
    %v2355 = vpop.f32.mrf.mxu0
    %v2356 = vadd.f32 0.0, %v2355
    %v2357 = vpop.f32.mrf.mxu0
    %v2358 = vadd.f32 0.0, %v2357
    %2359 = vmatmul.bf16.gmra.mxu0 %v2335
    %v2360 = vpop.f32.mrf.mxu0
    %v2361 = vadd.f32 0.0, %v2360
    %v2362 = vpop.f32.mrf.mxu0
    %v2363 = vadd.f32 0.0, %v2362
    %2364 = vmatmul.bf16.gmra.mxu0 %v2336
    %v2365 = vpop.f32.mrf.mxu0
    %v2366 = vadd.f32 0.0, %v2365
    %v2367 = vpop.f32.mrf.mxu0
    %v2368 = vadd.f32 0.0, %v2367
    %2369 = vdwg.mxu0
    %vm2370 = vcmp.gt.f32.partialorder %v2351, %v2309
    %vm2371 = vcmp.gt.f32.partialorder %v2353, %v2310
    %vm2372 = vcmp.gt.f32.partialorder %v2356, %v2311
    %vm2373 = vcmp.gt.f32.partialorder %v2358, %v2312
    %vm2374 = vcmp.gt.f32.partialorder %v2361, %v2313
    %vm2375 = vcmp.gt.f32.partialorder %v2363, %v2314
    %vm2376 = vcmp.gt.f32.partialorder %v2366, %v2315
    %vm2377 = vcmp.gt.f32.partialorder %v2368, %v2316
    %s2378 = sld [smem:[#allocation8 + $0x2]]
    %v2379 = vstv %s2378
    %v2380 = vsel %vm2370, %v2379, %v2291
    %v2381 = vsel %vm2371, %v2379, %v2292
    %v2382 = vsel %vm2372, %v2379, %v2293
    %v2383 = vsel %vm2373, %v2379, %v2294
    %v2384 = vsel %vm2374, %v2379, %v2295
    %v2385 = vsel %vm2375, %v2379, %v2296
    %v2386 = vsel %vm2376, %v2379, %v2297
    %v2387 = vsel %vm2377, %v2379, %v2298
    %s2388 = sld [smem:[#allocation9 + $0x2]]
    %v2389 = vstv %s2388
    %v2390 = vsel %vm2370, %v2389, %v2301
    %v2391 = vsel %vm2371, %v2389, %v2302
    %v2392 = vsel %vm2372, %v2389, %v2303
    %v2393 = vsel %vm2373, %v2389, %v2304
    %v2394 = vsel %vm2374, %v2389, %v2305
    %v2395 = vsel %vm2375, %v2389, %v2306
    %v2396 = vsel %vm2376, %v2389, %v2307
    %v2397 = vsel %vm2377, %v2389, %v2308
    %v2398 = vmax.f32 %v2309, %v2351
    %v2399 = vmax.f32 %v2310, %v2353
    %v2400 = vmax.f32 %v2311, %v2356
    %v2401 = vmax.f32 %v2312, %v2358
    %v2402 = vmax.f32 %v2313, %v2361
    %v2403 = vmax.f32 %v2314, %v2363
    %v2404 = vmax.f32 %v2315, %v2366
    %v2405 = vmax.f32 %v2316, %v2368
    %v2406 = vunpack.c.h.b16 %v1214
    %v2407 = vunpack.c.h.b16 %v1224
    %v2408 = vunpack.c.h.b16 %v1234
    %v2409 = vunpack.c.h.b16 %v1244
    %v2410 = vunpack.c.h.b16 %v1254
    %v2411 = vunpack.c.h.b16 %v1264
    %v2412 = vunpack.c.h.b16 %v1274
    %v2413 = vunpack.c.h.b16 %v1284
    %v2414 = vpack.c.b16 %v2407, %v2406
    %v2415 = vpack.c.b16 %v2409, %v2408
    %v2416 = vpack.c.b16 %v2411, %v2410
    %v2417 = vpack.c.b16 %v2413, %v2412
    %2422 = vmatpush.bf16.msra.mxu0 %v1370
    %2423 = vmatpush.bf16.msra.mxu0 %v1369
    %2424 = vmatpush.bf16.msra.mxu0 %v1368
    %2425 = vmatpush.bf16.msra.mxu0 %v1367
    %2426 = vmatpush.bf16.msra.mxu0 %v1366
    %2427 = vmatpush.bf16.msra.mxu0 %v1365
    %2428 = vmatpush.bf16.msra.mxu0 %v1364
    %2429 = vmatpush.bf16.msra.mxu0 %v1363
    %2430 = vmatmul.bf16.gmra.mxu0 %v2414
    %v2431 = vpop.f32.mrf.mxu0
    %v2432 = vadd.f32 0.0, %v2431
    %v2433 = vpop.f32.mrf.mxu0
    %v2434 = vadd.f32 0.0, %v2433
    %2435 = vmatmul.bf16.gmra.mxu0 %v2415
    %v2436 = vpop.f32.mrf.mxu0
    %v2437 = vadd.f32 0.0, %v2436
    %v2438 = vpop.f32.mrf.mxu0
    %v2439 = vadd.f32 0.0, %v2438
    %2440 = vmatmul.bf16.gmra.mxu0 %v2416
    %v2441 = vpop.f32.mrf.mxu0
    %v2442 = vadd.f32 0.0, %v2441
    %v2443 = vpop.f32.mrf.mxu0
    %v2444 = vadd.f32 0.0, %v2443
    %2445 = vmatmul.bf16.gmra.mxu0 %v2417
    %v2446 = vpop.f32.mrf.mxu0
    %v2447 = vadd.f32 0.0, %v2446
    %v2448 = vpop.f32.mrf.mxu0
    %v2449 = vadd.f32 0.0, %v2448
    %2450 = vdwg.mxu0
    %vm2451 = vcmp.gt.f32.partialorder %v2432, %v2398
    %vm2452 = vcmp.gt.f32.partialorder %v2434, %v2399
    %vm2453 = vcmp.gt.f32.partialorder %v2437, %v2400
    %vm2454 = vcmp.gt.f32.partialorder %v2439, %v2401
    %vm2455 = vcmp.gt.f32.partialorder %v2442, %v2402
    %vm2456 = vcmp.gt.f32.partialorder %v2444, %v2403
    %vm2457 = vcmp.gt.f32.partialorder %v2447, %v2404
    %vm2458 = vcmp.gt.f32.partialorder %v2449, %v2405
    %s2459 = sld [smem:[#allocation8 + $0x3]]
    %v2460 = vstv %s2459
    %v2461 = vsel %vm2451, %v2460, %v2380
    %v2462 = vsel %vm2452, %v2460, %v2381
    %v2463 = vsel %vm2453, %v2460, %v2382
    %v2464 = vsel %vm2454, %v2460, %v2383
    %v2465 = vsel %vm2455, %v2460, %v2384
    %v2466 = vsel %vm2456, %v2460, %v2385
    %v2467 = vsel %vm2457, %v2460, %v2386
    %v2468 = vsel %vm2458, %v2460, %v2387
    %s2469 = sld [smem:[#allocation9 + $0x3]]
    %v2470 = vstv %s2469
    %v2471 = vsel %vm2451, %v2470, %v2390
    %v2472 = vsel %vm2452, %v2470, %v2391
    %v2473 = vsel %vm2453, %v2470, %v2392
    %v2474 = vsel %vm2454, %v2470, %v2393
    %v2475 = vsel %vm2455, %v2470, %v2394
    %v2476 = vsel %vm2456, %v2470, %v2395
    %v2477 = vsel %vm2457, %v2470, %v2396
    %v2478 = vsel %vm2458, %v2470, %v2397
    %v2479 = vmax.f32 %v2398, %v2432
    %v2480 = vmax.f32 %v2399, %v2434
    %v2481 = vmax.f32 %v2400, %v2437
    %v2482 = vmax.f32 %v2401, %v2439
    %v2483 = vmax.f32 %v2402, %v2442
    %v2484 = vmax.f32 %v2403, %v2444
    %v2485 = vmax.f32 %v2404, %v2447
    %v2486 = vmax.f32 %v2405, %v2449
    %v2495 = vunpack.c.l.b16 %v1215
    %v2496 = vunpack.c.l.b16 %v1225
    %v2497 = vunpack.c.l.b16 %v1235
    %v2498 = vunpack.c.l.b16 %v1245
    %v2499 = vunpack.c.l.b16 %v1255
    %v2500 = vunpack.c.l.b16 %v1265
    %v2501 = vunpack.c.l.b16 %v1275
    %v2502 = vunpack.c.l.b16 %v1285
    %v2503 = vpack.c.b16 %v2496, %v2495
    %v2504 = vpack.c.b16 %v2498, %v2497
    %v2505 = vpack.c.b16 %v2500, %v2499
    %v2506 = vpack.c.b16 %v2502, %v2501
    %2511 = vmatpush.bf16.msra.mxu0 %v1370
    %2512 = vmatpush.bf16.msra.mxu0 %v1369
    %2513 = vmatpush.bf16.msra.mxu0 %v1368
    %2514 = vmatpush.bf16.msra.mxu0 %v1367
    %2515 = vmatpush.bf16.msra.mxu0 %v1366
    %2516 = vmatpush.bf16.msra.mxu0 %v1365
    %2517 = vmatpush.bf16.msra.mxu0 %v1364
    %2518 = vmatpush.bf16.msra.mxu0 %v1363
    %2519 = vmatmul.bf16.gmra.mxu0 %v2503
    %v2520 = vpop.f32.mrf.mxu0
    %v2521 = vadd.f32 0.0, %v2520
    %v2522 = vpop.f32.mrf.mxu0
    %v2523 = vadd.f32 0.0, %v2522
    %2524 = vmatmul.bf16.gmra.mxu0 %v2504
    %v2525 = vpop.f32.mrf.mxu0
    %v2526 = vadd.f32 0.0, %v2525
    %v2527 = vpop.f32.mrf.mxu0
    %v2528 = vadd.f32 0.0, %v2527
    %2529 = vmatmul.bf16.gmra.mxu0 %v2505
    %v2530 = vpop.f32.mrf.mxu0
    %v2531 = vadd.f32 0.0, %v2530
    %v2532 = vpop.f32.mrf.mxu0
    %v2533 = vadd.f32 0.0, %v2532
    %2534 = vmatmul.bf16.gmra.mxu0 %v2506
    %v2535 = vpop.f32.mrf.mxu0
    %v2536 = vadd.f32 0.0, %v2535
    %v2537 = vpop.f32.mrf.mxu0
    %v2538 = vadd.f32 0.0, %v2537
    %2539 = vdwg.mxu0
    %vm2540 = vcmp.gt.f32.partialorder %v2521, %v2479
    %vm2541 = vcmp.gt.f32.partialorder %v2523, %v2480
    %vm2542 = vcmp.gt.f32.partialorder %v2526, %v2481
    %vm2543 = vcmp.gt.f32.partialorder %v2528, %v2482
    %vm2544 = vcmp.gt.f32.partialorder %v2531, %v2483
    %vm2545 = vcmp.gt.f32.partialorder %v2533, %v2484
    %vm2546 = vcmp.gt.f32.partialorder %v2536, %v2485
    %vm2547 = vcmp.gt.f32.partialorder %v2538, %v2486
    %s2548 = sld [smem:[#allocation8 + $0x4]]
    %v2549 = vstv %s2548
    %v2550 = vsel %vm2540, %v2549, %v2461
    %v2551 = vsel %vm2541, %v2549, %v2462
    %v2552 = vsel %vm2542, %v2549, %v2463
    %v2553 = vsel %vm2543, %v2549, %v2464
    %v2554 = vsel %vm2544, %v2549, %v2465
    %v2555 = vsel %vm2545, %v2549, %v2466
    %v2556 = vsel %vm2546, %v2549, %v2467
    %v2557 = vsel %vm2547, %v2549, %v2468
    %s2558 = sld [smem:[#allocation9 + $0x4]]
    %v2559 = vstv %s2558
    %v2560 = vsel %vm2540, %v2559, %v2471
    %v2561 = vsel %vm2541, %v2559, %v2472
    %v2562 = vsel %vm2542, %v2559, %v2473
    %v2563 = vsel %vm2543, %v2559, %v2474
    %v2564 = vsel %vm2544, %v2559, %v2475
    %v2565 = vsel %vm2545, %v2559, %v2476
    %v2566 = vsel %vm2546, %v2559, %v2477
    %v2567 = vsel %vm2547, %v2559, %v2478
    %v2568 = vmax.f32 %v2479, %v2521
    %v2569 = vmax.f32 %v2480, %v2523
    %v2570 = vmax.f32 %v2481, %v2526
    %v2571 = vmax.f32 %v2482, %v2528
    %v2572 = vmax.f32 %v2483, %v2531
    %v2573 = vmax.f32 %v2484, %v2533
    %v2574 = vmax.f32 %v2485, %v2536
    %v2575 = vmax.f32 %v2486, %v2538
    %v2576 = vunpack.c.h.b16 %v1215
    %v2577 = vunpack.c.h.b16 %v1225
    %v2578 = vunpack.c.h.b16 %v1235
    %v2579 = vunpack.c.h.b16 %v1245
    %v2580 = vunpack.c.h.b16 %v1255
    %v2581 = vunpack.c.h.b16 %v1265
    %v2582 = vunpack.c.h.b16 %v1275
    %v2583 = vunpack.c.h.b16 %v1285
    %v2584 = vpack.c.b16 %v2577, %v2576
    %v2585 = vpack.c.b16 %v2579, %v2578
    %v2586 = vpack.c.b16 %v2581, %v2580
    %v2587 = vpack.c.b16 %v2583, %v2582
    %2592 = vmatpush.bf16.msra.mxu0 %v1370
    %2593 = vmatpush.bf16.msra.mxu0 %v1369
    %2594 = vmatpush.bf16.msra.mxu0 %v1368
    %2595 = vmatpush.bf16.msra.mxu0 %v1367
    %2596 = vmatpush.bf16.msra.mxu0 %v1366
    %2597 = vmatpush.bf16.msra.mxu0 %v1365
    %2598 = vmatpush.bf16.msra.mxu0 %v1364
    %2599 = vmatpush.bf16.msra.mxu0 %v1363
    %2600 = vmatmul.bf16.gmra.mxu0 %v2584
    %v2601 = vpop.f32.mrf.mxu0
    %v2602 = vadd.f32 0.0, %v2601
    %v2603 = vpop.f32.mrf.mxu0
    %v2604 = vadd.f32 0.0, %v2603
    %2605 = vmatmul.bf16.gmra.mxu0 %v2585
    %v2606 = vpop.f32.mrf.mxu0
    %v2607 = vadd.f32 0.0, %v2606
    %v2608 = vpop.f32.mrf.mxu0
    %v2609 = vadd.f32 0.0, %v2608
    %2610 = vmatmul.bf16.gmra.mxu0 %v2586
    %v2611 = vpop.f32.mrf.mxu0
    %v2612 = vadd.f32 0.0, %v2611
    %v2613 = vpop.f32.mrf.mxu0
    %v2614 = vadd.f32 0.0, %v2613
    %2615 = vmatmul.bf16.gmra.mxu0 %v2587
    %v2616 = vpop.f32.mrf.mxu0
    %v2617 = vadd.f32 0.0, %v2616
    %v2618 = vpop.f32.mrf.mxu0
    %v2619 = vadd.f32 0.0, %v2618
    %2620 = vdwg.mxu0
    %vm2621 = vcmp.gt.f32.partialorder %v2602, %v2568
    %vm2622 = vcmp.gt.f32.partialorder %v2604, %v2569
    %vm2623 = vcmp.gt.f32.partialorder %v2607, %v2570
    %vm2624 = vcmp.gt.f32.partialorder %v2609, %v2571
    %vm2625 = vcmp.gt.f32.partialorder %v2612, %v2572
    %vm2626 = vcmp.gt.f32.partialorder %v2614, %v2573
    %vm2627 = vcmp.gt.f32.partialorder %v2617, %v2574
    %vm2628 = vcmp.gt.f32.partialorder %v2619, %v2575
    %s2629 = sld [smem:[#allocation8 + $0x5]]
    %v2630 = vstv %s2629
    %v2631 = vsel %vm2621, %v2630, %v2550
    %v2632 = vsel %vm2622, %v2630, %v2551
    %v2633 = vsel %vm2623, %v2630, %v2552
    %v2634 = vsel %vm2624, %v2630, %v2553
    %v2635 = vsel %vm2625, %v2630, %v2554
    %v2636 = vsel %vm2626, %v2630, %v2555
    %v2637 = vsel %vm2627, %v2630, %v2556
    %v2638 = vsel %vm2628, %v2630, %v2557
    %s2639 = sld [smem:[#allocation9 + $0x5]]
    %v2640 = vstv %s2639
    %v2641 = vsel %vm2621, %v2640, %v2560
    %v2642 = vsel %vm2622, %v2640, %v2561
    %v2643 = vsel %vm2623, %v2640, %v2562
    %v2644 = vsel %vm2624, %v2640, %v2563
    %v2645 = vsel %vm2625, %v2640, %v2564
    %v2646 = vsel %vm2626, %v2640, %v2565
    %v2647 = vsel %vm2627, %v2640, %v2566
    %v2648 = vsel %vm2628, %v2640, %v2567
    %v2649 = vmax.f32 %v2568, %v2602
    %v2650 = vmax.f32 %v2569, %v2604
    %v2651 = vmax.f32 %v2570, %v2607
    %v2652 = vmax.f32 %v2571, %v2609
    %v2653 = vmax.f32 %v2572, %v2612
    %v2654 = vmax.f32 %v2573, %v2614
    %v2655 = vmax.f32 %v2574, %v2617
    %v2656 = vmax.f32 %v2575, %v2619
    %v2665 = vunpack.c.l.b16 %v1216
    %v2666 = vunpack.c.l.b16 %v1226
    %v2667 = vunpack.c.l.b16 %v1236
    %v2668 = vunpack.c.l.b16 %v1246
    %v2669 = vunpack.c.l.b16 %v1256
    %v2670 = vunpack.c.l.b16 %v1266
    %v2671 = vunpack.c.l.b16 %v1276
    %v2672 = vunpack.c.l.b16 %v1286
    %v2673 = vpack.c.b16 %v2666, %v2665
    %v2674 = vpack.c.b16 %v2668, %v2667
    %v2675 = vpack.c.b16 %v2670, %v2669
    %v2676 = vpack.c.b16 %v2672, %v2671
    %2681 = vmatpush.bf16.msra.mxu0 %v1370
    %2682 = vmatpush.bf16.msra.mxu0 %v1369
    %2683 = vmatpush.bf16.msra.mxu0 %v1368
    %2684 = vmatpush.bf16.msra.mxu0 %v1367
    %2685 = vmatpush.bf16.msra.mxu0 %v1366
    %2686 = vmatpush.bf16.msra.mxu0 %v1365
    %2687 = vmatpush.bf16.msra.mxu0 %v1364
    %2688 = vmatpush.bf16.msra.mxu0 %v1363
    %2689 = vmatmul.bf16.gmra.mxu0 %v2673
    %v2690 = vpop.f32.mrf.mxu0
    %v2691 = vadd.f32 0.0, %v2690
    %v2692 = vpop.f32.mrf.mxu0
    %v2693 = vadd.f32 0.0, %v2692
    %2694 = vmatmul.bf16.gmra.mxu0 %v2674
    %v2695 = vpop.f32.mrf.mxu0
    %v2696 = vadd.f32 0.0, %v2695
    %v2697 = vpop.f32.mrf.mxu0
    %v2698 = vadd.f32 0.0, %v2697
    %2699 = vmatmul.bf16.gmra.mxu0 %v2675
    %v2700 = vpop.f32.mrf.mxu0
    %v2701 = vadd.f32 0.0, %v2700
    %v2702 = vpop.f32.mrf.mxu0
    %v2703 = vadd.f32 0.0, %v2702
    %2704 = vmatmul.bf16.gmra.mxu0 %v2676
    %v2705 = vpop.f32.mrf.mxu0
    %v2706 = vadd.f32 0.0, %v2705
    %v2707 = vpop.f32.mrf.mxu0
    %v2708 = vadd.f32 0.0, %v2707
    %2709 = vdwg.mxu0
    %vm2710 = vcmp.gt.f32.partialorder %v2691, %v2649
    %vm2711 = vcmp.gt.f32.partialorder %v2693, %v2650
    %vm2712 = vcmp.gt.f32.partialorder %v2696, %v2651
    %vm2713 = vcmp.gt.f32.partialorder %v2698, %v2652
    %vm2714 = vcmp.gt.f32.partialorder %v2701, %v2653
    %vm2715 = vcmp.gt.f32.partialorder %v2703, %v2654
    %vm2716 = vcmp.gt.f32.partialorder %v2706, %v2655
    %vm2717 = vcmp.gt.f32.partialorder %v2708, %v2656
    %s2718 = sld [smem:[#allocation8 + $0x6]]
    %v2719 = vstv %s2718
    %v2720 = vsel %vm2710, %v2719, %v2631
    %v2721 = vsel %vm2711, %v2719, %v2632
    %v2722 = vsel %vm2712, %v2719, %v2633
    %v2723 = vsel %vm2713, %v2719, %v2634
    %v2724 = vsel %vm2714, %v2719, %v2635
    %v2725 = vsel %vm2715, %v2719, %v2636
    %v2726 = vsel %vm2716, %v2719, %v2637
    %v2727 = vsel %vm2717, %v2719, %v2638
    %s2728 = sld [smem:[#allocation9 + $0x6]]
    %v2729 = vstv %s2728
    %v2730 = vsel %vm2710, %v2729, %v2641
    %v2731 = vsel %vm2711, %v2729, %v2642
    %v2732 = vsel %vm2712, %v2729, %v2643
    %v2733 = vsel %vm2713, %v2729, %v2644
    %v2734 = vsel %vm2714, %v2729, %v2645
    %v2735 = vsel %vm2715, %v2729, %v2646
    %v2736 = vsel %vm2716, %v2729, %v2647
    %v2737 = vsel %vm2717, %v2729, %v2648
    %v2738 = vmax.f32 %v2649, %v2691
    %v2739 = vmax.f32 %v2650, %v2693
    %v2740 = vmax.f32 %v2651, %v2696
    %v2741 = vmax.f32 %v2652, %v2698
    %v2742 = vmax.f32 %v2653, %v2701
    %v2743 = vmax.f32 %v2654, %v2703
    %v2744 = vmax.f32 %v2655, %v2706
    %v2745 = vmax.f32 %v2656, %v2708
    %v2746 = vunpack.c.h.b16 %v1216
    %v2747 = vunpack.c.h.b16 %v1226
    %v2748 = vunpack.c.h.b16 %v1236
    %v2749 = vunpack.c.h.b16 %v1246
    %v2750 = vunpack.c.h.b16 %v1256
    %v2751 = vunpack.c.h.b16 %v1266
    %v2752 = vunpack.c.h.b16 %v1276
    %v2753 = vunpack.c.h.b16 %v1286
    %v2754 = vpack.c.b16 %v2747, %v2746
    %v2755 = vpack.c.b16 %v2749, %v2748
    %v2756 = vpack.c.b16 %v2751, %v2750
    %v2757 = vpack.c.b16 %v2753, %v2752
    %2762 = vmatpush.bf16.msra.mxu0 %v1370
    %2763 = vmatpush.bf16.msra.mxu0 %v1369
    %2764 = vmatpush.bf16.msra.mxu0 %v1368
    %2765 = vmatpush.bf16.msra.mxu0 %v1367
    %2766 = vmatpush.bf16.msra.mxu0 %v1366
    %2767 = vmatpush.bf16.msra.mxu0 %v1365
    %2768 = vmatpush.bf16.msra.mxu0 %v1364
    %2769 = vmatpush.bf16.msra.mxu0 %v1363
    %2770 = vmatmul.bf16.gmra.mxu0 %v2754
    %v2771 = vpop.f32.mrf.mxu0
    %v2772 = vadd.f32 0.0, %v2771
    %v2773 = vpop.f32.mrf.mxu0
    %v2774 = vadd.f32 0.0, %v2773
    %2775 = vmatmul.bf16.gmra.mxu0 %v2755
    %v2776 = vpop.f32.mrf.mxu0
    %v2777 = vadd.f32 0.0, %v2776
    %v2778 = vpop.f32.mrf.mxu0
    %v2779 = vadd.f32 0.0, %v2778
    %2780 = vmatmul.bf16.gmra.mxu0 %v2756
    %v2781 = vpop.f32.mrf.mxu0
    %v2782 = vadd.f32 0.0, %v2781
    %v2783 = vpop.f32.mrf.mxu0
    %v2784 = vadd.f32 0.0, %v2783
    %2785 = vmatmul.bf16.gmra.mxu0 %v2757
    %v2786 = vpop.f32.mrf.mxu0
    %v2787 = vadd.f32 0.0, %v2786
    %v2788 = vpop.f32.mrf.mxu0
    %v2789 = vadd.f32 0.0, %v2788
    %2790 = vdwg.mxu0
    %vm2791 = vcmp.gt.f32.partialorder %v2772, %v2738
    %vm2792 = vcmp.gt.f32.partialorder %v2774, %v2739
    %vm2793 = vcmp.gt.f32.partialorder %v2777, %v2740
    %vm2794 = vcmp.gt.f32.partialorder %v2779, %v2741
    %vm2795 = vcmp.gt.f32.partialorder %v2782, %v2742
    %vm2796 = vcmp.gt.f32.partialorder %v2784, %v2743
    %vm2797 = vcmp.gt.f32.partialorder %v2787, %v2744
    %vm2798 = vcmp.gt.f32.partialorder %v2789, %v2745
    %s2799 = sld [smem:[#allocation8 + $0x7]]
    %v2800 = vstv %s2799
    %v2801 = vsel %vm2791, %v2800, %v2720
    %v2802 = vsel %vm2792, %v2800, %v2721
    %v2803 = vsel %vm2793, %v2800, %v2722
    %v2804 = vsel %vm2794, %v2800, %v2723
    %v2805 = vsel %vm2795, %v2800, %v2724
    %v2806 = vsel %vm2796, %v2800, %v2725
    %v2807 = vsel %vm2797, %v2800, %v2726
    %v2808 = vsel %vm2798, %v2800, %v2727
    %s2809 = sld [smem:[#allocation9 + $0x7]]
    %v2810 = vstv %s2809
    %v2811 = vsel %vm2791, %v2810, %v2730
    %v2812 = vsel %vm2792, %v2810, %v2731
    %v2813 = vsel %vm2793, %v2810, %v2732
    %v2814 = vsel %vm2794, %v2810, %v2733
    %v2815 = vsel %vm2795, %v2810, %v2734
    %v2816 = vsel %vm2796, %v2810, %v2735
    %v2817 = vsel %vm2797, %v2810, %v2736
    %v2818 = vsel %vm2798, %v2810, %v2737
    %v2819 = vmax.f32 %v2738, %v2772
    %v2820 = vmax.f32 %v2739, %v2774
    %v2821 = vmax.f32 %v2740, %v2777
    %v2822 = vmax.f32 %v2741, %v2779
    %v2823 = vmax.f32 %v2742, %v2782
    %v2824 = vmax.f32 %v2743, %v2784
    %v2825 = vmax.f32 %v2744, %v2787
    %v2826 = vmax.f32 %v2745, %v2789
    %v2835 = vunpack.c.l.b16 %v1217
    %v2836 = vunpack.c.l.b16 %v1227
    %v2837 = vunpack.c.l.b16 %v1237
    %v2838 = vunpack.c.l.b16 %v1247
    %v2839 = vunpack.c.l.b16 %v1257
    %v2840 = vunpack.c.l.b16 %v1267
    %v2841 = vunpack.c.l.b16 %v1277
    %v2842 = vunpack.c.l.b16 %v1287
    %v2843 = vpack.c.b16 %v2836, %v2835
    %v2844 = vpack.c.b16 %v2838, %v2837
    %v2845 = vpack.c.b16 %v2840, %v2839
    %v2846 = vpack.c.b16 %v2842, %v2841
    %2851 = vmatpush.bf16.msra.mxu0 %v1370
    %2852 = vmatpush.bf16.msra.mxu0 %v1369
    %2853 = vmatpush.bf16.msra.mxu0 %v1368
    %2854 = vmatpush.bf16.msra.mxu0 %v1367
    %2855 = vmatpush.bf16.msra.mxu0 %v1366
    %2856 = vmatpush.bf16.msra.mxu0 %v1365
    %2857 = vmatpush.bf16.msra.mxu0 %v1364
    %2858 = vmatpush.bf16.msra.mxu0 %v1363
    %2859 = vmatmul.bf16.gmra.mxu0 %v2843
    %v2860 = vpop.f32.mrf.mxu0
    %v2861 = vadd.f32 0.0, %v2860
    %v2862 = vpop.f32.mrf.mxu0
    %v2863 = vadd.f32 0.0, %v2862
    %2864 = vmatmul.bf16.gmra.mxu0 %v2844
    %v2865 = vpop.f32.mrf.mxu0
    %v2866 = vadd.f32 0.0, %v2865
    %v2867 = vpop.f32.mrf.mxu0
    %v2868 = vadd.f32 0.0, %v2867
    %2869 = vmatmul.bf16.gmra.mxu0 %v2845
    %v2870 = vpop.f32.mrf.mxu0
    %v2871 = vadd.f32 0.0, %v2870
    %v2872 = vpop.f32.mrf.mxu0
    %v2873 = vadd.f32 0.0, %v2872
    %2874 = vmatmul.bf16.gmra.mxu0 %v2846
    %v2875 = vpop.f32.mrf.mxu0
    %v2876 = vadd.f32 0.0, %v2875
    %v2877 = vpop.f32.mrf.mxu0
    %v2878 = vadd.f32 0.0, %v2877
    %2879 = vdwg.mxu0
    %vm2880 = vcmp.gt.f32.partialorder %v2861, %v2819
    %vm2881 = vcmp.gt.f32.partialorder %v2863, %v2820
    %vm2882 = vcmp.gt.f32.partialorder %v2866, %v2821
    %vm2883 = vcmp.gt.f32.partialorder %v2868, %v2822
    %vm2884 = vcmp.gt.f32.partialorder %v2871, %v2823
    %vm2885 = vcmp.gt.f32.partialorder %v2873, %v2824
    %vm2886 = vcmp.gt.f32.partialorder %v2876, %v2825
    %vm2887 = vcmp.gt.f32.partialorder %v2878, %v2826
    %s2888 = sld [smem:[#allocation8 + $0x8]]
    %v2889 = vstv %s2888
    %v2890 = vsel %vm2880, %v2889, %v2801
    %v2891 = vsel %vm2881, %v2889, %v2802
    %v2892 = vsel %vm2882, %v2889, %v2803
    %v2893 = vsel %vm2883, %v2889, %v2804
    %v2894 = vsel %vm2884, %v2889, %v2805
    %v2895 = vsel %vm2885, %v2889, %v2806
    %v2896 = vsel %vm2886, %v2889, %v2807
    %v2897 = vsel %vm2887, %v2889, %v2808
    %s2898 = sld [smem:[#allocation9 + $0x8]]
    %v2899 = vstv %s2898
    %v2900 = vsel %vm2880, %v2899, %v2811
    %v2901 = vsel %vm2881, %v2899, %v2812
    %v2902 = vsel %vm2882, %v2899, %v2813
    %v2903 = vsel %vm2883, %v2899, %v2814
    %v2904 = vsel %vm2884, %v2899, %v2815
    %v2905 = vsel %vm2885, %v2899, %v2816
    %v2906 = vsel %vm2886, %v2899, %v2817
    %v2907 = vsel %vm2887, %v2899, %v2818
    %v2908 = vmax.f32 %v2819, %v2861
    %v2909 = vmax.f32 %v2820, %v2863
    %v2910 = vmax.f32 %v2821, %v2866
    %v2911 = vmax.f32 %v2822, %v2868
    %v2912 = vmax.f32 %v2823, %v2871
    %v2913 = vmax.f32 %v2824, %v2873
    %v2914 = vmax.f32 %v2825, %v2876
    %v2915 = vmax.f32 %v2826, %v2878
    %v2916 = vunpack.c.h.b16 %v1217
    %v2917 = vunpack.c.h.b16 %v1227
    %v2918 = vunpack.c.h.b16 %v1237
    %v2919 = vunpack.c.h.b16 %v1247
    %v2920 = vunpack.c.h.b16 %v1257
    %v2921 = vunpack.c.h.b16 %v1267
    %v2922 = vunpack.c.h.b16 %v1277
    %v2923 = vunpack.c.h.b16 %v1287
    %v2924 = vpack.c.b16 %v2917, %v2916
    %v2925 = vpack.c.b16 %v2919, %v2918
    %v2926 = vpack.c.b16 %v2921, %v2920
    %v2927 = vpack.c.b16 %v2923, %v2922
    %2932 = vmatpush.bf16.msra.mxu0 %v1370
    %2933 = vmatpush.bf16.msra.mxu0 %v1369
    %2934 = vmatpush.bf16.msra.mxu0 %v1368
    %2935 = vmatpush.bf16.msra.mxu0 %v1367
    %2936 = vmatpush.bf16.msra.mxu0 %v1366
    %2937 = vmatpush.bf16.msra.mxu0 %v1365
    %2938 = vmatpush.bf16.msra.mxu0 %v1364
    %2939 = vmatpush.bf16.msra.mxu0 %v1363
    %2940 = vmatmul.bf16.gmra.mxu0 %v2924
    %v2941 = vpop.f32.mrf.mxu0
    %v2942 = vadd.f32 0.0, %v2941
    %v2943 = vpop.f32.mrf.mxu0
    %v2944 = vadd.f32 0.0, %v2943
    %2945 = vmatmul.bf16.gmra.mxu0 %v2925
    %v2946 = vpop.f32.mrf.mxu0
    %v2947 = vadd.f32 0.0, %v2946
    %v2948 = vpop.f32.mrf.mxu0
    %v2949 = vadd.f32 0.0, %v2948
    %2950 = vmatmul.bf16.gmra.mxu0 %v2926
    %v2951 = vpop.f32.mrf.mxu0
    %v2952 = vadd.f32 0.0, %v2951
    %v2953 = vpop.f32.mrf.mxu0
    %v2954 = vadd.f32 0.0, %v2953
    %2955 = vmatmul.bf16.gmra.mxu0 %v2927
    %v2956 = vpop.f32.mrf.mxu0
    %v2957 = vadd.f32 0.0, %v2956
    %v2958 = vpop.f32.mrf.mxu0
    %v2959 = vadd.f32 0.0, %v2958
    %2960 = vdwg.mxu0
    %vm2961 = vcmp.gt.f32.partialorder %v2942, %v2908
    %vm2962 = vcmp.gt.f32.partialorder %v2944, %v2909
    %vm2963 = vcmp.gt.f32.partialorder %v2947, %v2910
    %vm2964 = vcmp.gt.f32.partialorder %v2949, %v2911
    %vm2965 = vcmp.gt.f32.partialorder %v2952, %v2912
    %vm2966 = vcmp.gt.f32.partialorder %v2954, %v2913
    %vm2967 = vcmp.gt.f32.partialorder %v2957, %v2914
    %vm2968 = vcmp.gt.f32.partialorder %v2959, %v2915
    %s2969 = sld [smem:[#allocation8 + $0x9]]
    %v2970 = vstv %s2969
    %v2971 = vsel %vm2961, %v2970, %v2890
    %v2972 = vsel %vm2962, %v2970, %v2891
    %v2973 = vsel %vm2963, %v2970, %v2892
    %v2974 = vsel %vm2964, %v2970, %v2893
    %v2975 = vsel %vm2965, %v2970, %v2894
    %v2976 = vsel %vm2966, %v2970, %v2895
    %v2977 = vsel %vm2967, %v2970, %v2896
    %v2978 = vsel %vm2968, %v2970, %v2897
    %s2979 = sld [smem:[#allocation9 + $0x9]]
    %v2980 = vstv %s2979
    %v2981 = vsel %vm2961, %v2980, %v2900
    %v2982 = vsel %vm2962, %v2980, %v2901
    %v2983 = vsel %vm2963, %v2980, %v2902
    %v2984 = vsel %vm2964, %v2980, %v2903
    %v2985 = vsel %vm2965, %v2980, %v2904
    %v2986 = vsel %vm2966, %v2980, %v2905
    %v2987 = vsel %vm2967, %v2980, %v2906
    %v2988 = vsel %vm2968, %v2980, %v2907
    %v2989 = vmax.f32 %v2908, %v2942
    %v2990 = vmax.f32 %v2909, %v2944
    %v2991 = vmax.f32 %v2910, %v2947
    %v2992 = vmax.f32 %v2911, %v2949
    %v2993 = vmax.f32 %v2912, %v2952
    %v2994 = vmax.f32 %v2913, %v2954
    %v2995 = vmax.f32 %v2914, %v2957
    %v2996 = vmax.f32 %v2915, %v2959
    %v3005 = vunpack.c.l.b16 %v1218
    %v3006 = vunpack.c.l.b16 %v1228
    %v3007 = vunpack.c.l.b16 %v1238
    %v3008 = vunpack.c.l.b16 %v1248
    %v3009 = vunpack.c.l.b16 %v1258
    %v3010 = vunpack.c.l.b16 %v1268
    %v3011 = vunpack.c.l.b16 %v1278
    %v3012 = vunpack.c.l.b16 %v1288
    %v3013 = vpack.c.b16 %v3006, %v3005
    %v3014 = vpack.c.b16 %v3008, %v3007
    %v3015 = vpack.c.b16 %v3010, %v3009
    %v3016 = vpack.c.b16 %v3012, %v3011
    %3021 = vmatpush.bf16.msra.mxu0 %v1370
    %3022 = vmatpush.bf16.msra.mxu0 %v1369
    %3023 = vmatpush.bf16.msra.mxu0 %v1368
    %3024 = vmatpush.bf16.msra.mxu0 %v1367
    %3025 = vmatpush.bf16.msra.mxu0 %v1366
    %3026 = vmatpush.bf16.msra.mxu0 %v1365
    %3027 = vmatpush.bf16.msra.mxu0 %v1364
    %3028 = vmatpush.bf16.msra.mxu0 %v1363
    %3029 = vmatmul.bf16.gmra.mxu0 %v3013
    %v3030 = vpop.f32.mrf.mxu0
    %v3031 = vadd.f32 0.0, %v3030
    %v3032 = vpop.f32.mrf.mxu0
    %v3033 = vadd.f32 0.0, %v3032
    %3034 = vmatmul.bf16.gmra.mxu0 %v3014
    %v3035 = vpop.f32.mrf.mxu0
    %v3036 = vadd.f32 0.0, %v3035
    %v3037 = vpop.f32.mrf.mxu0
    %v3038 = vadd.f32 0.0, %v3037
    %3039 = vmatmul.bf16.gmra.mxu0 %v3015
    %v3040 = vpop.f32.mrf.mxu0
    %v3041 = vadd.f32 0.0, %v3040
    %v3042 = vpop.f32.mrf.mxu0
    %v3043 = vadd.f32 0.0, %v3042
    %3044 = vmatmul.bf16.gmra.mxu0 %v3016
    %v3045 = vpop.f32.mrf.mxu0
    %v3046 = vadd.f32 0.0, %v3045
    %v3047 = vpop.f32.mrf.mxu0
    %v3048 = vadd.f32 0.0, %v3047
    %3049 = vdwg.mxu0
    %vm3050 = vcmp.gt.f32.partialorder %v3031, %v2989
    %vm3051 = vcmp.gt.f32.partialorder %v3033, %v2990
    %vm3052 = vcmp.gt.f32.partialorder %v3036, %v2991
    %vm3053 = vcmp.gt.f32.partialorder %v3038, %v2992
    %vm3054 = vcmp.gt.f32.partialorder %v3041, %v2993
    %vm3055 = vcmp.gt.f32.partialorder %v3043, %v2994
    %vm3056 = vcmp.gt.f32.partialorder %v3046, %v2995
    %vm3057 = vcmp.gt.f32.partialorder %v3048, %v2996
    %s3058 = sld [smem:[#allocation8 + $0xa]]
    %v3059 = vstv %s3058
    %v3060 = vsel %vm3050, %v3059, %v2971
    %v3061 = vsel %vm3051, %v3059, %v2972
    %v3062 = vsel %vm3052, %v3059, %v2973
    %v3063 = vsel %vm3053, %v3059, %v2974
    %v3064 = vsel %vm3054, %v3059, %v2975
    %v3065 = vsel %vm3055, %v3059, %v2976
    %v3066 = vsel %vm3056, %v3059, %v2977
    %v3067 = vsel %vm3057, %v3059, %v2978
    %s3068 = sld [smem:[#allocation9 + $0xa]]
    %v3069 = vstv %s3068
    %v3070 = vsel %vm3050, %v3069, %v2981
    %v3071 = vsel %vm3051, %v3069, %v2982
    %v3072 = vsel %vm3052, %v3069, %v2983
    %v3073 = vsel %vm3053, %v3069, %v2984
    %v3074 = vsel %vm3054, %v3069, %v2985
    %v3075 = vsel %vm3055, %v3069, %v2986
    %v3076 = vsel %vm3056, %v3069, %v2987
    %v3077 = vsel %vm3057, %v3069, %v2988
    %v3078 = vmax.f32 %v2989, %v3031
    %v3079 = vmax.f32 %v2990, %v3033
    %v3080 = vmax.f32 %v2991, %v3036
    %v3081 = vmax.f32 %v2992, %v3038
    %v3082 = vmax.f32 %v2993, %v3041
    %v3083 = vmax.f32 %v2994, %v3043
    %v3084 = vmax.f32 %v2995, %v3046
    %v3085 = vmax.f32 %v2996, %v3048
    %v3086 = vunpack.c.h.b16 %v1218
    %v3087 = vunpack.c.h.b16 %v1228
    %v3088 = vunpack.c.h.b16 %v1238
    %v3089 = vunpack.c.h.b16 %v1248
    %v3090 = vunpack.c.h.b16 %v1258
    %v3091 = vunpack.c.h.b16 %v1268
    %v3092 = vunpack.c.h.b16 %v1278
    %v3093 = vunpack.c.h.b16 %v1288
    %v3094 = vpack.c.b16 %v3087, %v3086
    %v3095 = vpack.c.b16 %v3089, %v3088
    %v3096 = vpack.c.b16 %v3091, %v3090
    %v3097 = vpack.c.b16 %v3093, %v3092
    %3102 = vmatpush.bf16.msra.mxu0 %v1370
    %3103 = vmatpush.bf16.msra.mxu0 %v1369
    %3104 = vmatpush.bf16.msra.mxu0 %v1368
    %3105 = vmatpush.bf16.msra.mxu0 %v1367
    %3106 = vmatpush.bf16.msra.mxu0 %v1366
    %3107 = vmatpush.bf16.msra.mxu0 %v1365
    %3108 = vmatpush.bf16.msra.mxu0 %v1364
    %3109 = vmatpush.bf16.msra.mxu0 %v1363
    %3110 = vmatmul.bf16.gmra.mxu0 %v3094
    %v3111 = vpop.f32.mrf.mxu0
    %v3112 = vadd.f32 0.0, %v3111
    %v3113 = vpop.f32.mrf.mxu0
    %v3114 = vadd.f32 0.0, %v3113
    %3115 = vmatmul.bf16.gmra.mxu0 %v3095
    %v3116 = vpop.f32.mrf.mxu0
    %v3117 = vadd.f32 0.0, %v3116
    %v3118 = vpop.f32.mrf.mxu0
    %v3119 = vadd.f32 0.0, %v3118
    %3120 = vmatmul.bf16.gmra.mxu0 %v3096
    %v3121 = vpop.f32.mrf.mxu0
    %v3122 = vadd.f32 0.0, %v3121
    %v3123 = vpop.f32.mrf.mxu0
    %v3124 = vadd.f32 0.0, %v3123
    %3125 = vmatmul.bf16.gmra.mxu0 %v3097
    %v3126 = vpop.f32.mrf.mxu0
    %v3127 = vadd.f32 0.0, %v3126
    %v3128 = vpop.f32.mrf.mxu0
    %v3129 = vadd.f32 0.0, %v3128
    %3130 = vdwg.mxu0
    %vm3131 = vcmp.gt.f32.partialorder %v3112, %v3078
    %vm3132 = vcmp.gt.f32.partialorder %v3114, %v3079
    %vm3133 = vcmp.gt.f32.partialorder %v3117, %v3080
    %vm3134 = vcmp.gt.f32.partialorder %v3119, %v3081
    %vm3135 = vcmp.gt.f32.partialorder %v3122, %v3082
    %vm3136 = vcmp.gt.f32.partialorder %v3124, %v3083
    %vm3137 = vcmp.gt.f32.partialorder %v3127, %v3084
    %vm3138 = vcmp.gt.f32.partialorder %v3129, %v3085
    %s3139 = sld [smem:[#allocation8 + $0xb]]
    %v3140 = vstv %s3139
    %v3141 = vsel %vm3131, %v3140, %v3060
    %v3142 = vsel %vm3132, %v3140, %v3061
    %v3143 = vsel %vm3133, %v3140, %v3062
    %v3144 = vsel %vm3134, %v3140, %v3063
    %v3145 = vsel %vm3135, %v3140, %v3064
    %v3146 = vsel %vm3136, %v3140, %v3065
    %v3147 = vsel %vm3137, %v3140, %v3066
    %v3148 = vsel %vm3138, %v3140, %v3067
    %s3149 = sld [smem:[#allocation9 + $0xb]]
    %v3150 = vstv %s3149
    %v3151 = vsel %vm3131, %v3150, %v3070
    %v3152 = vsel %vm3132, %v3150, %v3071
    %v3153 = vsel %vm3133, %v3150, %v3072
    %v3154 = vsel %vm3134, %v3150, %v3073
    %v3155 = vsel %vm3135, %v3150, %v3074
    %v3156 = vsel %vm3136, %v3150, %v3075
    %v3157 = vsel %vm3137, %v3150, %v3076
    %v3158 = vsel %vm3138, %v3150, %v3077
    %v3159 = vmax.f32 %v3078, %v3112
    %v3160 = vmax.f32 %v3079, %v3114
    %v3161 = vmax.f32 %v3080, %v3117
    %v3162 = vmax.f32 %v3081, %v3119
    %v3163 = vmax.f32 %v3082, %v3122
    %v3164 = vmax.f32 %v3083, %v3124
    %v3165 = vmax.f32 %v3084, %v3127
    %v3166 = vmax.f32 %v3085, %v3129
    %v3175 = vunpack.c.l.b16 %v1219
    %v3176 = vunpack.c.l.b16 %v1229
    %v3177 = vunpack.c.l.b16 %v1239
    %v3178 = vunpack.c.l.b16 %v1249
    %v3179 = vunpack.c.l.b16 %v1259
    %v3180 = vunpack.c.l.b16 %v1269
    %v3181 = vunpack.c.l.b16 %v1279
    %v3182 = vunpack.c.l.b16 %v1289
    %v3183 = vpack.c.b16 %v3176, %v3175
    %v3184 = vpack.c.b16 %v3178, %v3177
    %v3185 = vpack.c.b16 %v3180, %v3179
    %v3186 = vpack.c.b16 %v3182, %v3181
    %3191 = vmatpush.bf16.msra.mxu0 %v1370
    %3192 = vmatpush.bf16.msra.mxu0 %v1369
    %3193 = vmatpush.bf16.msra.mxu0 %v1368
    %3194 = vmatpush.bf16.msra.mxu0 %v1367
    %3195 = vmatpush.bf16.msra.mxu0 %v1366
    %3196 = vmatpush.bf16.msra.mxu0 %v1365
    %3197 = vmatpush.bf16.msra.mxu0 %v1364
    %3198 = vmatpush.bf16.msra.mxu0 %v1363
    %3199 = vmatmul.bf16.gmra.mxu0 %v3183
    %v3200 = vpop.f32.mrf.mxu0
    %v3201 = vadd.f32 0.0, %v3200
    %v3202 = vpop.f32.mrf.mxu0
    %v3203 = vadd.f32 0.0, %v3202
    %3204 = vmatmul.bf16.gmra.mxu0 %v3184
    %v3205 = vpop.f32.mrf.mxu0
    %v3206 = vadd.f32 0.0, %v3205
    %v3207 = vpop.f32.mrf.mxu0
    %v3208 = vadd.f32 0.0, %v3207
    %3209 = vmatmul.bf16.gmra.mxu0 %v3185
    %v3210 = vpop.f32.mrf.mxu0
    %v3211 = vadd.f32 0.0, %v3210
    %v3212 = vpop.f32.mrf.mxu0
    %v3213 = vadd.f32 0.0, %v3212
    %3214 = vmatmul.bf16.gmra.mxu0 %v3186
    %v3215 = vpop.f32.mrf.mxu0
    %v3216 = vadd.f32 0.0, %v3215
    %v3217 = vpop.f32.mrf.mxu0
    %v3218 = vadd.f32 0.0, %v3217
    %3219 = vdwg.mxu0
    %vm3220 = vcmp.gt.f32.partialorder %v3201, %v3159
    %vm3221 = vcmp.gt.f32.partialorder %v3203, %v3160
    %vm3222 = vcmp.gt.f32.partialorder %v3206, %v3161
    %vm3223 = vcmp.gt.f32.partialorder %v3208, %v3162
    %vm3224 = vcmp.gt.f32.partialorder %v3211, %v3163
    %vm3225 = vcmp.gt.f32.partialorder %v3213, %v3164
    %vm3226 = vcmp.gt.f32.partialorder %v3216, %v3165
    %vm3227 = vcmp.gt.f32.partialorder %v3218, %v3166
    %s3228 = sld [smem:[#allocation8 + $0xc]]
    %v3229 = vstv %s3228
    %v3230 = vsel %vm3220, %v3229, %v3141
    %v3231 = vsel %vm3221, %v3229, %v3142
    %v3232 = vsel %vm3222, %v3229, %v3143
    %v3233 = vsel %vm3223, %v3229, %v3144
    %v3234 = vsel %vm3224, %v3229, %v3145
    %v3235 = vsel %vm3225, %v3229, %v3146
    %v3236 = vsel %vm3226, %v3229, %v3147
    %v3237 = vsel %vm3227, %v3229, %v3148
    %s3238 = sld [smem:[#allocation9 + $0xc]]
    %v3239 = vstv %s3238
    %v3240 = vsel %vm3220, %v3239, %v3151
    %v3241 = vsel %vm3221, %v3239, %v3152
    %v3242 = vsel %vm3222, %v3239, %v3153
    %v3243 = vsel %vm3223, %v3239, %v3154
    %v3244 = vsel %vm3224, %v3239, %v3155
    %v3245 = vsel %vm3225, %v3239, %v3156
    %v3246 = vsel %vm3226, %v3239, %v3157
    %v3247 = vsel %vm3227, %v3239, %v3158
    %v3248 = vmax.f32 %v3159, %v3201
    %v3249 = vmax.f32 %v3160, %v3203
    %v3250 = vmax.f32 %v3161, %v3206
    %v3251 = vmax.f32 %v3162, %v3208
    %v3252 = vmax.f32 %v3163, %v3211
    %v3253 = vmax.f32 %v3164, %v3213
    %v3254 = vmax.f32 %v3165, %v3216
    %v3255 = vmax.f32 %v3166, %v3218
    %v3256 = vunpack.c.h.b16 %v1219
    %v3257 = vunpack.c.h.b16 %v1229
    %v3258 = vunpack.c.h.b16 %v1239
    %v3259 = vunpack.c.h.b16 %v1249
    %v3260 = vunpack.c.h.b16 %v1259
    %v3261 = vunpack.c.h.b16 %v1269
    %v3262 = vunpack.c.h.b16 %v1279
    %v3263 = vunpack.c.h.b16 %v1289
    %v3264 = vpack.c.b16 %v3257, %v3256
    %v3265 = vpack.c.b16 %v3259, %v3258
    %v3266 = vpack.c.b16 %v3261, %v3260
    %v3267 = vpack.c.b16 %v3263, %v3262
    %3272 = vmatpush.bf16.msra.mxu0 %v1370
    %3273 = vmatpush.bf16.msra.mxu0 %v1369
    %3274 = vmatpush.bf16.msra.mxu0 %v1368
    %3275 = vmatpush.bf16.msra.mxu0 %v1367
    %3276 = vmatpush.bf16.msra.mxu0 %v1366
    %3277 = vmatpush.bf16.msra.mxu0 %v1365
    %3278 = vmatpush.bf16.msra.mxu0 %v1364
    %3279 = vmatpush.bf16.msra.mxu0 %v1363
    %3280 = vmatmul.bf16.gmra.mxu0 %v3264
    %v3281 = vpop.f32.mrf.mxu0
    %v3282 = vadd.f32 0.0, %v3281
    %v3283 = vpop.f32.mrf.mxu0
    %v3284 = vadd.f32 0.0, %v3283
    %3285 = vmatmul.bf16.gmra.mxu0 %v3265
    %v3286 = vpop.f32.mrf.mxu0
    %v3287 = vadd.f32 0.0, %v3286
    %v3288 = vpop.f32.mrf.mxu0
    %v3289 = vadd.f32 0.0, %v3288
    %3290 = vmatmul.bf16.gmra.mxu0 %v3266
    %v3291 = vpop.f32.mrf.mxu0
    %v3292 = vadd.f32 0.0, %v3291
    %v3293 = vpop.f32.mrf.mxu0
    %v3294 = vadd.f32 0.0, %v3293
    %3295 = vmatmul.bf16.gmra.mxu0 %v3267
    %v3296 = vpop.f32.mrf.mxu0
    %v3297 = vadd.f32 0.0, %v3296
    %v3298 = vpop.f32.mrf.mxu0
    %v3299 = vadd.f32 0.0, %v3298
    %3300 = vdwg.mxu0
    %vm3301 = vcmp.gt.f32.partialorder %v3282, %v3248
    %vm3302 = vcmp.gt.f32.partialorder %v3284, %v3249
    %vm3303 = vcmp.gt.f32.partialorder %v3287, %v3250
    %vm3304 = vcmp.gt.f32.partialorder %v3289, %v3251
    %vm3305 = vcmp.gt.f32.partialorder %v3292, %v3252
    %vm3306 = vcmp.gt.f32.partialorder %v3294, %v3253
    %vm3307 = vcmp.gt.f32.partialorder %v3297, %v3254
    %vm3308 = vcmp.gt.f32.partialorder %v3299, %v3255
    %s3309 = sld [smem:[#allocation8 + $0xd]]
    %v3310 = vstv %s3309
    %v3311 = vsel %vm3301, %v3310, %v3230
    %v3312 = vsel %vm3302, %v3310, %v3231
    %v3313 = vsel %vm3303, %v3310, %v3232
    %v3314 = vsel %vm3304, %v3310, %v3233
    %v3315 = vsel %vm3305, %v3310, %v3234
    %v3316 = vsel %vm3306, %v3310, %v3235
    %v3317 = vsel %vm3307, %v3310, %v3236
    %v3318 = vsel %vm3308, %v3310, %v3237
    %s3319 = sld [smem:[#allocation9 + $0xd]]
    %v3320 = vstv %s3319
    %v3321 = vsel %vm3301, %v3320, %v3240
    %v3322 = vsel %vm3302, %v3320, %v3241
    %v3323 = vsel %vm3303, %v3320, %v3242
    %v3324 = vsel %vm3304, %v3320, %v3243
    %v3325 = vsel %vm3305, %v3320, %v3244
    %v3326 = vsel %vm3306, %v3320, %v3245
    %v3327 = vsel %vm3307, %v3320, %v3246
    %v3328 = vsel %vm3308, %v3320, %v3247
    %v3329 = vmax.f32 %v3248, %v3282
    %v3330 = vmax.f32 %v3249, %v3284
    %v3331 = vmax.f32 %v3250, %v3287
    %v3332 = vmax.f32 %v3251, %v3289
    %v3333 = vmax.f32 %v3252, %v3292
    %v3334 = vmax.f32 %v3253, %v3294
    %v3335 = vmax.f32 %v3254, %v3297
    %v3336 = vmax.f32 %v3255, %v3299
    %v3345 = vunpack.c.l.b16 %v1220
    %v3346 = vunpack.c.l.b16 %v1230
    %v3347 = vunpack.c.l.b16 %v1240
    %v3348 = vunpack.c.l.b16 %v1250
    %v3349 = vunpack.c.l.b16 %v1260
    %v3350 = vunpack.c.l.b16 %v1270
    %v3351 = vunpack.c.l.b16 %v1280
    %v3352 = vunpack.c.l.b16 %v1290
    %v3353 = vpack.c.b16 %v3346, %v3345
    %v3354 = vpack.c.b16 %v3348, %v3347
    %v3355 = vpack.c.b16 %v3350, %v3349
    %v3356 = vpack.c.b16 %v3352, %v3351
    %3361 = vmatpush.bf16.msra.mxu0 %v1370
    %3362 = vmatpush.bf16.msra.mxu0 %v1369
    %3363 = vmatpush.bf16.msra.mxu0 %v1368
    %3364 = vmatpush.bf16.msra.mxu0 %v1367
    %3365 = vmatpush.bf16.msra.mxu0 %v1366
    %3366 = vmatpush.bf16.msra.mxu0 %v1365
    %3367 = vmatpush.bf16.msra.mxu0 %v1364
    %3368 = vmatpush.bf16.msra.mxu0 %v1363
    %3369 = vmatmul.bf16.gmra.mxu0 %v3353
    %v3370 = vpop.f32.mrf.mxu0
    %v3371 = vadd.f32 0.0, %v3370
    %v3372 = vpop.f32.mrf.mxu0
    %v3373 = vadd.f32 0.0, %v3372
    %3374 = vmatmul.bf16.gmra.mxu0 %v3354
    %v3375 = vpop.f32.mrf.mxu0
    %v3376 = vadd.f32 0.0, %v3375
    %v3377 = vpop.f32.mrf.mxu0
    %v3378 = vadd.f32 0.0, %v3377
    %3379 = vmatmul.bf16.gmra.mxu0 %v3355
    %v3380 = vpop.f32.mrf.mxu0
    %v3381 = vadd.f32 0.0, %v3380
    %v3382 = vpop.f32.mrf.mxu0
    %v3383 = vadd.f32 0.0, %v3382
    %3384 = vmatmul.bf16.gmra.mxu0 %v3356
    %v3385 = vpop.f32.mrf.mxu0
    %v3386 = vadd.f32 0.0, %v3385
    %v3387 = vpop.f32.mrf.mxu0
    %v3388 = vadd.f32 0.0, %v3387
    %3389 = vdwg.mxu0
    %vm3390 = vcmp.gt.f32.partialorder %v3371, %v3329
    %vm3391 = vcmp.gt.f32.partialorder %v3373, %v3330
    %vm3392 = vcmp.gt.f32.partialorder %v3376, %v3331
    %vm3393 = vcmp.gt.f32.partialorder %v3378, %v3332
    %vm3394 = vcmp.gt.f32.partialorder %v3381, %v3333
    %vm3395 = vcmp.gt.f32.partialorder %v3383, %v3334
    %vm3396 = vcmp.gt.f32.partialorder %v3386, %v3335
    %vm3397 = vcmp.gt.f32.partialorder %v3388, %v3336
    %s3398 = sld [smem:[#allocation8 + $0xe]]
    %v3399 = vstv %s3398
    %v3400 = vsel %vm3390, %v3399, %v3311
    %v3401 = vsel %vm3391, %v3399, %v3312
    %v3402 = vsel %vm3392, %v3399, %v3313
    %v3403 = vsel %vm3393, %v3399, %v3314
    %v3404 = vsel %vm3394, %v3399, %v3315
    %v3405 = vsel %vm3395, %v3399, %v3316
    %v3406 = vsel %vm3396, %v3399, %v3317
    %v3407 = vsel %vm3397, %v3399, %v3318
    %s3408 = sld [smem:[#allocation9 + $0xe]]
    %v3409 = vstv %s3408
    %v3410 = vsel %vm3390, %v3409, %v3321
    %v3411 = vsel %vm3391, %v3409, %v3322
    %v3412 = vsel %vm3392, %v3409, %v3323
    %v3413 = vsel %vm3393, %v3409, %v3324
    %v3414 = vsel %vm3394, %v3409, %v3325
    %v3415 = vsel %vm3395, %v3409, %v3326
    %v3416 = vsel %vm3396, %v3409, %v3327
    %v3417 = vsel %vm3397, %v3409, %v3328
    %v3418 = vmax.f32 %v3329, %v3371
    %v3419 = vmax.f32 %v3330, %v3373
    %v3420 = vmax.f32 %v3331, %v3376
    %v3421 = vmax.f32 %v3332, %v3378
    %v3422 = vmax.f32 %v3333, %v3381
    %v3423 = vmax.f32 %v3334, %v3383
    %v3424 = vmax.f32 %v3335, %v3386
    %v3425 = vmax.f32 %v3336, %v3388
    %v3426 = vunpack.c.h.b16 %v1220
    %v3427 = vunpack.c.h.b16 %v1230
    %v3428 = vunpack.c.h.b16 %v1240
    %v3429 = vunpack.c.h.b16 %v1250
    %v3430 = vunpack.c.h.b16 %v1260
    %v3431 = vunpack.c.h.b16 %v1270
    %v3432 = vunpack.c.h.b16 %v1280
    %v3433 = vunpack.c.h.b16 %v1290
    %v3434 = vpack.c.b16 %v3427, %v3426
    %v3435 = vpack.c.b16 %v3429, %v3428
    %v3436 = vpack.c.b16 %v3431, %v3430
    %v3437 = vpack.c.b16 %v3433, %v3432
    %3442 = vmatpush.bf16.msra.mxu0 %v1370
    %3443 = vmatpush.bf16.msra.mxu0 %v1369
    %3444 = vmatpush.bf16.msra.mxu0 %v1368
    %3445 = vmatpush.bf16.msra.mxu0 %v1367
    %3446 = vmatpush.bf16.msra.mxu0 %v1366
    %3447 = vmatpush.bf16.msra.mxu0 %v1365
    %3448 = vmatpush.bf16.msra.mxu0 %v1364
    %3449 = vmatpush.bf16.msra.mxu0 %v1363
    %3450 = vmatmul.bf16.gmra.mxu0 %v3434
    %v3451 = vpop.f32.mrf.mxu0
    %v3452 = vadd.f32 0.0, %v3451
    %v3453 = vpop.f32.mrf.mxu0
    %v3454 = vadd.f32 0.0, %v3453
    %3455 = vmatmul.bf16.gmra.mxu0 %v3435
    %v3456 = vpop.f32.mrf.mxu0
    %v3457 = vadd.f32 0.0, %v3456
    %v3458 = vpop.f32.mrf.mxu0
    %v3459 = vadd.f32 0.0, %v3458
    %3460 = vmatmul.bf16.gmra.mxu0 %v3436
    %v3461 = vpop.f32.mrf.mxu0
    %v3462 = vadd.f32 0.0, %v3461
    %v3463 = vpop.f32.mrf.mxu0
    %v3464 = vadd.f32 0.0, %v3463
    %3465 = vmatmul.bf16.gmra.mxu0 %v3437
    %v3466 = vpop.f32.mrf.mxu0
    %v3467 = vadd.f32 0.0, %v3466
    %v3468 = vpop.f32.mrf.mxu0
    %v3469 = vadd.f32 0.0, %v3468
    %3470 = vdwg.mxu0
    %vm3471 = vcmp.gt.f32.partialorder %v3452, %v3418
    %vm3472 = vcmp.gt.f32.partialorder %v3454, %v3419
    %vm3473 = vcmp.gt.f32.partialorder %v3457, %v3420
    %vm3474 = vcmp.gt.f32.partialorder %v3459, %v3421
    %vm3475 = vcmp.gt.f32.partialorder %v3462, %v3422
    %vm3476 = vcmp.gt.f32.partialorder %v3464, %v3423
    %vm3477 = vcmp.gt.f32.partialorder %v3467, %v3424
    %vm3478 = vcmp.gt.f32.partialorder %v3469, %v3425
    %s3479 = sld [smem:[#allocation8 + $0xf]]
    %v3480 = vstv %s3479
    %v3481 = vsel %vm3471, %v3480, %v3400
    %v3482 = vsel %vm3472, %v3480, %v3401
    %v3483 = vsel %vm3473, %v3480, %v3402
    %v3484 = vsel %vm3474, %v3480, %v3403
    %v3485 = vsel %vm3475, %v3480, %v3404
    %v3486 = vsel %vm3476, %v3480, %v3405
    %v3487 = vsel %vm3477, %v3480, %v3406
    %v3488 = vsel %vm3478, %v3480, %v3407
    %s3489 = sld [smem:[#allocation9 + $0xf]]
    %v3490 = vstv %s3489
    %v3491 = vsel %vm3471, %v3490, %v3410
    %v3492 = vsel %vm3472, %v3490, %v3411
    %v3493 = vsel %vm3473, %v3490, %v3412
    %v3494 = vsel %vm3474, %v3490, %v3413
    %v3495 = vsel %vm3475, %v3490, %v3414
    %v3496 = vsel %vm3476, %v3490, %v3415
    %v3497 = vsel %vm3477, %v3490, %v3416
    %v3498 = vsel %vm3478, %v3490, %v3417
    %v3499 = vmul.f32 %v3491, %v1920
    %v3500 = vmul.f32 %v3492, %v1922
    %v3501 = vmul.f32 %v3493, %v1925
    %v3502 = vmul.f32 %v3494, %v1927
    %v3503 = vmul.f32 %v3495, %v1930
    %v3504 = vmul.f32 %v3496, %v1932
    %v3505 = vmul.f32 %v3497, %v1935
    %v3506 = vmul.f32 %v3498, %v1937
    %v3507 = vadd.f32 %v3481, %v3499
    %v3508 = vadd.f32 %v3482, %v3500
    %v3509 = vadd.f32 %v3483, %v3501
    %v3510 = vadd.f32 %v3484, %v3502
    %v3511 = vadd.f32 %v3485, %v3503
    %v3512 = vadd.f32 %v3486, %v3504
    %v3513 = vadd.f32 %v3487, %v3505
    %v3514 = vadd.f32 %v3488, %v3506
    %v3515 = vsub.f32 1.0, %v1607
    %v3516 = vsub.f32 1.0, %v1608
    %v3517 = vsub.f32 1.0, %v1609
    %v3518 = vsub.f32 1.0, %v1610
    %v3519 = vsub.f32 1.0, %v1611
    %v3520 = vsub.f32 1.0, %v1612
    %v3521 = vsub.f32 1.0, %v1613
    %v3522 = vsub.f32 1.0, %v1614
    %v3523 = vmul.f32 %v3515, %v3507
    %v3524 = vmul.f32 %v3516, %v3508
    %v3525 = vmul.f32 %v3517, %v3509
    %v3526 = vmul.f32 %v3518, %v3510
    %v3527 = vmul.f32 %v3519, %v3511
    %v3528 = vmul.f32 %v3520, %v3512
    %v3529 = vmul.f32 %v3521, %v3513
    %v3530 = vmul.f32 %v3522, %v3514
    %v3531 = vadd.f32 %v2171, %v3523
    %v3532 = vadd.f32 %v2172, %v3524
    %v3533 = vadd.f32 %v2173, %v3525
    %v3534 = vadd.f32 %v2174, %v3526
    %v3535 = vadd.f32 %v2175, %v3527
    %v3536 = vadd.f32 %v2176, %v3528
    %v3537 = vadd.f32 %v2177, %v3529
    %v3538 = vadd.f32 %v2178, %v3530
    %v3539 = vmin.f32 %v3531, %v3535
    %v3540 = vmin.f32 %v3532, %v3536
    %v3541 = vmin.f32 %v3533, %v3537
    %v3542 = vmin.f32 %v3534, %v3538
    %v3543 = vmin.f32 %v3539, %v3540
    %v3544 = vmin.f32 %v3541, %v3542
    %v3545 = vmin.f32 %v3543, %v3544
    %3546 = vmin.xlane.f32.xlu0 %v3545
    %v3547 = vpop.xlane.xlu0 %3546
    %v3548 = vrot.slane %v3547, 4
    %v3549 = vmin.f32 %v3547, %v3548
    %v3550 = vrot.slane %v3549, 2
    %v3551 = vmin.f32 %v3549, %v3550
    %v3552 = vrot.slane %v3551, 1
    %v3553 = vmin.f32 %v3551, %v3552
    %s3554 = vtos %v3553
    %v3555 = vmax.f32 %v3531, %v3535
    %v3556 = vmax.f32 %v3532, %v3536
    %v3557 = vmax.f32 %v3533, %v3537
    %v3558 = vmax.f32 %v3534, %v3538
    %v3559 = vmax.f32 %v3555, %v3556
    %v3560 = vmax.f32 %v3557, %v3558
    %v3561 = vmax.f32 %v3559, %v3560
    %3562 = vmax.xlane.f32.xlu0 %v3561
    %v3563 = vpop.xlane.xlu0 %3562
    %v3564 = vrot.slane %v3563, 4
    %v3565 = vmax.f32 %v3563, %v3564
    %v3566 = vrot.slane %v3565, 2
    %v3567 = vmax.f32 %v3565, %v3566
    %v3568 = vrot.slane %v3567, 1
    %v3569 = vmax.f32 %v3567, %v3568
    %s3570 = vtos %v3569
    %s3571 = ssub.f32 %s3570, %s3554
    %s3572 = sadd.f32 %s3571, 1e-08
    %v3573 = vstv %s3554
    %v3574 = vsub.f32 %v3531, %v3573
    %v3575 = vsub.f32 %v3532, %v3573
    %v3576 = vsub.f32 %v3533, %v3573
    %v3577 = vsub.f32 %v3534, %v3573
    %v3578 = vsub.f32 %v3535, %v3573
    %v3579 = vsub.f32 %v3536, %v3573
    %v3580 = vsub.f32 %v3537, %v3573
    %v3581 = vsub.f32 %v3538, %v3573
    %v3582 = vstv %s3572
    %v3583 = vrcp.pop %v3582
    %v3584 = vmul.f32 %v3582, %v3583
    %v3585 = vsub.f32 1.0, %v3584
    %v3586 = vmul.f32 %v3583, %v3585
    %v3587 = vadd.f32 %v3583, %v3586
    %vm3588 = vweird.f32 %v3582
    %vm3589 = vweird.f32 %v3583
    %vm3590 = vmor %vm3588, %vm3589
    %v3591 = vsel %vm3590, %v3583, %v3587
    %v3592 = vand.u32 2147483647, %v3582
    %vm3593 = vcmp.eq.f32.partialorder %v3592, 8.507059e+37
    %v3594 = vand.u32 %v3582, 2147483648
    %v3595 = vor.u32 1.1754944e-38, %v3594
    %v3596 = vsel %vm3593, %v3595, %v3591
    %s3597 = vtos %v3596
    %v3598 = vstv %s3597
    %v3599 = vmul.f32 %v3574, %v3598
    %v3600 = vmul.f32 %v3575, %v3598
    %v3601 = vmul.f32 %v3576, %v3598
    %v3602 = vmul.f32 %v3577, %v3598
    %v3603 = vmul.f32 %v3578, %v3598
    %v3604 = vmul.f32 %v3579, %v3598
    %v3605 = vmul.f32 %v3580, %v3598
    %v3606 = vmul.f32 %v3581, %v3598
    %s3607 = sld [smem:[#allocation2]]
    %v3608 = vmax.f32 %v3599, 1e-08
    %v3609 = vmax.f32 %v3600, 1e-08
    %v3610 = vmax.f32 %v3601, 1e-08
    %v3611 = vmax.f32 %v3602, 1e-08
    %v3612 = vmax.f32 %v3603, 1e-08
    %v3613 = vmax.f32 %v3604, 1e-08
    %v3614 = vmax.f32 %v3605, 1e-08
    %v3615 = vmax.f32 %v3606, 1e-08
    %v3616 = vlog2.pop %v3608
    %v3617 = vmul.f32 %v3616, 0.6931472
    %v3618 = vlog2.pop %v3609
    %v3619 = vmul.f32 %v3618, 0.6931472
    %v3620 = vlog2.pop %v3610
    %v3621 = vmul.f32 %v3620, 0.6931472
    %v3622 = vlog2.pop %v3611
    %v3623 = vmul.f32 %v3622, 0.6931472
    %v3624 = vlog2.pop %v3612
    %v3625 = vmul.f32 %v3624, 0.6931472
    %v3626 = vlog2.pop %v3613
    %v3627 = vmul.f32 %v3626, 0.6931472
    %v3628 = vlog2.pop %v3614
    %v3629 = vmul.f32 %v3628, 0.6931472
    %v3630 = vlog2.pop %v3615
    %v3631 = vmul.f32 %v3630, 0.6931472
    %v3632 = vstv %s3607
    %v3633 = vmul.f32 %v3632, %v3617
    %v3634 = vmul.f32 %v3632, %v3619
    %v3635 = vmul.f32 %v3632, %v3621
    %v3636 = vmul.f32 %v3632, %v3623
    %v3637 = vmul.f32 %v3632, %v3625
    %v3638 = vmul.f32 %v3632, %v3627
    %v3639 = vmul.f32 %v3632, %v3629
    %v3640 = vmul.f32 %v3632, %v3631
    %v3641 = vmul.f32 %v3633, 1.442695
    %v3642 = vpow.pop %v3641
    %v3643 = vmul.f32 %v3634, 1.442695
    %v3644 = vpow.pop %v3643
    %v3645 = vmul.f32 %v3635, 1.442695
    %v3646 = vpow.pop %v3645
    %v3647 = vmul.f32 %v3636, 1.442695
    %v3648 = vpow.pop %v3647
    %v3649 = vmul.f32 %v3637, 1.442695
    %v3650 = vpow.pop %v3649
    %v3651 = vmul.f32 %v3638, 1.442695
    %v3652 = vpow.pop %v3651
    %v3653 = vmul.f32 %v3639, 1.442695
    %v3654 = vpow.pop %v3653
    %v3655 = vmul.f32 %v3640, 1.442695
    %v3656 = vpow.pop %v3655
    %v3657 = vstv %s3572
    %v3658 = vmul.f32 %v3642, %v3657
    %v3659 = vmul.f32 %v3644, %v3657
    %v3660 = vmul.f32 %v3646, %v3657
    %v3661 = vmul.f32 %v3648, %v3657
    %v3662 = vmul.f32 %v3650, %v3657
    %v3663 = vmul.f32 %v3652, %v3657
    %v3664 = vmul.f32 %v3654, %v3657
    %v3665 = vmul.f32 %v3656, %v3657
    %v3666 = vadd.f32 %v3658, %v3573
    %v3667 = vadd.f32 %v3659, %v3573
    %v3668 = vadd.f32 %v3660, %v3573
    %v3669 = vadd.f32 %v3661, %v3573
    %v3670 = vadd.f32 %v3662, %v3573
    %v3671 = vadd.f32 %v3663, %v3573
    %v3672 = vadd.f32 %v3664, %v3573
    %v3673 = vadd.f32 %v3665, %v3573
    %v3674 = vpack.c.bf16 %v3667, %v3666
    %v3675 = vpack.c.bf16 %v3669, %v3668
    %v3676 = vpack.c.bf16 %v3671, %v3670
    %v3677 = vpack.c.bf16 %v3673, %v3672
    %v3678 = vld [vmem:[%s9] sm:$0xf]
    %v3679 = vld [vmem:[%s9 + $0x4] sm:$0xf]
    %v3680 = vld [vmem:[%s9 + $0x8] sm:$0xf]
    %v3681 = vld [vmem:[%s9 + $0xc] sm:$0xf]
    %v3682 = vld [vmem:[%s9 + $0x10] sm:$0xf]
    %v3683 = vld [vmem:[%s9 + $0x14] sm:$0xf]
    %v3684 = vld [vmem:[%s9 + $0x18] sm:$0xf]
    %v3685 = vld [vmem:[%s9 + $0x1c] sm:$0xf]
    %v3686 = vld [vmem:[%s9 + $0x20] sm:$0xf]
    %v3687 = vld [vmem:[%s9 + $0x24] sm:$0xf]
    %v3688 = vld [vmem:[%s9 + $0x28] sm:$0xf]
    %v3689 = vld [vmem:[%s9 + $0x2c] sm:$0xf]
    %v3690 = vld [vmem:[%s9 + $0x30] sm:$0xf]
    %v3691 = vld [vmem:[%s9 + $0x34] sm:$0xf]
    %v3692 = vld [vmem:[%s9 + $0x38] sm:$0xf]
    %v3693 = vld [vmem:[%s9 + $0x3c] sm:$0xf]
    %v3710 = vunpack.c.l.b16 %v3678
    %v3711 = vunpack.c.l.b16 %v3679
    %v3712 = vunpack.c.l.b16 %v3680
    %v3713 = vunpack.c.l.b16 %v3681
    %v3714 = vunpack.c.l.b16 %v3682
    %v3715 = vunpack.c.l.b16 %v3683
    %v3716 = vunpack.c.l.b16 %v3684
    %v3717 = vunpack.c.l.b16 %v3685
    %v3718 = vunpack.c.l.b16 %v3686
    %v3719 = vunpack.c.l.b16 %v3687
    %v3720 = vunpack.c.l.b16 %v3688
    %v3721 = vunpack.c.l.b16 %v3689
    %v3722 = vunpack.c.l.b16 %v3690
    %v3723 = vunpack.c.l.b16 %v3691
    %v3724 = vunpack.c.l.b16 %v3692
    %v3725 = vunpack.c.l.b16 %v3693
    %v3726 = vpack.c.b16 %v3711, %v3710
    %v3727 = vpack.c.b16 %v3713, %v3712
    %v3728 = vpack.c.b16 %v3715, %v3714
    %v3729 = vpack.c.b16 %v3717, %v3716
    %v3730 = vpack.c.b16 %v3719, %v3718
    %v3731 = vpack.c.b16 %v3721, %v3720
    %v3732 = vpack.c.b16 %v3723, %v3722
    %v3733 = vpack.c.b16 %v3725, %v3724
    %3742 = vmatpush.bf16.msra.mxu0 %v3733
    %3743 = vmatpush.bf16.msra.mxu0 %v3732
    %3744 = vmatpush.bf16.msra.mxu0 %v3731
    %3745 = vmatpush.bf16.msra.mxu0 %v3730
    %3746 = vmatpush.bf16.msra.mxu0 %v3729
    %3747 = vmatpush.bf16.msra.mxu0 %v3728
    %3748 = vmatpush.bf16.msra.mxu0 %v3727
    %3749 = vmatpush.bf16.msra.mxu0 %v3726
    %3750 = vmatmul.bf16.gmra.mxu0 %v3674
    %v3751 = vpop.f32.mrf.mxu0
    %v3752 = vadd.f32 0.0, %v3751
    %v3753 = vpop.f32.mrf.mxu0
    %v3754 = vadd.f32 0.0, %v3753
    %3755 = vmatmul.bf16.gmra.mxu0 %v3675
    %v3756 = vpop.f32.mrf.mxu0
    %v3757 = vadd.f32 0.0, %v3756
    %v3758 = vpop.f32.mrf.mxu0
    %v3759 = vadd.f32 0.0, %v3758
    %3760 = vmatmul.bf16.gmra.mxu0 %v3676
    %v3761 = vpop.f32.mrf.mxu0
    %v3762 = vadd.f32 0.0, %v3761
    %v3763 = vpop.f32.mrf.mxu0
    %v3764 = vadd.f32 0.0, %v3763
    %3765 = vmatmul.bf16.gmra.mxu0 %v3677
    %v3766 = vpop.f32.mrf.mxu0
    %v3767 = vadd.f32 0.0, %v3766
    %v3768 = vpop.f32.mrf.mxu0
    %v3769 = vadd.f32 0.0, %v3768
    %3770 = vdwg.mxu0
    %v3771 = vld [vmem:[%s8] sm:$0xf]
    %v3772 = vld [vmem:[%s8 + $0x4] sm:$0xf]
    %v3773 = vld [vmem:[%s8 + $0x8] sm:$0xf]
    %v3774 = vld [vmem:[%s8 + $0xc] sm:$0xf]
    %v3775 = vld [vmem:[%s8 + $0x10] sm:$0xf]
    %v3776 = vld [vmem:[%s8 + $0x14] sm:$0xf]
    %v3777 = vld [vmem:[%s8 + $0x18] sm:$0xf]
    %v3778 = vld [vmem:[%s8 + $0x1c] sm:$0xf]
    %v3779 = vpack.c.bf16 %v3754, %v3752
    %v3780 = vpack.c.bf16 %v3759, %v3757
    %v3781 = vpack.c.bf16 %v3764, %v3762
    %v3782 = vpack.c.bf16 %v3769, %v3767
    %v3791 = vunpack.c.l.b16 %v3771
    %v3792 = vunpack.c.l.b16 %v3772
    %v3793 = vunpack.c.l.b16 %v3773
    %v3794 = vunpack.c.l.b16 %v3774
    %v3795 = vunpack.c.l.b16 %v3775
    %v3796 = vunpack.c.l.b16 %v3776
    %v3797 = vunpack.c.l.b16 %v3777
    %v3798 = vunpack.c.l.b16 %v3778
    %v3799 = vpack.c.b16 %v3792, %v3791
    %v3800 = vpack.c.b16 %v3794, %v3793
    %v3801 = vpack.c.b16 %v3796, %v3795
    %v3802 = vpack.c.b16 %v3798, %v3797
    %v3804 = vsel %vm618, %v3799, 0
    %v3807 = vsel %vm618, %v3800, 0
    %v3810 = vsel %vm618, %v3801, 0
    %v3813 = vsel %vm618, %v3802, 0
    %3815 = vmatpush.bf16.msra.mxu0 0
    %3816 = vmatpush.bf16.msra.mxu0 0
    %3817 = vmatpush.bf16.msra.mxu0 0
    %3818 = vmatpush.bf16.msra.mxu0 0
    %3819 = vmatpush.bf16.msra.mxu0 %v3782
    %3820 = vmatpush.bf16.msra.mxu0 %v3781
    %3821 = vmatpush.bf16.msra.mxu0 %v3780
    %3822 = vmatpush.bf16.msra.mxu0 %v3779
    %3823 = vmatmul.bf16.gmra.mxu0 %v3804
    %v3824 = vpop.f32.mrf.mxu0
    %v3825 = vadd.f32 0.0, %v3824
    %v3826 = vpop.f32.mrf.mxu0
    %v3827 = vadd.f32 0.0, %v3826
    %3828 = vmatmul.bf16.gmra.mxu0 %v3807
    %v3829 = vpop.f32.mrf.mxu0
    %v3830 = vadd.f32 0.0, %v3829
    %v3831 = vpop.f32.mrf.mxu0
    %v3832 = vadd.f32 0.0, %v3831
    %3833 = vmatmul.bf16.gmra.mxu0 %v3810
    %v3834 = vpop.f32.mrf.mxu0
    %v3835 = vadd.f32 0.0, %v3834
    %v3836 = vpop.f32.mrf.mxu0
    %v3837 = vadd.f32 0.0, %v3836
    %3838 = vmatmul.bf16.gmra.mxu0 %v3813
    %v3839 = vpop.f32.mrf.mxu0
    %v3840 = vadd.f32 0.0, %v3839
    %v3841 = vpop.f32.mrf.mxu0
    %v3842 = vadd.f32 0.0, %v3841
    %3843 = vdwg.mxu0
    %v3844 = vld [vmem:[%s11] sm:$0x1]
    %v3846 = vperm.slane %v3844, 0
    %v3848 = vmul.f32 %v3825, %v3846
    %v3849 = vmul.f32 %v3827, %v3846
    %v3850 = vmul.f32 %v3830, %v3846
    %v3851 = vmul.f32 %v3832, %v3846
    %v3852 = vmul.f32 %v3835, %v3846
    %v3853 = vmul.f32 %v3837, %v3846
    %v3854 = vmul.f32 %v3840, %v3846
    %v3855 = vmul.f32 %v3842, %v3846
    %v3856 = vld [vmem:[%s3] sm:$0xff]
    %v3857 = vld [vmem:[%s3 + $0x8] sm:$0xff]
    %v3858 = vld [vmem:[%s3 + $0x10] sm:$0xff]
    %v3859 = vld [vmem:[%s3 + $0x18] sm:$0xff]
    %v3860 = vld [vmem:[%s3 + $0x20] sm:$0xff]
    %v3861 = vld [vmem:[%s3 + $0x28] sm:$0xff]
    %v3862 = vld [vmem:[%s3 + $0x30] sm:$0xff]
    %v3863 = vld [vmem:[%s3 + $0x38] sm:$0xff]
    %v3864 = vmul.f32 %v3848, %v3856
    %v3865 = vmul.f32 %v3849, %v3857
    %v3866 = vmul.f32 %v3850, %v3858
    %v3867 = vmul.f32 %v3851, %v3859
    %v3868 = vmul.f32 %v3852, %v3860
    %v3869 = vmul.f32 %v3853, %v3861
    %v3870 = vmul.f32 %v3854, %v3862
    %v3871 = vmul.f32 %v3855, %v3863
    %v3872 = vpack.c.bf16 %v3865, %v3864
    %v3873 = vpack.c.bf16 %v3867, %v3866
    %v3874 = vpack.c.bf16 %v3869, %v3868
    %v3875 = vpack.c.bf16 %v3871, %v3870
    %v3876 = vld [vmem:[%s10] sm:$0xf]
    %v3877 = vld [vmem:[%s10 + $0x4] sm:$0xf]
    %v3878 = vld [vmem:[%s10 + $0x8] sm:$0xf]
    %v3879 = vld [vmem:[%s10 + $0xc] sm:$0xf]
    %v3880 = vld [vmem:[%s10 + $0x10] sm:$0xf]
    %v3881 = vld [vmem:[%s10 + $0x14] sm:$0xf]
    %v3882 = vld [vmem:[%s10 + $0x18] sm:$0xf]
    %v3883 = vld [vmem:[%s10 + $0x1c] sm:$0xf]
    %v3884 = vld [vmem:[%s10 + $0x20] sm:$0xf]
    %v3885 = vld [vmem:[%s10 + $0x24] sm:$0xf]
    %v3886 = vld [vmem:[%s10 + $0x28] sm:$0xf]
    %v3887 = vld [vmem:[%s10 + $0x2c] sm:$0xf]
    %v3888 = vld [vmem:[%s10 + $0x30] sm:$0xf]
    %v3889 = vld [vmem:[%s10 + $0x34] sm:$0xf]
    %v3890 = vld [vmem:[%s10 + $0x38] sm:$0xf]
    %v3891 = vld [vmem:[%s10 + $0x3c] sm:$0xf]
    %v3908 = vunpack.c.l.b16 %v3876
    %v3909 = vunpack.c.l.b16 %v3877
    %v3910 = vunpack.c.l.b16 %v3878
    %v3911 = vunpack.c.l.b16 %v3879
    %v3912 = vunpack.c.l.b16 %v3880
    %v3913 = vunpack.c.l.b16 %v3881
    %v3914 = vunpack.c.l.b16 %v3882
    %v3915 = vunpack.c.l.b16 %v3883
    %v3916 = vunpack.c.l.b16 %v3884
    %v3917 = vunpack.c.l.b16 %v3885
    %v3918 = vunpack.c.l.b16 %v3886
    %v3919 = vunpack.c.l.b16 %v3887
    %v3920 = vunpack.c.l.b16 %v3888
    %v3921 = vunpack.c.l.b16 %v3889
    %v3922 = vunpack.c.l.b16 %v3890
    %v3923 = vunpack.c.l.b16 %v3891
    %v3924 = vpack.c.b16 %v3909, %v3908
    %v3925 = vpack.c.b16 %v3911, %v3910
    %v3926 = vpack.c.b16 %v3913, %v3912
    %v3927 = vpack.c.b16 %v3915, %v3914
    %v3928 = vpack.c.b16 %v3917, %v3916
    %v3929 = vpack.c.b16 %v3919, %v3918
    %v3930 = vpack.c.b16 %v3921, %v3920
    %v3931 = vpack.c.b16 %v3923, %v3922
    %3940 = vmatpush.bf16.msra.mxu0 %v3931
    %3941 = vmatpush.bf16.msra.mxu0 %v3930
    %3942 = vmatpush.bf16.msra.mxu0 %v3929
    %3943 = vmatpush.bf16.msra.mxu0 %v3928
    %3944 = vmatpush.bf16.msra.mxu0 %v3927
    %3945 = vmatpush.bf16.msra.mxu0 %v3926
    %3946 = vmatpush.bf16.msra.mxu0 %v3925
    %3947 = vmatpush.bf16.msra.mxu0 %v3924
    %3948 = vmatmul.bf16.gmra.mxu0 %v3872
    %v3949 = vpop.f32.mrf.mxu0
    %v3950 = vadd.f32 0.0, %v3949
    %v3951 = vpop.f32.mrf.mxu0
    %v3952 = vadd.f32 0.0, %v3951
    %3953 = vmatmul.bf16.gmra.mxu0 %v3873
    %v3954 = vpop.f32.mrf.mxu0
    %v3955 = vadd.f32 0.0, %v3954
    %v3956 = vpop.f32.mrf.mxu0
    %v3957 = vadd.f32 0.0, %v3956
    %3958 = vmatmul.bf16.gmra.mxu0 %v3874
    %v3959 = vpop.f32.mrf.mxu0
    %v3960 = vadd.f32 0.0, %v3959
    %v3961 = vpop.f32.mrf.mxu0
    %v3962 = vadd.f32 0.0, %v3961
    %3963 = vmatmul.bf16.gmra.mxu0 %v3875
    %v3964 = vpop.f32.mrf.mxu0
    %v3965 = vadd.f32 0.0, %v3964
    %v3966 = vpop.f32.mrf.mxu0
    %v3967 = vadd.f32 0.0, %v3966
    %3968 = vdwg.mxu0
    %v3969 = vmin.f32 %v3950, %v3960
    %v3970 = vmin.f32 %v3952, %v3962
    %v3971 = vmin.f32 %v3955, %v3965
    %v3972 = vmin.f32 %v3957, %v3967
    %v3973 = vmin.f32 %v3969, %v3970
    %v3974 = vmin.f32 %v3971, %v3972
    %v3975 = vmin.f32 %v3973, %v3974
    %3976 = vmin.xlane.f32.xlu0 %v3975
    %v3977 = vpop.xlane.xlu0 %3976
    %v3978 = vrot.slane %v3977, 4
    %v3979 = vmin.f32 %v3977, %v3978
    %v3980 = vrot.slane %v3979, 2
    %v3981 = vmin.f32 %v3979, %v3980
    %v3982 = vrot.slane %v3981, 1
    %v3983 = vmin.f32 %v3981, %v3982
    %s3984 = vtos %v3983
    %v3985 = vmax.f32 %v3950, %v3960
    %v3986 = vmax.f32 %v3952, %v3962
    %v3987 = vmax.f32 %v3955, %v3965
    %v3988 = vmax.f32 %v3957, %v3967
    %v3989 = vmax.f32 %v3985, %v3986
    %v3990 = vmax.f32 %v3987, %v3988
    %v3991 = vmax.f32 %v3989, %v3990
    %3992 = vmax.xlane.f32.xlu0 %v3991
    %v3993 = vpop.xlane.xlu0 %3992
    %v3994 = vrot.slane %v3993, 4
    %v3995 = vmax.f32 %v3993, %v3994
    %v3996 = vrot.slane %v3995, 2
    %v3997 = vmax.f32 %v3995, %v3996
    %v3998 = vrot.slane %v3997, 1
    %v3999 = vmax.f32 %v3997, %v3998
    %s4000 = vtos %v3999
    %v4001 = vstv %s3984
    %v4002 = vsub.f32 %v3950, %v4001
    %v4003 = vsub.f32 %v3952, %v4001
    %v4004 = vsub.f32 %v3955, %v4001
    %v4005 = vsub.f32 %v3957, %v4001
    %v4006 = vsub.f32 %v3960, %v4001
    %v4007 = vsub.f32 %v3962, %v4001
    %v4008 = vsub.f32 %v3965, %v4001
    %v4009 = vsub.f32 %v3967, %v4001
    %s4010 = ssub.f32 %s4000, %s3984
    %s4011 = sadd.f32 %s4010, 1e-08
    %v4012 = vstv %s4011
    %v4013 = vrcp.pop %v4012
    %v4014 = vmul.f32 %v4012, %v4013
    %v4015 = vsub.f32 1.0, %v4014
    %v4016 = vmul.f32 %v4013, %v4015
    %v4017 = vadd.f32 %v4013, %v4016
    %vm4018 = vweird.f32 %v4012
    %vm4019 = vweird.f32 %v4013
    %vm4020 = vmor %vm4018, %vm4019
    %v4021 = vsel %vm4020, %v4013, %v4017
    %v4022 = vand.u32 2147483647, %v4012
    %vm4023 = vcmp.eq.f32.partialorder %v4022, 8.507059e+37
    %v4024 = vand.u32 %v4012, 2147483648
    %v4025 = vor.u32 1.1754944e-38, %v4024
    %v4026 = vsel %vm4023, %v4025, %v4021
    %s4027 = vtos %v4026
    %v4028 = vstv %s4027
    %v4029 = vmul.f32 %v4002, %v4028
    %v4030 = vmul.f32 %v4003, %v4028
    %v4031 = vmul.f32 %v4004, %v4028
    %v4032 = vmul.f32 %v4005, %v4028
    %v4033 = vmul.f32 %v4006, %v4028
    %v4034 = vmul.f32 %v4007, %v4028
    %v4035 = vmul.f32 %v4008, %v4028
    %v4036 = vmul.f32 %v4009, %v4028
    %4037 = vst [vmem:[#allocation11] sm:$0xff] %v4029
    %4038 = vst [vmem:[#allocation11 + $0x8] sm:$0xff] %v4030
    %4039 = vst [vmem:[#allocation11 + $0x10] sm:$0xff] %v4031
    %4040 = vst [vmem:[#allocation11 + $0x18] sm:$0xff] %v4032
    %4041 = vst [vmem:[#allocation11 + $0x20] sm:$0xff] %v4033
    %4042 = vst [vmem:[#allocation11 + $0x28] sm:$0xff] %v4034
    %4043 = vst [vmem:[#allocation11 + $0x30] sm:$0xff] %v4035
    %4044 = vst [vmem:[#allocation11 + $0x38] sm:$0xff] %v4036
    // Predicated region
    $region86: #{synth_vessel_photo_image.3} parent=1 // pred_check
      _
    $region87: #{synth_vessel_photo_image.3} parent=1 // pred_check_branch
      %4046 = sbr.rel (0) target = $region89
    $region88: #{synth_vessel_photo_image.3} parent=1 // pred_region
      %4048 = vsyncadd [#allocation4], 0
      %s4049 = sshll.u32 [#allocation11], 4
      %s4050 = int_to_ptr.vmem [resolvable:$true] %s4049
      %s4051 = sshll.u32 %s17, 4
      %s4052 = int_to_ptr.hbm [resolvable:$true] %s4051
      %4057 = dma.vmem_to_hbm [thread:$0]  %s4050, 1024, %s4052, [#allocation4], 128, 128, 8
    $region89: #{synth_vessel_photo_image.3} parent=1 // pred_fallthru
      _
    // Predicated region
    $region90: #{synth_vessel_photo_image.3} parent=1 // pred_check
      _
    $region91: #{synth_vessel_photo_image.3} parent=1 // pred_check_branch
      %4059 = sbr.rel (0) target = $region93
    $region92: #{synth_vessel_photo_image.3} parent=1 // pred_region
      %4061 = vsyncadd [#allocation13], 0
      %s4062 = sshll.u32 [#allocation12], 4
      %s4063 = int_to_ptr.vmem [resolvable:$true] %s4062
      %s4064 = sshll.u32 %s18, 4
      %s4065 = int_to_ptr.hbm [resolvable:$true] %s4064
      %4070 = dma.vmem_to_hbm [thread:$0]  %s4063, 1024, %s4065, [#allocation13], 128, 128, 8
    $region93: #{synth_vessel_photo_image.3} parent=1 // pred_fallthru
      _
    // Predicated region
    $region94: #{synth_vessel_photo_image.3} parent=1 // pred_check
      _
    $region95: #{synth_vessel_photo_image.3} parent=1 // pred_check_branch
      %4072 = sbr.rel (0) target = $region97
    $region96: #{synth_vessel_photo_image.3} parent=1 // pred_region
      %4074 = dma.done [#allocation4], 1024
    $region97: #{synth_vessel_photo_image.3} parent=1 // pred_fallthru
      _
    // Predicated region
    $region98: #{synth_vessel_photo_image.3} parent=1 // pred_check
      _
    $region99: #{synth_vessel_photo_image.3} parent=1 // pred_check_branch
      %4076 = sbr.rel (0) target = $region101
    $region100: #{synth_vessel_photo_image.3} parent=1 // pred_region
      %4078 = dma.done [#allocation13], 1024
    $region101: #{synth_vessel_photo_image.3} parent=1 // pred_fallthru
      _
    %4079 = vsyncpa [#allocation4], 1
    %4080 = vsyncpa [#allocation13], 1
    %4081 = vsyncpa [#allocation5], 1
    %4082 = vsyncpa [#allocation7], 1
    %4083 = vsyncpa [#allocation10], 1

</llo_original>
